<compile_context>
chip_gen: v6e
topology: v6e:2x2x1
jax: 0.10.0
libtpu: 0.0.40
codegen_flags: <defaults>
</compile_context>

<pallas_src>
import functools

import numpy as np
import jax
import jax.numpy as jnp
from jax.experimental import pallas as pl
from jax.experimental.pallas import tpu as pltpu


# --------------------------------------------------------------------------
# Pallas kernels
# --------------------------------------------------------------------------
def _sem_proj_kernel(x_ref, w1_ref, b1_ref, w2_ref, o_ref):
    """Per image: w2 @ relu(w1 @ sem + b1).  Channel-first, HW on lanes."""
    f32 = jnp.float32
    t = jnp.dot(w1_ref[...], x_ref[0], preferred_element_type=f32)
    t = jnp.maximum(t + b1_ref[...], 0.0)
    o_ref[0] = jnp.dot(w2_ref[...], t.astype(jnp.bfloat16),
                       preferred_element_type=f32).astype(o_ref.dtype)


def _fused_roi_kernel(bidx_ref, inst_ref, logit_ref, semproj_ref, st_ref,
                      wf0i_ref, wf0s_ref, bf0_ref, wdil_ref, bdil_ref,
                      wmrg_ref, bmrg_ref, wout_ref, bout_ref, *rest,
                      H, W, dilations, do_upsample):
    """Whole per-ROI chain of SimpleSFMStage, channel-first (C, H*W) layout."""
    if do_upsample:
        u_ref, o_ref, ypad_ref, tap_ref = rest
    else:
        o_ref, ypad_ref, tap_ref = rest
    del bidx_ref  # only used by the index_maps (scalar prefetch)

    f32, bf16 = jnp.float32, jnp.bfloat16
    P = H * W
    Ci = inst_ref.shape[1]
    Co1 = wout_ref.shape[0]
    PAD = max(dilations) * (W + 1)

    # -- numerically stable sigmoid(logits), (1, P) f32 --------------------
    lg = logit_ref[0].astype(f32)
    e = jnp.exp(-jnp.abs(lg))
    sig = jnp.where(lg >= 0.0, 1.0, e) / (1.0 + e)

    # -- fuse_conv[0] 1x1: the input concat becomes 3 accumulating products
    y0 = jnp.dot(wf0i_ref[...], inst_ref[0], preferred_element_type=f32)
    y0 = y0 + jnp.dot(semproj_ref[0], st_ref[0], preferred_element_type=f32)
    y0 = y0 + wf0s_ref[...] * sig                       # (Ci,1)*(1,P) outer
    y0 = jnp.maximum(y0 + bf0_ref[...], 0.0)            # (Ci, P)

    # -- MultiBranchFusion: dilated 3x3 taps from a zero-padded flat scratch
    ypad_ref[...] = jnp.zeros(ypad_ref.shape, ypad_ref.dtype)
    ypad_ref[:, PAD:PAD + P] = y0.astype(bf16)
    col_w = jax.lax.broadcasted_iota(jnp.int32, (1, P), 1) % W

    branch_sum = jnp.zeros((Ci, P), f32)
    for di, d in enumerate(dilations):
        for t in range(9):
            ky, kx = t // 3, t % 3
            dx = (kx - 1) * d
            off = (ky - 1) * d * W + dx
            tap = ypad_ref[:, PAD + off:PAD + off + P]   # (Ci, P), bf16
            # vertical out-of-range taps land in the zero pad automatically;
            # only the horizontal wrap inside a row needs masking.
            if dx > 0:
                tap = jnp.where(col_w < (W - dx), tap, jnp.zeros_like(tap))
            elif dx < 0:
                tap = jnp.where(col_w >= (-dx), tap, jnp.zeros_like(tap))
            tap_ref[t * Ci:(t + 1) * Ci, :] = tap
        br = jnp.dot(wdil_ref[di], tap_ref[...], preferred_element_type=f32)
        branch_sum = branch_sum + jnp.maximum(br + bdil_ref[di], 0.0)

    # merge conv (no act) + outer relu from SimpleSFMStage.forward
    y1 = jnp.dot(wmrg_ref[...], branch_sum.astype(bf16),
                 preferred_element_type=f32)
    y1 = jnp.maximum(y1 + bmrg_ref[...], 0.0)

    # fuse_transform_out 1x1 + relu -> (Co-1, P)
    y2 = jnp.dot(wout_ref[...], y1.astype(bf16), preferred_element_type=f32)
    y2 = jnp.maximum(y2 + bout_ref[...], 0.0)

    # concat([y2, sigmoid]) + x2 bilinear upsample, written lane-dense (C, 4P)
    if do_upsample:
        u = u_ref[...]                                   # (P, 4P) bf16
        o_ref[0, :Co1, :] = jnp.dot(y2.astype(bf16), u,
                                    preferred_element_type=f32)
        o_ref[0, Co1:, :] = jnp.dot(sig.astype(bf16), u,
                                    preferred_element_type=f32)
    else:
        o_ref[0, :Co1, :] = y2
        o_ref[0, Co1:, :] = sig


# --------------------------------------------------------------------------
# JAX glue (constants built at trace time; tiny)
# --------------------------------------------------------------------------
def upsample_matrix(in_size, scale):
    """PyTorch nn.Upsample(mode='bilinear', align_corners=False) 1-D matrix."""
    out_size = in_size * scale
    U = np.zeros((out_size, in_size), np.float32)
    for o in range(out_size):
        src = (o + 0.5) / scale - 0.5
        src = max(src, 0.0)
        i0 = min(int(np.floor(src)), in_size - 1)
        i1 = min(i0 + 1, in_size - 1)
        lam = src - i0
        U[o, i0] += 1.0 - lam
        U[o, i1] += lam
    return U


def build_sampling_matrix_T(rois, out_h, out_w, feat_h, feat_w, scale):
    """Transposed SimpleRoIAlign sampling matrix, (R, feat_h*feat_w, out_h*out_w).
    Built from separable per-axis bilinear factors (no dense one_hot sums)."""
    def axis_factor(lo, hi, n_out, n_feat):
        rel = (jnp.arange(n_out, dtype=jnp.float32) + 0.5) / n_out
        a = rel[None, :] * (hi - lo)[:, None] + lo[:, None]
        f = a * scale - 0.5
        i0 = jnp.floor(f)
        frac = f - i0
        i0 = i0.astype(jnp.int32)
        w0 = (1.0 - frac)[..., None] * jax.nn.one_hot(i0, n_feat, dtype=jnp.float32)
        w1 = frac[..., None] * jax.nn.one_hot(i0 + 1, n_feat, dtype=jnp.float32)
        return w0 + w1                                   # (R, n_out, n_feat)

    Sx = axis_factor(rois[:, 1], rois[:, 3], out_w, feat_w)
    Sy = axis_factor(rois[:, 2], rois[:, 4], out_h, feat_h)
    st = jnp.einsum('rpy,rqx->ryxpq', Sy, Sx)            # (R, yi, xi, py, px)
    return st.reshape(rois.shape[0], feat_h * feat_w, out_h * out_w)


# --------------------------------------------------------------------------
# Parameters (deterministic kaiming-style init, zero biases; PyTorch shapes)
# --------------------------------------------------------------------------
def init_params(key, semantic_in, semantic_out, instance_in, instance_out,
                dilations=(1, 3, 5)):
    ks = jax.random.split(key, 7)

    def conv_w(k, cout, cin, kh, kw):
        std = float(np.sqrt(2.0 / (cout * kh * kw)))
        return jax.random.normal(k, (cout, cin, kh, kw), jnp.float32) * std

    fuse_in = instance_in + semantic_out + 1
    p = {}
    p["w_sem"] = conv_w(ks[0], semantic_out, semantic_in, 1, 1)[:, :, 0, 0]
    p["b_sem"] = jnp.zeros((semantic_out,), jnp.float32)
    p["w_fuse0"] = conv_w(ks[1], instance_in, fuse_in, 1, 1)[:, :, 0, 0]
    p["b_fuse0"] = jnp.zeros((instance_in,), jnp.float32)
    p["w_dil"] = jnp.stack([conv_w(k, instance_in, instance_in, 3, 3)
                            for k in ks[2:2 + len(dilations)]])      # (nd,Ci,Ci,3,3)
    p["b_dil"] = jnp.zeros((len(dilations), instance_in), jnp.float32)
    p["w_merge"] = conv_w(ks[5], instance_in, instance_in, 1, 1)[:, :, 0, 0]
    p["b_merge"] = jnp.zeros((instance_in,), jnp.float32)
    p["w_out"] = conv_w(ks[6], instance_out - 1, instance_in, 1, 1)[:, :, 0, 0]
    p["b_out"] = jnp.zeros((instance_out - 1,), jnp.float32)
    return p


# --------------------------------------------------------------------------
# Forward pass (SimpleSFMStage.forward) — 2 pallas_calls total
# --------------------------------------------------------------------------
def simple_sfm_forward(params, instance_feats, instance_logits, semantic_feat,
                       rois, semantic_out_stride=4, dilations=(1, 3, 5),
                       upsample=True):
    f32, bf16 = jnp.float32, jnp.bfloat16
    B, Cs_in, Hs, Ws = semantic_feat.shape
    R, Ci, H, W = instance_feats.shape
    P, HW = H * W, Hs * Ws
    Cs = params["w_sem"].shape[0]
    Co1 = params["w_out"].shape[0]
    Co = Co1 + 1
    nd = len(dilations)

    # ---- weight preprocessing (tiny) -------------------------------------
    w_f0 = params["w_fuse0"]
    w_f0_inst = w_f0[:, :Ci].astype(bf16)
    w_f0_sem = w_f0[:, Ci:Ci + Cs].astype(bf16)
    w_f0_sig = w_f0[:, Ci + Cs:].astype(f32)                       # (Ci, 1)
    w_dil = jnp.transpose(params["w_dil"], (0, 1, 3, 4, 2)).reshape(
        nd, Ci, 9 * Ci).astype(bf16)
    b_dil = params["b_dil"][..., None].astype(f32)                 # (nd, Ci, 1)

    # ---- kernel 1: semantic_transform_in + relu, folded with fuse0 rows --
    sem_cf = semantic_feat.reshape(B, Cs_in, HW).astype(bf16)
    sem_proj = pl.pallas_call(
        _sem_proj_kernel,
        out_shape=jax.ShapeDtypeStruct((B, Ci, HW), bf16),
        grid=(B,),
        in_specs=[pl.BlockSpec((1, Cs_in, HW), lambda b: (b, 0, 0)),
                  pl.BlockSpec((Cs, Cs_in), lambda b: (0, 0)),
                  pl.BlockSpec((Cs, 1), lambda b: (0, 0)),
                  pl.BlockSpec((Ci, Cs), lambda b: (0, 0))],
        out_specs=pl.BlockSpec((1, Ci, HW), lambda b: (b, 0, 0)),
        compiler_params=pltpu.CompilerParams(
            dimension_semantics=("parallel",)),
    )(sem_cf, params["w_sem"].astype(bf16),
      params["b_sem"][:, None].astype(f32), w_f0_sem)

    # ---- per-ROI sampling matrix (separable bilinear, built in XLA) ------
    s_t = build_sampling_matrix_T(rois, H, W, Hs, Ws,
                                  1.0 / semantic_out_stride).astype(bf16)
    batch_idx = rois[:, 0].astype(jnp.int32)

    inst_cf = instance_feats.reshape(R, Ci, P).astype(bf16)
    logit_cf = instance_logits.reshape(R, 1, P).astype(f32)

    PUP = 4 * P if upsample else P
    PAD = max(dilations) * (W + 1)

    in_specs = [
        pl.BlockSpec((1, Ci, P), lambda r, b: (r, 0, 0)),          # inst
        pl.BlockSpec((1, 1, P), lambda r, b: (r, 0, 0)),           # logits
        pl.BlockSpec((1, Ci, HW), lambda r, b: (b[r], 0, 0)),      # sem_proj
        pl.BlockSpec((1, HW, P), lambda r, b: (r, 0, 0)),          # S^T
        pl.BlockSpec((Ci, Ci), lambda r, b: (0, 0)),               # w_f0_inst
        pl.BlockSpec((Ci, 1), lambda r, b: (0, 0)),                # w_f0_sig
        pl.BlockSpec((Ci, 1), lambda r, b: (0, 0)),                # b_f0
        pl.BlockSpec((nd, Ci, 9 * Ci), lambda r, b: (0, 0, 0)),    # w_dil
        pl.BlockSpec((nd, Ci, 1), lambda r, b: (0, 0, 0)),         # b_dil
        pl.BlockSpec((Ci, Ci), lambda r, b: (0, 0)),               # w_merge
        pl.BlockSpec((Ci, 1), lambda r, b: (0, 0)),                # b_merge
        pl.BlockSpec((Co1, Ci), lambda r, b: (0, 0)),              # w_out
        pl.BlockSpec((Co1, 1), lambda r, b: (0, 0)),               # b_out
    ]
    inputs = [inst_cf, logit_cf, sem_proj, s_t,
              w_f0_inst, w_f0_sig, params["b_fuse0"][:, None].astype(f32),
              w_dil, b_dil,
              params["w_merge"].astype(bf16),
              params["b_merge"][:, None].astype(f32),
              params["w_out"].astype(bf16),
              params["b_out"][:, None].astype(f32)]
    if upsample:
        u_t = jnp.asarray(
            np.kron(upsample_matrix(H, 2), upsample_matrix(W, 2)).T).astype(bf16)
        in_specs.append(pl.BlockSpec((P, PUP), lambda r, b: (0, 0)))
        inputs.append(u_t)

    kernel = functools.partial(_fused_roi_kernel, H=H, W=W,
                               dilations=tuple(dilations),
                               do_upsample=upsample)
    out = pl.pallas_call(
        kernel,
        out_shape=jax.ShapeDtypeStruct((R, Co, PUP), f32),
        grid_spec=pltpu.PrefetchScalarGridSpec(
            num_scalar_prefetch=1,
            grid=(R,),
            in_specs=in_specs,
            out_specs=pl.BlockSpec((1, Co, PUP), lambda r, b: (r, 0, 0)),
            scratch_shapes=[pltpu.VMEM((Ci, P + 2 * PAD), bf16),
                            pltpu.VMEM((9 * Ci, P), bf16)]),
        compiler_params=pltpu.CompilerParams(
            dimension_semantics=("parallel",)),
    )(batch_idx, *inputs)

    if upsample:
        return out.reshape(R, Co, 2 * H, 2 * W)
    return out.reshape(R, Co, H, W)


# --------------------------------------------------------------------------
# Pure-JAX reference (straightforward NCHW ops) for a correctness check
# --------------------------------------------------------------------------
def _roi_align_ref(feat, rois, out_hw, scale):
    B, C, Hs, Ws = feat.shape
    R = rois.shape[0]
    oh, ow = out_hw
    bi = rois[:, 0].astype(jnp.int32)
    relx = (jnp.arange(ow, dtype=jnp.float32) + 0.5) / ow
    rely = (jnp.arange(oh, dtype=jnp.float32) + 0.5) / oh
    ax = relx[None, :] * (rois[:, 3] - rois[:, 1])[:, None] + rois[:, 1][:, None]
    ay = rely[None, :] * (rois[:, 4] - rois[:, 2])[:, None] + rois[:, 2][:, None]
    fx = ax * scale - 0.5
    fy = ay * scale - 0.5
    x0 = jnp.floor(fx)
    y0 = jnp.floor(fy)
    wx = fx - x0
    wy = fy - y0
    feat_cl = jnp.transpose(feat, (0, 2, 3, 1)).reshape(B, Hs * Ws, C)[bi]
    out = jnp.zeros((R, oh, ow, C), jnp.float32)
    for dy, wyy in ((0, 1.0 - wy), (1, wy)):
        for dx, wxx in ((0, 1.0 - wx), (1, wx)):
            xi = x0 + dx
            yi = y0 + dy
            vx = ((xi >= 0) & (xi < Ws)).astype(jnp.float32)
            vy = ((yi >= 0) & (yi < Hs)).astype(jnp.float32)
            xc = jnp.clip(xi, 0, Ws - 1).astype(jnp.int32)
            yc = jnp.clip(yi, 0, Hs - 1).astype(jnp.int32)
            idx = yc[:, :, None] * Ws + xc[:, None, :]
            g = jnp.take_along_axis(feat_cl, idx.reshape(R, -1, 1), axis=1)
            g = g.reshape(R, oh, ow, C)
            wgt = (wyy * vy)[:, :, None] * (wxx * vx)[:, None, :]
            out = out + wgt[..., None] * g
    return jnp.transpose(out, (0, 3, 1, 2))


def reference_forward(params, instance_feats, instance_logits, semantic_feat,
                      rois, semantic_out_stride=4, dilations=(1, 3, 5),
                      upsample=True):
    relu = lambda x: jnp.maximum(x, 0.0)

    def conv1x1(x, w, b):
        return jnp.einsum('oc,bchw->bohw', w, x) + b[None, :, None, None]

    def conv3x3(x, w, b, d):
        y = jax.lax.conv_general_dilated(
            x, w, window_strides=(1, 1), padding=((d, d), (d, d)),
            rhs_dilation=(d, d), dimension_numbers=('NCHW', 'OIHW', 'NCHW'))
        return y + b[None, :, None, None]

    R, Ci, H, W = instance_feats.shape
    sem = relu(conv1x1(semantic_feat, params["w_sem"], params["b_sem"]))
    ins_sem = _roi_align_ref(sem, rois, (H, W), 1.0 / semantic_out_stride)
    sig = jax.nn.sigmoid(instance_logits)
    x = jnp.concatenate([instance_feats, ins_sem, sig], axis=1)
    x = relu(conv1x1(x, params["w_fuse0"], params["b_fuse0"]))
    brs = [relu(conv3x3(x, params["w_dil"][i], params["b_dil"][i], d))
           for i, d in enumerate(dilations)]
    x = relu(conv1x1(sum(brs), params["w_merge"], params["b_merge"]))
    x = relu(conv1x1(x, params["w_out"], params["b_out"]))
    x = jnp.concatenate([x, sig], axis=1)
    if upsample:
        Uh = jnp.asarray(upsample_matrix(H, 2))
        Uw = jnp.asarray(upsample_matrix(W, 2))
        x = jnp.einsum('oh,bchw,pw->bcop', Uh, x, Uw)
    return x


# --------------------------------------------------------------------------
if __name__ == "__main__":
    key = jax.random.PRNGKey(0)
    k_param, k_if, k_il, k_sf = jax.random.split(key, 4)

    B, R = 2, 4
    semantic_in, semantic_out = 8, 8
    instance_in, instance_out = 16, 16
    Hs = Ws = 16          # semantic feature spatial size (image = 64x64 @ stride 4)
    out_size = 14         # RoI / instance feature size
    stride = 4
    dilations = (1, 3, 5)

    params = init_params(k_param, semantic_in, semantic_out,
                         instance_in, instance_out, dilations)

    instance_feats = jax.random.normal(
        k_if, (R, instance_in, out_size, out_size), jnp.float32)
    instance_logits = jax.random.normal(
        k_il, (R, 1, out_size, out_size), jnp.float32)
    semantic_feat = jax.random.normal(k_sf, (B, semantic_in, Hs, Ws), jnp.float32)
    # rois: (batch_idx, x1, y1, x2, y2) in image coords, grouped by batch index
    rois = jnp.array([[0.,  4.,  4., 40., 40.],
                      [0., 10.,  8., 50., 60.],
                      [1.,  0.,  0., 63., 63.],
                      [1., 20., 16., 44., 48.]], jnp.float32)

    fwd = jax.jit(functools.partial(simple_sfm_forward,
                                    semantic_out_stride=stride,
                                    dilations=dilations, upsample=True))
    out = jax.block_until_ready(fwd(params, instance_feats, instance_logits,
                                    semantic_feat, rois))
    assert out.shape == (R, instance_out, 2 * out_size, 2 * out_size)
    assert bool(jnp.all(jnp.isfinite(out)))

    ref = reference_forward(params, instance_feats, instance_logits,
                            semantic_feat, rois, semantic_out_stride=stride,
                            dilations=dilations, upsample=True)
    assert ref.shape == out.shape
    err = float(jnp.max(jnp.abs(out - ref)) / (jnp.max(jnp.abs(ref)) + 1e-6))
    assert err < 0.08, f"mismatch vs reference: rel-max err {err}"
    print("KERNEL_OK")
</pallas_src>

<mosaic_0001>
module attributes {stable_mosaic.version = 11 : i64} {
  func.func @_sem_proj_kernel(%arg0: i32, %arg1: memref<1x8x256xbf16, #tpu.memory_space<vmem>>, %arg2: memref<8x8xbf16, #tpu.memory_space<vmem>>, %arg3: memref<8x1xf32, #tpu.memory_space<vmem>>, %arg4: memref<16x8xbf16, #tpu.memory_space<vmem>>, %arg5: memref<1x16x256xbf16, #tpu.memory_space<vmem>>) attributes {dimension_semantics = [#tpu.dimension_semantics<parallel>], iteration_bounds = array<i64: 2>, scalar_prefetch = 0 : i64, scratch_operands = 0 : i64, tpu.core_type = #tpu.core_type<tc>, window_params = [{transform_indices = @transform_0, window_bounds = array<i64: 1, 8, 256>}, {pipeline_mode = #tpu.pipeline_mode<synchronous>, transform_indices = @transform_1, window_bounds = array<i64: 8, 8>}, {pipeline_mode = #tpu.pipeline_mode<synchronous>, transform_indices = @transform_2, window_bounds = array<i64: 8, 1>}, {pipeline_mode = #tpu.pipeline_mode<synchronous>, transform_indices = @transform_3, window_bounds = array<i64: 16, 8>}, {transform_indices = @transform_4, window_bounds = array<i64: 1, 16, 256>}]} {
    %c0 = arith.constant 0 : index
    %c0_0 = arith.constant 0 : index
    %0 = vector.load %arg2[%c0, %c0_0] : memref<8x8xbf16, #tpu.memory_space<vmem>>, vector<8x8xbf16>
    %c0_1 = arith.constant 0 : index
    %c0_2 = arith.constant 0 : index
    %c0_3 = arith.constant 0 : index
    %1 = vector.load %arg1[%c0_1, %c0_2, %c0_3] : memref<1x8x256xbf16, #tpu.memory_space<vmem>>, vector<1x8x256xbf16>
    %2 = vector.shape_cast %1 : vector<1x8x256xbf16> to vector<8x256xbf16>
    %cst = arith.constant dense<0.000000e+00> : vector<8x256xf32>
    %3 = tpu.matmul %0, %2, %cst {dimension_numbers = #tpu.dot_dimension_numbers<[1], [0], [0], [1], [0, 0, 1, 1], [], []>} : vector<8x8xbf16>, vector<8x256xbf16>, vector<8x256xf32> -> vector<8x256xf32>
    %c0_4 = arith.constant 0 : index
    %c0_5 = arith.constant 0 : index
    %4 = vector.load %arg3[%c0_4, %c0_5] : memref<8x1xf32, #tpu.memory_space<vmem>>, vector<8x1xf32>
    %5 = vector.broadcast %4 : vector<8x1xf32> to vector<8x256xf32>
    %6 = arith.addf %3, %5 : vector<8x256xf32>
    %cst_6 = arith.constant 0.000000e+00 : f32
    %7 = vector.broadcast %cst_6 : f32 to vector<8x256xf32>
    %8 = arith.maximumf %6, %7 : vector<8x256xf32>
    %c0_7 = arith.constant 0 : index
    %c0_8 = arith.constant 0 : index
    %9 = vector.load %arg4[%c0_7, %c0_8] : memref<16x8xbf16, #tpu.memory_space<vmem>>, vector<16x8xbf16>
    %10 = arith.truncf %8 : vector<8x256xf32> to vector<8x256xbf16>
    %cst_9 = arith.constant dense<0.000000e+00> : vector<16x256xf32>
    %11 = tpu.matmul %9, %10, %cst_9 {dimension_numbers = #tpu.dot_dimension_numbers<[1], [0], [0], [1], [0, 0, 1, 1], [], []>} : vector<16x8xbf16>, vector<8x256xbf16>, vector<16x256xf32> -> vector<16x256xf32>
    %12 = arith.truncf %11 : vector<16x256xf32> to vector<16x256xbf16>
    %c0_10 = arith.constant 0 : index
    %c0_11 = arith.constant 0 : index
    %c0_12 = arith.constant 0 : index
    %13 = vector.load %arg5[%c0_10, %c0_11, %c0_12] : memref<1x16x256xbf16, #tpu.memory_space<vmem>>, vector<1x16x256xbf16>
    %14 = vector.shape_cast %13 : vector<1x16x256xbf16> to vector<16x256xbf16>
    %15 = vector.shape_cast %12 : vector<16x256xbf16> to vector<1x16x256xbf16>
    tpu.vector_store %arg5[%c0_10, %c0_11, %c0_12], %15 {strides = array<i32>} : memref<1x16x256xbf16, #tpu.memory_space<vmem>>, vector<1x16x256xbf16>,
    return
  }
  func.func @transform_0(%arg0: i32) -> (i32, i32, i32) {
    %c0_i32 = arith.constant 0 : i32
    %c0_i32_0 = arith.constant 0 : i32
    %c0_i32_1 = arith.constant 0 : i32
    return %arg0, %c0_i32, %c0_i32_0 : i32, i32, i32
  }
  func.func @transform_1(%arg0: i32) -> (i32, i32) {
    %c0_i32 = arith.constant 0 : i32
    %c0_i32_0 = arith.constant 0 : i32
    %c0_i32_1 = arith.constant 0 : i32
    return %c0_i32, %c0_i32_0 : i32, i32
  }
  func.func @transform_2(%arg0: i32) -> (i32, i32) {
    %c0_i32 = arith.constant 0 : i32
    %c0_i32_0 = arith.constant 0 : i32
    %c0_i32_1 = arith.constant 0 : i32
    return %c0_i32, %c0_i32_0 : i32, i32
  }
  func.func @transform_3(%arg0: i32) -> (i32, i32) {
    %c0_i32 = arith.constant 0 : i32
    %c0_i32_0 = arith.constant 0 : i32
    %c0_i32_1 = arith.constant 0 : i32
    return %c0_i32, %c0_i32_0 : i32, i32
  }
  func.func @transform_4(%arg0: i32) -> (i32, i32, i32) {
    %c0_i32 = arith.constant 0 : i32
    %c0_i32_0 = arith.constant 0 : i32
    %c0_i32_1 = arith.constant 0 : i32
    return %arg0, %c0_i32, %c0_i32_0 : i32, i32, i32
  }
}

module attributes {stable_mosaic.version = 11 : i64} {
  func.func @_fused_roi_kernel(%arg0: i32, %arg1: memref<4xi32, #tpu.memory_space<smem>>, %arg2: memref<1x16x196xbf16, #tpu.memory_space<vmem>>, %arg3: memref<1x1x196xf32, #tpu.memory_space<vmem>>, %arg4: memref<1x16x256xbf16, #tpu.memory_space<vmem>>, %arg5: memref<1x256x196xbf16, #tpu.memory_space<vmem>>, %arg6: memref<16x16xbf16, #tpu.memory_space<vmem>>, %arg7: memref<16x1xf32, #tpu.memory_space<vmem>>, %arg8: memref<16x1xf32, #tpu.memory_space<vmem>>, %arg9: memref<3x16x144xbf16, #tpu.memory_space<vmem>>, %arg10: memref<3x16x1xf32, #tpu.memory_space<vmem>>, %arg11: memref<16x16xbf16, #tpu.memory_space<vmem>>, %arg12: memref<16x1xf32, #tpu.memory_space<vmem>>, %arg13: memref<15x16xbf16, #tpu.memory_space<vmem>>, %arg14: memref<15x1xf32, #tpu.memory_space<vmem>>, %arg15: memref<196x784xbf16, #tpu.memory_space<vmem>>, %arg16: memref<1x16x784xf32, #tpu.memory_space<vmem>>, %arg17: memref<16x346xbf16, #tpu.memory_space<vmem>>, %arg18: memref<144x196xbf16, #tpu.memory_space<vmem>>) attributes {dimension_semantics = [#tpu.dimension_semantics<parallel>], iteration_bounds = array<i64: 4>, scalar_prefetch = 1 : i64, scratch_operands = 2 : i64, tpu.core_type = #tpu.core_type<tc>, window_params = [{transform_indices = @transform_0, window_bounds = array<i64: 1, 16, 196>}, {transform_indices = @transform_1, window_bounds = array<i64: 1, 1, 196>}, {transform_indices = @transform_2, window_bounds = array<i64: 1, 16, 256>}, {transform_indices = @transform_3, window_bounds = array<i64: 1, 256, 196>}, {pipeline_mode = #tpu.pipeline_mode<synchronous>, transform_indices = @transform_4, window_bounds = array<i64: 16, 16>}, {pipeline_mode = #tpu.pipeline_mode<synchronous>, transform_indices = @transform_5, window_bounds = array<i64: 16, 1>}, {pipeline_mode = #tpu.pipeline_mode<synchronous>, transform_indices = @transform_6, window_bounds = array<i64: 16, 1>}, {pipeline_mode = #tpu.pipeline_mode<synchronous>, transform_indices = @transform_7, window_bounds = array<i64: 3, 16, 144>}, {pipeline_mode = #tpu.pipeline_mode<synchronous>, transform_indices = @transform_8, window_bounds = array<i64: 3, 16, 1>}, {pipeline_mode = #tpu.pipeline_mode<synchronous>, transform_indices = @transform_9, window_bounds = array<i64: 16, 16>}, {pipeline_mode = #tpu.pipeline_mode<synchronous>, transform_indices = @transform_10, window_bounds = array<i64: 16, 1>}, {pipeline_mode = #tpu.pipeline_mode<synchronous>, transform_indices = @transform_11, window_bounds = array<i64: 15, 16>}, {pipeline_mode = #tpu.pipeline_mode<synchronous>, transform_indices = @transform_12, window_bounds = array<i64: 15, 1>}, {pipeline_mode = #tpu.pipeline_mode<synchronous>, transform_indices = @transform_13, window_bounds = array<i64: 196, 784>}, {transform_indices = @transform_14, window_bounds = array<i64: 1, 16, 784>}]} {
    %c0 = arith.constant 0 : index
    %c0_0 = arith.constant 0 : index
    %c0_1 = arith.constant 0 : index
    %0 = vector.load %arg3[%c0, %c0_0, %c0_1] : memref<1x1x196xf32, #tpu.memory_space<vmem>>, vector<1x1x196xf32>
    %1 = vector.shape_cast %0 : vector<1x1x196xf32> to vector<1x196xf32>
    %2 = math.absf %1 : vector<1x196xf32>
    %cst = arith.constant 0.000000e+00 : f32
    %3 = vector.broadcast %cst : f32 to vector<1x196xf32>
    %4 = arith.subf %3, %2 : vector<1x196xf32>
    %5 = math.exp %4 : vector<1x196xf32>
    %cst_2 = arith.constant 0.000000e+00 : f32
    %6 = vector.broadcast %cst_2 : f32 to vector<1x196xf32>
    %7 = arith.cmpf oge, %1, %6 : vector<1x196xf32>
    %cst_3 = arith.constant 1.000000e+00 : f32
    %8 = vector.broadcast %cst_3 : f32 to vector<1x196xf32>
    %9 = arith.select %7, %8, %5 : vector<1x196xi1>, vector<1x196xf32>
    %cst_4 = arith.constant 1.000000e+00 : f32
    %10 = vector.broadcast %cst_4 : f32 to vector<1x196xf32>
    %11 = arith.addf %10, %5 : vector<1x196xf32>
    %12 = arith.divf %9, %11 : vector<1x196xf32>
    %c0_5 = arith.constant 0 : index
    %c0_6 = arith.constant 0 : index
    %13 = vector.load %arg6[%c0_5, %c0_6] : memref<16x16xbf16, #tpu.memory_space<vmem>>, vector<16x16xbf16>
    %c0_7 = arith.constant 0 : index
    %c0_8 = arith.constant 0 : index
    %c0_9 = arith.constant 0 : index
    %14 = vector.load %arg2[%c0_7, %c0_8, %c0_9] : memref<1x16x196xbf16, #tpu.memory_space<vmem>>, vector<1x16x196xbf16>
    %15 = vector.shape_cast %14 : vector<1x16x196xbf16> to vector<16x196xbf16>
    %cst_10 = arith.constant dense<0.000000e+00> : vector<16x196xf32>
    %16 = tpu.matmul %13, %15, %cst_10 {dimension_numbers = #tpu.dot_dimension_numbers<[1], [0], [0], [1], [0, 0, 1, 1], [], []>} : vector<16x16xbf16>, vector<16x196xbf16>, vector<16x196xf32> -> vector<16x196xf32>
    %c0_11 = arith.constant 0 : index
    %c0_12 = arith.constant 0 : index
    %c0_13 = arith.constant 0 : index
    %17 = vector.load %arg4[%c0_11, %c0_12, %c0_13] : memref<1x16x256xbf16, #tpu.memory_space<vmem>>, vector<1x16x256xbf16>
    %18 = vector.shape_cast %17 : vector<1x16x256xbf16> to vector<16x256xbf16>
    %c0_14 = arith.constant 0 : index
    %c0_15 = arith.constant 0 : index
    %c0_16 = arith.constant 0 : index
    %19 = vector.load %arg5[%c0_14, %c0_15, %c0_16] : memref<1x256x196xbf16, #tpu.memory_space<vmem>>, vector<1x256x196xbf16>
    %20 = vector.shape_cast %19 : vector<1x256x196xbf16> to vector<256x196xbf16>
    %cst_17 = arith.constant dense<0.000000e+00> : vector<16x196xf32>
    %21 = tpu.matmul %18, %20, %cst_17 {dimension_numbers = #tpu.dot_dimension_numbers<[1], [0], [0], [1], [0, 0, 1, 1], [], []>} : vector<16x256xbf16>, vector<256x196xbf16>, vector<16x196xf32> -> vector<16x196xf32>
    %22 = arith.addf %16, %21 : vector<16x196xf32>
    %c0_18 = arith.constant 0 : index
    %c0_19 = arith.constant 0 : index
    %23 = vector.load %arg7[%c0_18, %c0_19] : memref<16x1xf32, #tpu.memory_space<vmem>>, vector<16x1xf32>
    %24 = vector.broadcast %23 : vector<16x1xf32> to vector<16x196xf32>
    %25 = vector.broadcast %12 : vector<1x196xf32> to vector<16x196xf32>
    %26 = arith.mulf %24, %25 : vector<16x196xf32>
    %27 = arith.addf %22, %26 : vector<16x196xf32>
    %c0_20 = arith.constant 0 : index
    %c0_21 = arith.constant 0 : index
    %28 = vector.load %arg8[%c0_20, %c0_21] : memref<16x1xf32, #tpu.memory_space<vmem>>, vector<16x1xf32>
    %29 = vector.broadcast %28 : vector<16x1xf32> to vector<16x196xf32>
    %30 = arith.addf %27, %29 : vector<16x196xf32>
    %cst_22 = arith.constant 0.000000e+00 : f32
    %31 = vector.broadcast %cst_22 : f32 to vector<16x196xf32>
    %32 = arith.maximumf %30, %31 : vector<16x196xf32>
    %cst_23 = arith.constant 0.000000e+00 : bf16
    %33 = vector.broadcast %cst_23 : bf16 to vector<16x346xbf16>
    %c0_24 = arith.constant 0 : index
    %c0_25 = arith.constant 0 : index
    %34 = vector.load %arg17[%c0_24, %c0_25] : memref<16x346xbf16, #tpu.memory_space<vmem>>, vector<16x346xbf16>
    tpu.vector_store %arg17[%c0_24, %c0_25], %33 {strides = array<i32>} : memref<16x346xbf16, #tpu.memory_space<vmem>>, vector<16x346xbf16>,
    %35 = arith.truncf %32 : vector<16x196xf32> to vector<16x196xbf16>
    %c0_26 = arith.constant 0 : index
    %c75 = arith.constant 75 : index
    %36 = vector.load %arg17[%c0_26, %c75] : memref<16x346xbf16, #tpu.memory_space<vmem>>, vector<16x196xbf16>
    tpu.vector_store %arg17[%c0_26, %c75], %35 {strides = array<i32>} : memref<16x346xbf16, #tpu.memory_space<vmem>>, vector<16x196xbf16>,
    %37 = tpu.iota {dimensions = array<i32: 1>} : vector<1x196xi32>
    %c14_i32 = arith.constant 14 : i32
    %c0_i32 = arith.constant 0 : i32
    %38 = arith.cmpi eq, %c14_i32, %c0_i32 : i32
    %c1_i32 = arith.constant 1 : i32
    %39 = arith.select %38, %c1_i32, %c14_i32 : i32
    %40 = vector.broadcast %39 : i32 to vector<1x196xi32>
    %41 = arith.remsi %37, %40 : vector<1x196xi32>
    %c0_i32_27 = arith.constant 0 : i32
    %42 = vector.broadcast %c0_i32_27 : i32 to vector<1x196xi32>
    %43 = arith.cmpi ne, %41, %42 : vector<1x196xi32>
    %c0_i32_28 = arith.constant 0 : i32
    %44 = vector.broadcast %c0_i32_28 : i32 to vector<1x196xi32>
    %45 = arith.cmpi slt, %41, %44 : vector<1x196xi32>
    %c0_i32_29 = arith.constant 0 : i32
    %46 = arith.cmpi slt, %39, %c0_i32_29 : i32
    %47 = vector.broadcast %46 : i1 to vector<1x196xi1>
    %48 = vector.broadcast %47 : vector<1x196xi1> to vector<1x196xi1>
    %49 = arith.xori %45, %48 : vector<1x196xi1>
    %50 = arith.andi %49, %43 : vector<1x196xi1>
    %51 = vector.broadcast %39 : i32 to vector<1x196xi32>
    %52 = arith.addi %41, %51 : vector<1x196xi32>
    %53 = arith.select %50, %52, %41 : vector<1x196xi1>, vector<1x196xi32>
    %cst_30 = arith.constant 0.000000e+00 : f32
    %54 = vector.broadcast %cst_30 : f32 to vector<16x196xf32>
    %c0_31 = arith.constant 0 : index
    %c60 = arith.constant 60 : index
    %55 = vector.load %arg17[%c0_31, %c60] : memref<16x346xbf16, #tpu.memory_space<vmem>>, vector<16x196xbf16>
    %c1_i32_32 = arith.constant 1 : i32
    %56 = vector.broadcast %c1_i32_32 : i32 to vector<1x196xi32>
    %57 = arith.cmpi sge, %53, %56 : vector<1x196xi32>
    %cst_33 = arith.constant 0.000000e+00 : bf16
    %58 = vector.broadcast %cst_33 : bf16 to vector<16x196xbf16>
    %59 = vector.shape_cast %57 : vector<1x196xi1> to vector<1x196xi1>
    %60 = vector.broadcast %59 : vector<1x196xi1> to vector<16x196xi1>
    %61 = arith.select %60, %55, %58 : vector<16x196xi1>, vector<16x196xbf16>
    %c0_34 = arith.constant 0 : index
    %c0_35 = arith.constant 0 : index
    %62 = vector.load %arg18[%c0_34, %c0_35] : memref<144x196xbf16, #tpu.memory_space<vmem>>, vector<16x196xbf16>
    tpu.vector_store %arg18[%c0_34, %c0_35], %61 {strides = array<i32>} : memref<144x196xbf16, #tpu.memory_space<vmem>>, vector<16x196xbf16>,
    %c0_36 = arith.constant 0 : index
    %c61 = arith.constant 61 : index
    %63 = vector.load %arg17[%c0_36, %c61] : memref<16x346xbf16, #tpu.memory_space<vmem>>, vector<16x196xbf16>
    %c16 = arith.constant 16 : index
    %c0_37 = arith.constant 0 : index
    %64 = vector.load %arg18[%c16, %c0_37] : memref<144x196xbf16, #tpu.memory_space<vmem>>, vector<16x196xbf16>
    tpu.vector_store %arg18[%c16, %c0_37], %63 {strides = array<i32>} : memref<144x196xbf16, #tpu.memory_space<vmem>>, vector<16x196xbf16>,
    %c0_38 = arith.constant 0 : index
    %c62 = arith.constant 62 : index
    %65 = vector.load %arg17[%c0_38, %c62] : memref<16x346xbf16, #tpu.memory_space<vmem>>, vector<16x196xbf16>
    %c13_i32 = arith.constant 13 : i32
    %66 = vector.broadcast %c13_i32 : i32 to vector<1x196xi32>
    %67 = arith.cmpi slt, %53, %66 : vector<1x196xi32>
    %cst_39 = arith.constant 0.000000e+00 : bf16
    %68 = vector.broadcast %cst_39 : bf16 to vector<16x196xbf16>
    %69 = vector.shape_cast %67 : vector<1x196xi1> to vector<1x196xi1>
    %70 = vector.broadcast %69 : vector<1x196xi1> to vector<16x196xi1>
    %71 = arith.select %70, %65, %68 : vector<16x196xi1>, vector<16x196xbf16>
    %c32 = arith.constant 32 : index
    %c0_40 = arith.constant 0 : index
    %72 = vector.load %arg18[%c32, %c0_40] : memref<144x196xbf16, #tpu.memory_space<vmem>>, vector<16x196xbf16>
    tpu.vector_store %arg18[%c32, %c0_40], %71 {strides = array<i32>} : memref<144x196xbf16, #tpu.memory_space<vmem>>, vector<16x196xbf16>,
    %c0_41 = arith.constant 0 : index
    %c74 = arith.constant 74 : index
    %73 = vector.load %arg17[%c0_41, %c74] : memref<16x346xbf16, #tpu.memory_space<vmem>>, vector<16x196xbf16>
    %c1_i32_42 = arith.constant 1 : i32
    %74 = vector.broadcast %c1_i32_42 : i32 to vector<1x196xi32>
    %75 = arith.cmpi sge, %53, %74 : vector<1x196xi32>
    %cst_43 = arith.constant 0.000000e+00 : bf16
    %76 = vector.broadcast %cst_43 : bf16 to vector<16x196xbf16>
    %77 = vector.shape_cast %75 : vector<1x196xi1> to vector<1x196xi1>
    %78 = vector.broadcast %77 : vector<1x196xi1> to vector<16x196xi1>
    %79 = arith.select %78, %73, %76 : vector<16x196xi1>, vector<16x196xbf16>
    %c48 = arith.constant 48 : index
    %c0_44 = arith.constant 0 : index
    %80 = vector.load %arg18[%c48, %c0_44] : memref<144x196xbf16, #tpu.memory_space<vmem>>, vector<16x196xbf16>
    tpu.vector_store %arg18[%c48, %c0_44], %79 {strides = array<i32>} : memref<144x196xbf16, #tpu.memory_space<vmem>>, vector<16x196xbf16>,
    %c0_45 = arith.constant 0 : index
    %c75_46 = arith.constant 75 : index
    %81 = vector.load %arg17[%c0_45, %c75_46] : memref<16x346xbf16, #tpu.memory_space<vmem>>, vector<16x196xbf16>
    %c64 = arith.constant 64 : index
    %c0_47 = arith.constant 0 : index
    %82 = vector.load %arg18[%c64, %c0_47] : memref<144x196xbf16, #tpu.memory_space<vmem>>, vector<16x196xbf16>
    tpu.vector_store %arg18[%c64, %c0_47], %81 {strides = array<i32>} : memref<144x196xbf16, #tpu.memory_space<vmem>>, vector<16x196xbf16>,
    %c0_48 = arith.constant 0 : index
    %c76 = arith.constant 76 : index
    %83 = vector.load %arg17[%c0_48, %c76] : memref<16x346xbf16, #tpu.memory_space<vmem>>, vector<16x196xbf16>
    %c13_i32_49 = arith.constant 13 : i32
    %84 = vector.broadcast %c13_i32_49 : i32 to vector<1x196xi32>
    %85 = arith.cmpi slt, %53, %84 : vector<1x196xi32>
    %cst_50 = arith.constant 0.000000e+00 : bf16
    %86 = vector.broadcast %cst_50 : bf16 to vector<16x196xbf16>
    %87 = vector.shape_cast %85 : vector<1x196xi1> to vector<1x196xi1>
    %88 = vector.broadcast %87 : vector<1x196xi1> to vector<16x196xi1>
    %89 = arith.select %88, %83, %86 : vector<16x196xi1>, vector<16x196xbf16>
    %c80 = arith.constant 80 : index
    %c0_51 = arith.constant 0 : index
    %90 = vector.load %arg18[%c80, %c0_51] : memref<144x196xbf16, #tpu.memory_space<vmem>>, vector<16x196xbf16>
    tpu.vector_store %arg18[%c80, %c0_51], %89 {strides = array<i32>} : memref<144x196xbf16, #tpu.memory_space<vmem>>, vector<16x196xbf16>,
    %c0_52 = arith.constant 0 : index
    %c88 = arith.constant 88 : index
    %91 = vector.load %arg17[%c0_52, %c88] : memref<16x346xbf16, #tpu.memory_space<vmem>>, vector<16x196xbf16>
    %c1_i32_53 = arith.constant 1 : i32
    %92 = vector.broadcast %c1_i32_53 : i32 to vector<1x196xi32>
    %93 = arith.cmpi sge, %53, %92 : vector<1x196xi32>
    %cst_54 = arith.constant 0.000000e+00 : bf16
    %94 = vector.broadcast %cst_54 : bf16 to vector<16x196xbf16>
    %95 = vector.shape_cast %93 : vector<1x196xi1> to vector<1x196xi1>
    %96 = vector.broadcast %95 : vector<1x196xi1> to vector<16x196xi1>
    %97 = arith.select %96, %91, %94 : vector<16x196xi1>, vector<16x196xbf16>
    %c96 = arith.constant 96 : index
    %c0_55 = arith.constant 0 : index
    %98 = vector.load %arg18[%c96, %c0_55] : memref<144x196xbf16, #tpu.memory_space<vmem>>, vector<16x196xbf16>
    tpu.vector_store %arg18[%c96, %c0_55], %97 {strides = array<i32>} : memref<144x196xbf16, #tpu.memory_space<vmem>>, vector<16x196xbf16>,
    %c0_56 = arith.constant 0 : index
    %c89 = arith.constant 89 : index
    %99 = vector.load %arg17[%c0_56, %c89] : memref<16x346xbf16, #tpu.memory_space<vmem>>, vector<16x196xbf16>
    %c112 = arith.constant 112 : index
    %c0_57 = arith.constant 0 : index
    %100 = vector.load %arg18[%c112, %c0_57] : memref<144x196xbf16, #tpu.memory_space<vmem>>, vector<16x196xbf16>
    tpu.vector_store %arg18[%c112, %c0_57], %99 {strides = array<i32>} : memref<144x196xbf16, #tpu.memory_space<vmem>>, vector<16x196xbf16>,
    %c0_58 = arith.constant 0 : index
    %c90 = arith.constant 90 : index
    %101 = vector.load %arg17[%c0_58, %c90] : memref<16x346xbf16, #tpu.memory_space<vmem>>, vector<16x196xbf16>
    %c13_i32_59 = arith.constant 13 : i32
    %102 = vector.broadcast %c13_i32_59 : i32 to vector<1x196xi32>
    %103 = arith.cmpi slt, %53, %102 : vector<1x196xi32>
    %cst_60 = arith.constant 0.000000e+00 : bf16
    %104 = vector.broadcast %cst_60 : bf16 to vector<16x196xbf16>
    %105 = vector.shape_cast %103 : vector<1x196xi1> to vector<1x196xi1>
    %106 = vector.broadcast %105 : vector<1x196xi1> to vector<16x196xi1>
    %107 = arith.select %106, %101, %104 : vector<16x196xi1>, vector<16x196xbf16>
    %c128 = arith.constant 128 : index
    %c0_61 = arith.constant 0 : index
    %108 = vector.load %arg18[%c128, %c0_61] : memref<144x196xbf16, #tpu.memory_space<vmem>>, vector<16x196xbf16>
    tpu.vector_store %arg18[%c128, %c0_61], %107 {strides = array<i32>} : memref<144x196xbf16, #tpu.memory_space<vmem>>, vector<16x196xbf16>,
    %c0_62 = arith.constant 0 : index
    %c0_63 = arith.constant 0 : index
    %c0_64 = arith.constant 0 : index
    %109 = vector.load %arg9[%c0_62, %c0_63, %c0_64] : memref<3x16x144xbf16, #tpu.memory_space<vmem>>, vector<1x16x144xbf16>
    %110 = vector.shape_cast %109 : vector<1x16x144xbf16> to vector<16x144xbf16>
    %c0_65 = arith.constant 0 : index
    %c0_66 = arith.constant 0 : index
    %111 = vector.load %arg18[%c0_65, %c0_66] : memref<144x196xbf16, #tpu.memory_space<vmem>>, vector<144x196xbf16>
    %cst_67 = arith.constant dense<0.000000e+00> : vector<16x196xf32>
    %112 = tpu.matmul %110, %111, %cst_67 {dimension_numbers = #tpu.dot_dimension_numbers<[1], [0], [0], [1], [0, 0, 1, 1], [], []>} : vector<16x144xbf16>, vector<144x196xbf16>, vector<16x196xf32> -> vector<16x196xf32>
    %c0_68 = arith.constant 0 : index
    %c0_69 = arith.constant 0 : index
    %c0_70 = arith.constant 0 : index
    %113 = vector.load %arg10[%c0_68, %c0_69, %c0_70] : memref<3x16x1xf32, #tpu.memory_space<vmem>>, vector<1x16x1xf32>
    %114 = vector.shape_cast %113 : vector<1x16x1xf32> to vector<16x1xf32>
    %115 = vector.broadcast %114 : vector<16x1xf32> to vector<16x196xf32>
    %116 = arith.addf %112, %115 : vector<16x196xf32>
    %cst_71 = arith.constant 0.000000e+00 : f32
    %117 = vector.broadcast %cst_71 : f32 to vector<16x196xf32>
    %118 = arith.maximumf %116, %117 : vector<16x196xf32>
    %119 = arith.addf %54, %118 : vector<16x196xf32>
    %c0_72 = arith.constant 0 : index
    %c30 = arith.constant 30 : index
    %120 = vector.load %arg17[%c0_72, %c30] : memref<16x346xbf16, #tpu.memory_space<vmem>>, vector<16x196xbf16>
    %c3_i32 = arith.constant 3 : i32
    %121 = vector.broadcast %c3_i32 : i32 to vector<1x196xi32>
    %122 = arith.cmpi sge, %53, %121 : vector<1x196xi32>
    %cst_73 = arith.constant 0.000000e+00 : bf16
    %123 = vector.broadcast %cst_73 : bf16 to vector<16x196xbf16>
    %124 = vector.shape_cast %122 : vector<1x196xi1> to vector<1x196xi1>
    %125 = vector.broadcast %124 : vector<1x196xi1> to vector<16x196xi1>
    %126 = arith.select %125, %120, %123 : vector<16x196xi1>, vector<16x196xbf16>
    %c0_74 = arith.constant 0 : index
    %c0_75 = arith.constant 0 : index
    %127 = vector.load %arg18[%c0_74, %c0_75] : memref<144x196xbf16, #tpu.memory_space<vmem>>, vector<16x196xbf16>
    tpu.vector_store %arg18[%c0_74, %c0_75], %126 {strides = array<i32>} : memref<144x196xbf16, #tpu.memory_space<vmem>>, vector<16x196xbf16>,
    %c0_76 = arith.constant 0 : index
    %c33 = arith.constant 33 : index
    %128 = vector.load %arg17[%c0_76, %c33] : memref<16x346xbf16, #tpu.memory_space<vmem>>, vector<16x196xbf16>
    %c16_77 = arith.constant 16 : index
    %c0_78 = arith.constant 0 : index
    %129 = vector.load %arg18[%c16_77, %c0_78] : memref<144x196xbf16, #tpu.memory_space<vmem>>, vector<16x196xbf16>
    tpu.vector_store %arg18[%c16_77, %c0_78], %128 {strides = array<i32>} : memref<144x196xbf16, #tpu.memory_space<vmem>>, vector<16x196xbf16>,
    %c0_79 = arith.constant 0 : index
    %c36 = arith.constant 36 : index
    %130 = vector.load %arg17[%c0_79, %c36] : memref<16x346xbf16, #tpu.memory_space<vmem>>, vector<16x196xbf16>
    %c11_i32 = arith.constant 11 : i32
    %131 = vector.broadcast %c11_i32 : i32 to vector<1x196xi32>
    %132 = arith.cmpi slt, %53, %131 : vector<1x196xi32>
    %cst_80 = arith.constant 0.000000e+00 : bf16
    %133 = vector.broadcast %cst_80 : bf16 to vector<16x196xbf16>
    %134 = vector.shape_cast %132 : vector<1x196xi1> to vector<1x196xi1>
    %135 = vector.broadcast %134 : vector<1x196xi1> to vector<16x196xi1>
    %136 = arith.select %135, %130, %133 : vector<16x196xi1>, vector<16x196xbf16>
    %c32_81 = arith.constant 32 : index
    %c0_82 = arith.constant 0 : index
    %137 = vector.load %arg18[%c32_81, %c0_82] : memref<144x196xbf16, #tpu.memory_space<vmem>>, vector<16x196xbf16>
    tpu.vector_store %arg18[%c32_81, %c0_82], %136 {strides = array<i32>} : memref<144x196xbf16, #tpu.memory_space<vmem>>, vector<16x196xbf16>,
    %c0_83 = arith.constant 0 : index
    %c72 = arith.constant 72 : index
    %138 = vector.load %arg17[%c0_83, %c72] : memref<16x346xbf16, #tpu.memory_space<vmem>>, vector<16x196xbf16>
    %c3_i32_84 = arith.constant 3 : i32
    %139 = vector.broadcast %c3_i32_84 : i32 to vector<1x196xi32>
    %140 = arith.cmpi sge, %53, %139 : vector<1x196xi32>
    %cst_85 = arith.constant 0.000000e+00 : bf16
    %141 = vector.broadcast %cst_85 : bf16 to vector<16x196xbf16>
    %142 = vector.shape_cast %140 : vector<1x196xi1> to vector<1x196xi1>
    %143 = vector.broadcast %142 : vector<1x196xi1> to vector<16x196xi1>
    %144 = arith.select %143, %138, %141 : vector<16x196xi1>, vector<16x196xbf16>
    %c48_86 = arith.constant 48 : index
    %c0_87 = arith.constant 0 : index
    %145 = vector.load %arg18[%c48_86, %c0_87] : memref<144x196xbf16, #tpu.memory_space<vmem>>, vector<16x196xbf16>
    tpu.vector_store %arg18[%c48_86, %c0_87], %144 {strides = array<i32>} : memref<144x196xbf16, #tpu.memory_space<vmem>>, vector<16x196xbf16>,
    %c0_88 = arith.constant 0 : index
    %c75_89 = arith.constant 75 : index
    %146 = vector.load %arg17[%c0_88, %c75_89] : memref<16x346xbf16, #tpu.memory_space<vmem>>, vector<16x196xbf16>
    %c64_90 = arith.constant 64 : index
    %c0_91 = arith.constant 0 : index
    %147 = vector.load %arg18[%c64_90, %c0_91] : memref<144x196xbf16, #tpu.memory_space<vmem>>, vector<16x196xbf16>
    tpu.vector_store %arg18[%c64_90, %c0_91], %146 {strides = array<i32>} : memref<144x196xbf16, #tpu.memory_space<vmem>>, vector<16x196xbf16>,
    %c0_92 = arith.constant 0 : index
    %c78 = arith.constant 78 : index
    %148 = vector.load %arg17[%c0_92, %c78] : memref<16x346xbf16, #tpu.memory_space<vmem>>, vector<16x196xbf16>
    %c11_i32_93 = arith.constant 11 : i32
    %149 = vector.broadcast %c11_i32_93 : i32 to vector<1x196xi32>
    %150 = arith.cmpi slt, %53, %149 : vector<1x196xi32>
    %cst_94 = arith.constant 0.000000e+00 : bf16
    %151 = vector.broadcast %cst_94 : bf16 to vector<16x196xbf16>
    %152 = vector.shape_cast %150 : vector<1x196xi1> to vector<1x196xi1>
    %153 = vector.broadcast %152 : vector<1x196xi1> to vector<16x196xi1>
    %154 = arith.select %153, %148, %151 : vector<16x196xi1>, vector<16x196xbf16>
    %c80_95 = arith.constant 80 : index
    %c0_96 = arith.constant 0 : index
    %155 = vector.load %arg18[%c80_95, %c0_96] : memref<144x196xbf16, #tpu.memory_space<vmem>>, vector<16x196xbf16>
    tpu.vector_store %arg18[%c80_95, %c0_96], %154 {strides = array<i32>} : memref<144x196xbf16, #tpu.memory_space<vmem>>, vector<16x196xbf16>,
    %c0_97 = arith.constant 0 : index
    %c114 = arith.constant 114 : index
    %156 = vector.load %arg17[%c0_97, %c114] : memref<16x346xbf16, #tpu.memory_space<vmem>>, vector<16x196xbf16>
    %c3_i32_98 = arith.constant 3 : i32
    %157 = vector.broadcast %c3_i32_98 : i32 to vector<1x196xi32>
    %158 = arith.cmpi sge, %53, %157 : vector<1x196xi32>
    %cst_99 = arith.constant 0.000000e+00 : bf16
    %159 = vector.broadcast %cst_99 : bf16 to vector<16x196xbf16>
    %160 = vector.shape_cast %158 : vector<1x196xi1> to vector<1x196xi1>
    %161 = vector.broadcast %160 : vector<1x196xi1> to vector<16x196xi1>
    %162 = arith.select %161, %156, %159 : vector<16x196xi1>, vector<16x196xbf16>
    %c96_100 = arith.constant 96 : index
    %c0_101 = arith.constant 0 : index
    %163 = vector.load %arg18[%c96_100, %c0_101] : memref<144x196xbf16, #tpu.memory_space<vmem>>, vector<16x196xbf16>
    tpu.vector_store %arg18[%c96_100, %c0_101], %162 {strides = array<i32>} : memref<144x196xbf16, #tpu.memory_space<vmem>>, vector<16x196xbf16>,
    %c0_102 = arith.constant 0 : index
    %c117 = arith.constant 117 : index
    %164 = vector.load %arg17[%c0_102, %c117] : memref<16x346xbf16, #tpu.memory_space<vmem>>, vector<16x196xbf16>
    %c112_103 = arith.constant 112 : index
    %c0_104 = arith.constant 0 : index
    %165 = vector.load %arg18[%c112_103, %c0_104] : memref<144x196xbf16, #tpu.memory_space<vmem>>, vector<16x196xbf16>
    tpu.vector_store %arg18[%c112_103, %c0_104], %164 {strides = array<i32>} : memref<144x196xbf16, #tpu.memory_space<vmem>>, vector<16x196xbf16>,
    %c0_105 = arith.constant 0 : index
    %c120 = arith.constant 120 : index
    %166 = vector.load %arg17[%c0_105, %c120] : memref<16x346xbf16, #tpu.memory_space<vmem>>, vector<16x196xbf16>
    %c11_i32_106 = arith.constant 11 : i32
    %167 = vector.broadcast %c11_i32_106 : i32 to vector<1x196xi32>
    %168 = arith.cmpi slt, %53, %167 : vector<1x196xi32>
    %cst_107 = arith.constant 0.000000e+00 : bf16
    %169 = vector.broadcast %cst_107 : bf16 to vector<16x196xbf16>
    %170 = vector.shape_cast %168 : vector<1x196xi1> to vector<1x196xi1>
    %171 = vector.broadcast %170 : vector<1x196xi1> to vector<16x196xi1>
    %172 = arith.select %171, %166, %169 : vector<16x196xi1>, vector<16x196xbf16>
    %c128_108 = arith.constant 128 : index
    %c0_109 = arith.constant 0 : index
    %173 = vector.load %arg18[%c128_108, %c0_109] : memref<144x196xbf16, #tpu.memory_space<vmem>>, vector<16x196xbf16>
    tpu.vector_store %arg18[%c128_108, %c0_109], %172 {strides = array<i32>} : memref<144x196xbf16, #tpu.memory_space<vmem>>, vector<16x196xbf16>,
    %c1 = arith.constant 1 : index
    %c0_110 = arith.constant 0 : index
    %c0_111 = arith.constant 0 : index
    %174 = vector.load %arg9[%c1, %c0_110, %c0_111] : memref<3x16x144xbf16, #tpu.memory_space<vmem>>, vector<1x16x144xbf16>
    %175 = vector.shape_cast %174 : vector<1x16x144xbf16> to vector<16x144xbf16>
    %c0_112 = arith.constant 0 : index
    %c0_113 = arith.constant 0 : index
    %176 = vector.load %arg18[%c0_112, %c0_113] : memref<144x196xbf16, #tpu.memory_space<vmem>>, vector<144x196xbf16>
    %cst_114 = arith.constant dense<0.000000e+00> : vector<16x196xf32>
    %177 = tpu.matmul %175, %176, %cst_114 {dimension_numbers = #tpu.dot_dimension_numbers<[1], [0], [0], [1], [0, 0, 1, 1], [], []>} : vector<16x144xbf16>, vector<144x196xbf16>, vector<16x196xf32> -> vector<16x196xf32>
    %c1_115 = arith.constant 1 : index
    %c0_116 = arith.constant 0 : index
    %c0_117 = arith.constant 0 : index
    %178 = vector.load %arg10[%c1_115, %c0_116, %c0_117] : memref<3x16x1xf32, #tpu.memory_space<vmem>>, vector<1x16x1xf32>
    %179 = vector.shape_cast %178 : vector<1x16x1xf32> to vector<16x1xf32>
    %180 = vector.broadcast %179 : vector<16x1xf32> to vector<16x196xf32>
    %181 = arith.addf %177, %180 : vector<16x196xf32>
    %cst_118 = arith.constant 0.000000e+00 : f32
    %182 = vector.broadcast %cst_118 : f32 to vector<16x196xf32>
    %183 = arith.maximumf %181, %182 : vector<16x196xf32>
    %184 = arith.addf %119, %183 : vector<16x196xf32>
    %c0_119 = arith.constant 0 : index
    %c0_120 = arith.constant 0 : index
    %185 = vector.load %arg17[%c0_119, %c0_120] : memref<16x346xbf16, #tpu.memory_space<vmem>>, vector<16x196xbf16>
    %c5_i32 = arith.constant 5 : i32
    %186 = vector.broadcast %c5_i32 : i32 to vector<1x196xi32>
    %187 = arith.cmpi sge, %53, %186 : vector<1x196xi32>
    %cst_121 = arith.constant 0.000000e+00 : bf16
    %188 = vector.broadcast %cst_121 : bf16 to vector<16x196xbf16>
    %189 = vector.shape_cast %187 : vector<1x196xi1> to vector<1x196xi1>
    %190 = vector.broadcast %189 : vector<1x196xi1> to vector<16x196xi1>
    %191 = arith.select %190, %185, %188 : vector<16x196xi1>, vector<16x196xbf16>
    %c0_122 = arith.constant 0 : index
    %c0_123 = arith.constant 0 : index
    %192 = vector.load %arg18[%c0_122, %c0_123] : memref<144x196xbf16, #tpu.memory_space<vmem>>, vector<16x196xbf16>
    tpu.vector_store %arg18[%c0_122, %c0_123], %191 {strides = array<i32>} : memref<144x196xbf16, #tpu.memory_space<vmem>>, vector<16x196xbf16>,
    %c0_124 = arith.constant 0 : index
    %c5 = arith.constant 5 : index
    %193 = vector.load %arg17[%c0_124, %c5] : memref<16x346xbf16, #tpu.memory_space<vmem>>, vector<16x196xbf16>
    %c16_125 = arith.constant 16 : index
    %c0_126 = arith.constant 0 : index
    %194 = vector.load %arg18[%c16_125, %c0_126] : memref<144x196xbf16, #tpu.memory_space<vmem>>, vector<16x196xbf16>
    tpu.vector_store %arg18[%c16_125, %c0_126], %193 {strides = array<i32>} : memref<144x196xbf16, #tpu.memory_space<vmem>>, vector<16x196xbf16>,
    %c0_127 = arith.constant 0 : index
    %c10 = arith.constant 10 : index
    %195 = vector.load %arg17[%c0_127, %c10] : memref<16x346xbf16, #tpu.memory_space<vmem>>, vector<16x196xbf16>
    %c9_i32 = arith.constant 9 : i32
    %196 = vector.broadcast %c9_i32 : i32 to vector<1x196xi32>
    %197 = arith.cmpi slt, %53, %196 : vector<1x196xi32>
    %cst_128 = arith.constant 0.000000e+00 : bf16
    %198 = vector.broadcast %cst_128 : bf16 to vector<16x196xbf16>
    %199 = vector.shape_cast %197 : vector<1x196xi1> to vector<1x196xi1>
    %200 = vector.broadcast %199 : vector<1x196xi1> to vector<16x196xi1>
    %201 = arith.select %200, %195, %198 : vector<16x196xi1>, vector<16x196xbf16>
    %c32_129 = arith.constant 32 : index
    %c0_130 = arith.constant 0 : index
    %202 = vector.load %arg18[%c32_129, %c0_130] : memref<144x196xbf16, #tpu.memory_space<vmem>>, vector<16x196xbf16>
    tpu.vector_store %arg18[%c32_129, %c0_130], %201 {strides = array<i32>} : memref<144x196xbf16, #tpu.memory_space<vmem>>, vector<16x196xbf16>,
    %c0_131 = arith.constant 0 : index
    %c70 = arith.constant 70 : index
    %203 = vector.load %arg17[%c0_131, %c70] : memref<16x346xbf16, #tpu.memory_space<vmem>>, vector<16x196xbf16>
    %c5_i32_132 = arith.constant 5 : i32
    %204 = vector.broadcast %c5_i32_132 : i32 to vector<1x196xi32>
    %205 = arith.cmpi sge, %53, %204 : vector<1x196xi32>
    %cst_133 = arith.constant 0.000000e+00 : bf16
    %206 = vector.broadcast %cst_133 : bf16 to vector<16x196xbf16>
    %207 = vector.shape_cast %205 : vector<1x196xi1> to vector<1x196xi1>
    %208 = vector.broadcast %207 : vector<1x196xi1> to vector<16x196xi1>
    %209 = arith.select %208, %203, %206 : vector<16x196xi1>, vector<16x196xbf16>
    %c48_134 = arith.constant 48 : index
    %c0_135 = arith.constant 0 : index
    %210 = vector.load %arg18[%c48_134, %c0_135] : memref<144x196xbf16, #tpu.memory_space<vmem>>, vector<16x196xbf16>
    tpu.vector_store %arg18[%c48_134, %c0_135], %209 {strides = array<i32>} : memref<144x196xbf16, #tpu.memory_space<vmem>>, vector<16x196xbf16>,
    %c0_136 = arith.constant 0 : index
    %c75_137 = arith.constant 75 : index
    %211 = vector.load %arg17[%c0_136, %c75_137] : memref<16x346xbf16, #tpu.memory_space<vmem>>, vector<16x196xbf16>
    %c64_138 = arith.constant 64 : index
    %c0_139 = arith.constant 0 : index
    %212 = vector.load %arg18[%c64_138, %c0_139] : memref<144x196xbf16, #tpu.memory_space<vmem>>, vector<16x196xbf16>
    tpu.vector_store %arg18[%c64_138, %c0_139], %211 {strides = array<i32>} : memref<144x196xbf16, #tpu.memory_space<vmem>>, vector<16x196xbf16>,
    %c0_140 = arith.constant 0 : index
    %c80_141 = arith.constant 80 : index
    %213 = vector.load %arg17[%c0_140, %c80_141] : memref<16x346xbf16, #tpu.memory_space<vmem>>, vector<16x196xbf16>
    %c9_i32_142 = arith.constant 9 : i32
    %214 = vector.broadcast %c9_i32_142 : i32 to vector<1x196xi32>
    %215 = arith.cmpi slt, %53, %214 : vector<1x196xi32>
    %cst_143 = arith.constant 0.000000e+00 : bf16
    %216 = vector.broadcast %cst_143 : bf16 to vector<16x196xbf16>
    %217 = vector.shape_cast %215 : vector<1x196xi1> to vector<1x196xi1>
    %218 = vector.broadcast %217 : vector<1x196xi1> to vector<16x196xi1>
    %219 = arith.select %218, %213, %216 : vector<16x196xi1>, vector<16x196xbf16>
    %c80_144 = arith.constant 80 : index
    %c0_145 = arith.constant 0 : index
    %220 = vector.load %arg18[%c80_144, %c0_145] : memref<144x196xbf16, #tpu.memory_space<vmem>>, vector<16x196xbf16>
    tpu.vector_store %arg18[%c80_144, %c0_145], %219 {strides = array<i32>} : memref<144x196xbf16, #tpu.memory_space<vmem>>, vector<16x196xbf16>,
    %c0_146 = arith.constant 0 : index
    %c140 = arith.constant 140 : index
    %221 = vector.load %arg17[%c0_146, %c140] : memref<16x346xbf16, #tpu.memory_space<vmem>>, vector<16x196xbf16>
    %c5_i32_147 = arith.constant 5 : i32
    %222 = vector.broadcast %c5_i32_147 : i32 to vector<1x196xi32>
    %223 = arith.cmpi sge, %53, %222 : vector<1x196xi32>
    %cst_148 = arith.constant 0.000000e+00 : bf16
    %224 = vector.broadcast %cst_148 : bf16 to vector<16x196xbf16>
    %225 = vector.shape_cast %223 : vector<1x196xi1> to vector<1x196xi1>
    %226 = vector.broadcast %225 : vector<1x196xi1> to vector<16x196xi1>
    %227 = arith.select %226, %221, %224 : vector<16x196xi1>, vector<16x196xbf16>
    %c96_149 = arith.constant 96 : index
    %c0_150 = arith.constant 0 : index
    %228 = vector.load %arg18[%c96_149, %c0_150] : memref<144x196xbf16, #tpu.memory_space<vmem>>, vector<16x196xbf16>
    tpu.vector_store %arg18[%c96_149, %c0_150], %227 {strides = array<i32>} : memref<144x196xbf16, #tpu.memory_space<vmem>>, vector<16x196xbf16>,
    %c0_151 = arith.constant 0 : index
    %c145 = arith.constant 145 : index
    %229 = vector.load %arg17[%c0_151, %c145] : memref<16x346xbf16, #tpu.memory_space<vmem>>, vector<16x196xbf16>
    %c112_152 = arith.constant 112 : index
    %c0_153 = arith.constant 0 : index
    %230 = vector.load %arg18[%c112_152, %c0_153] : memref<144x196xbf16, #tpu.memory_space<vmem>>, vector<16x196xbf16>
    tpu.vector_store %arg18[%c112_152, %c0_153], %229 {strides = array<i32>} : memref<144x196xbf16, #tpu.memory_space<vmem>>, vector<16x196xbf16>,
    %c0_154 = arith.constant 0 : index
    %c150 = arith.constant 150 : index
    %231 = vector.load %arg17[%c0_154, %c150] : memref<16x346xbf16, #tpu.memory_space<vmem>>, vector<16x196xbf16>
    %c9_i32_155 = arith.constant 9 : i32
    %232 = vector.broadcast %c9_i32_155 : i32 to vector<1x196xi32>
    %233 = arith.cmpi slt, %53, %232 : vector<1x196xi32>
    %cst_156 = arith.constant 0.000000e+00 : bf16
    %234 = vector.broadcast %cst_156 : bf16 to vector<16x196xbf16>
    %235 = vector.shape_cast %233 : vector<1x196xi1> to vector<1x196xi1>
    %236 = vector.broadcast %235 : vector<1x196xi1> to vector<16x196xi1>
    %237 = arith.select %236, %231, %234 : vector<16x196xi1>, vector<16x196xbf16>
    %c128_157 = arith.constant 128 : index
    %c0_158 = arith.constant 0 : index
    %238 = vector.load %arg18[%c128_157, %c0_158] : memref<144x196xbf16, #tpu.memory_space<vmem>>, vector<16x196xbf16>
    tpu.vector_store %arg18[%c128_157, %c0_158], %237 {strides = array<i32>} : memref<144x196xbf16, #tpu.memory_space<vmem>>, vector<16x196xbf16>,
    %c2 = arith.constant 2 : index
    %c0_159 = arith.constant 0 : index
    %c0_160 = arith.constant 0 : index
    %239 = vector.load %arg9[%c2, %c0_159, %c0_160] : memref<3x16x144xbf16, #tpu.memory_space<vmem>>, vector<1x16x144xbf16>
    %240 = vector.shape_cast %239 : vector<1x16x144xbf16> to vector<16x144xbf16>
    %c0_161 = arith.constant 0 : index
    %c0_162 = arith.constant 0 : index
    %241 = vector.load %arg18[%c0_161, %c0_162] : memref<144x196xbf16, #tpu.memory_space<vmem>>, vector<144x196xbf16>
    %cst_163 = arith.constant dense<0.000000e+00> : vector<16x196xf32>
    %242 = tpu.matmul %240, %241, %cst_163 {dimension_numbers = #tpu.dot_dimension_numbers<[1], [0], [0], [1], [0, 0, 1, 1], [], []>} : vector<16x144xbf16>, vector<144x196xbf16>, vector<16x196xf32> -> vector<16x196xf32>
    %c2_164 = arith.constant 2 : index
    %c0_165 = arith.constant 0 : index
    %c0_166 = arith.constant 0 : index
    %243 = vector.load %arg10[%c2_164, %c0_165, %c0_166] : memref<3x16x1xf32, #tpu.memory_space<vmem>>, vector<1x16x1xf32>
    %244 = vector.shape_cast %243 : vector<1x16x1xf32> to vector<16x1xf32>
    %245 = vector.broadcast %244 : vector<16x1xf32> to vector<16x196xf32>
    %246 = arith.addf %242, %245 : vector<16x196xf32>
    %cst_167 = arith.constant 0.000000e+00 : f32
    %247 = vector.broadcast %cst_167 : f32 to vector<16x196xf32>
    %248 = arith.maximumf %246, %247 : vector<16x196xf32>
    %249 = arith.addf %184, %248 : vector<16x196xf32>
    %c0_168 = arith.constant 0 : index
    %c0_169 = arith.constant 0 : index
    %250 = vector.load %arg11[%c0_168, %c0_169] : memref<16x16xbf16, #tpu.memory_space<vmem>>, vector<16x16xbf16>
    %251 = arith.truncf %249 : vector<16x196xf32> to vector<16x196xbf16>
    %cst_170 = arith.constant dense<0.000000e+00> : vector<16x196xf32>
    %252 = tpu.matmul %250, %251, %cst_170 {dimension_numbers = #tpu.dot_dimension_numbers<[1], [0], [0], [1], [0, 0, 1, 1], [], []>} : vector<16x16xbf16>, vector<16x196xbf16>, vector<16x196xf32> -> vector<16x196xf32>
    %c0_171 = arith.constant 0 : index
    %c0_172 = arith.constant 0 : index
    %253 = vector.load %arg12[%c0_171, %c0_172] : memref<16x1xf32, #tpu.memory_space<vmem>>, vector<16x1xf32>
    %254 = vector.broadcast %253 : vector<16x1xf32> to vector<16x196xf32>
    %255 = arith.addf %252, %254 : vector<16x196xf32>
    %cst_173 = arith.constant 0.000000e+00 : f32
    %256 = vector.broadcast %cst_173 : f32 to vector<16x196xf32>
    %257 = arith.maximumf %255, %256 : vector<16x196xf32>
    %c0_174 = arith.constant 0 : index
    %c0_175 = arith.constant 0 : index
    %258 = vector.load %arg13[%c0_174, %c0_175] : memref<15x16xbf16, #tpu.memory_space<vmem>>, vector<15x16xbf16>
    %259 = arith.truncf %257 : vector<16x196xf32> to vector<16x196xbf16>
    %cst_176 = arith.constant dense<0.000000e+00> : vector<15x196xf32>
    %260 = tpu.matmul %258, %259, %cst_176 {dimension_numbers = #tpu.dot_dimension_numbers<[1], [0], [0], [1], [0, 0, 1, 1], [], []>} : vector<15x16xbf16>, vector<16x196xbf16>, vector<15x196xf32> -> vector<15x196xf32>
    %c0_177 = arith.constant 0 : index
    %c0_178 = arith.constant 0 : index
    %261 = vector.load %arg14[%c0_177, %c0_178] : memref<15x1xf32, #tpu.memory_space<vmem>>, vector<15x1xf32>
    %262 = vector.broadcast %261 : vector<15x1xf32> to vector<15x196xf32>
    %263 = arith.addf %260, %262 : vector<15x196xf32>
    %cst_179 = arith.constant 0.000000e+00 : f32
    %264 = vector.broadcast %cst_179 : f32 to vector<15x196xf32>
    %265 = arith.maximumf %263, %264 : vector<15x196xf32>
    %c0_180 = arith.constant 0 : index
    %c0_181 = arith.constant 0 : index
    %266 = vector.load %arg15[%c0_180, %c0_181] : memref<196x784xbf16, #tpu.memory_space<vmem>>, vector<196x784xbf16>
    %267 = arith.truncf %265 : vector<15x196xf32> to vector<15x196xbf16>
    %cst_182 = arith.constant dense<0.000000e+00> : vector<15x784xf32>
    %268 = tpu.matmul %267, %266, %cst_182 {dimension_numbers = #tpu.dot_dimension_numbers<[1], [0], [0], [1], [0, 0, 1, 1], [], []>} : vector<15x196xbf16>, vector<196x784xbf16>, vector<15x784xf32> -> vector<15x784xf32>
    %c0_183 = arith.constant 0 : index
    %c0_184 = arith.constant 0 : index
    %c0_185 = arith.constant 0 : index
    %269 = vector.load %arg16[%c0_183, %c0_184, %c0_185] : memref<1x16x784xf32, #tpu.memory_space<vmem>>, vector<1x15x784xf32>
    %270 = vector.shape_cast %269 : vector<1x15x784xf32> to vector<15x784xf32>
    %271 = vector.shape_cast %268 : vector<15x784xf32> to vector<1x15x784xf32>
    tpu.vector_store %arg16[%c0_183, %c0_184, %c0_185], %271 {strides = array<i32>} : memref<1x16x784xf32, #tpu.memory_space<vmem>>, vector<1x15x784xf32>,
    %272 = arith.truncf %12 : vector<1x196xf32> to vector<1x196xbf16>
    %cst_186 = arith.constant dense<0.000000e+00> : vector<1x784xf32>
    %273 = tpu.matmul %272, %266, %cst_186 {dimension_numbers = #tpu.dot_dimension_numbers<[1], [0], [0], [1], [0, 0, 1, 1], [], []>} : vector<1x196xbf16>, vector<196x784xbf16>, vector<1x784xf32> -> vector<1x784xf32>
    %c0_187 = arith.constant 0 : index
    %c15 = arith.constant 15 : index
    %c0_188 = arith.constant 0 : index
    %274 = vector.load %arg16[%c0_187, %c15, %c0_188] : memref<1x16x784xf32, #tpu.memory_space<vmem>>, vector<1x1x784xf32>
    %275 = vector.shape_cast %274 : vector<1x1x784xf32> to vector<1x784xf32>
    %276 = vector.shape_cast %273 : vector<1x784xf32> to vector<1x1x784xf32>
    tpu.vector_store %arg16[%c0_187, %c15, %c0_188], %276 {strides = array<i32>} : memref<1x16x784xf32, #tpu.memory_space<vmem>>, vector<1x1x784xf32>,
    return
  }
  func.func @transform_0(%arg0: i32, %arg1: memref<4xi32, #tpu.memory_space<smem>>) -> (i32, i32, i32) {
    %c0_i32 = arith.constant 0 : i32
    %c0_i32_0 = arith.constant 0 : i32
    %c0_i32_1 = arith.constant 0 : i32
    return %arg0, %c0_i32, %c0_i32_0 : i32, i32, i32
  }
  func.func @transform_1(%arg0: i32, %arg1: memref<4xi32, #tpu.memory_space<smem>>) -> (i32, i32, i32) {
    %c0_i32 = arith.constant 0 : i32
    %c0_i32_0 = arith.constant 0 : i32
    %c0_i32_1 = arith.constant 0 : i32
    return %arg0, %c0_i32, %c0_i32_0 : i32, i32, i32
  }
  func.func @transform_2(%arg0: i32, %arg1: memref<4xi32, #tpu.memory_space<smem>>) -> (i32, i32, i32) {
    %0 = arith.index_cast %arg0 : i32 to index
    %1 = memref.load %arg1[%0] : memref<4xi32, #tpu.memory_space<smem>>
    %c0_i32 = arith.constant 0 : i32
    %c0_i32_0 = arith.constant 0 : i32
    %c0_i32_1 = arith.constant 0 : i32
    return %1, %c0_i32, %c0_i32_0 : i32, i32, i32
  }
  func.func @transform_3(%arg0: i32, %arg1: memref<4xi32, #tpu.memory_space<smem>>) -> (i32, i32, i32) {
    %c0_i32 = arith.constant 0 : i32
    %c0_i32_0 = arith.constant 0 : i32
    %c0_i32_1 = arith.constant 0 : i32
    return %arg0, %c0_i32, %c0_i32_0 : i32, i32, i32
  }
  func.func @transform_4(%arg0: i32, %arg1: memref<4xi32, #tpu.memory_space<smem>>) -> (i32, i32) {
    %c0_i32 = arith.constant 0 : i32
    %c0_i32_0 = arith.constant 0 : i32
    %c0_i32_1 = arith.constant 0 : i32
    return %c0_i32, %c0_i32_0 : i32, i32
  }
  func.func @transform_5(%arg0: i32, %arg1: memref<4xi32, #tpu.memory_space<smem>>) -> (i32, i32) {
    %c0_i32 = arith.constant 0 : i32
    %c0_i32_0 = arith.constant 0 : i32
    %c0_i32_1 = arith.constant 0 : i32
    return %c0_i32, %c0_i32_0 : i32, i32
  }
  func.func @transform_6(%arg0: i32, %arg1: memref<4xi32, #tpu.memory_space<smem>>) -> (i32, i32) {
    %c0_i32 = arith.constant 0 : i32
    %c0_i32_0 = arith.constant 0 : i32
    %c0_i32_1 = arith.constant 0 : i32
    return %c0_i32, %c0_i32_0 : i32, i32
  }
  func.func @transform_7(%arg0: i32, %arg1: memref<4xi32, #tpu.memory_space<smem>>) -> (i32, i32, i32) {
    %c0_i32 = arith.constant 0 : i32
    %c0_i32_0 = arith.constant 0 : i32
    %c0_i32_1 = arith.constant 0 : i32
    %c0_i32_2 = arith.constant 0 : i32
    return %c0_i32, %c0_i32_0, %c0_i32_1 : i32, i32, i32
  }
  func.func @transform_8(%arg0: i32, %arg1: memref<4xi32, #tpu.memory_space<smem>>) -> (i32, i32, i32) {
    %c0_i32 = arith.constant 0 : i32
    %c0_i32_0 = arith.constant 0 : i32
    %c0_i32_1 = arith.constant 0 : i32
    %c0_i32_2 = arith.constant 0 : i32
    return %c0_i32, %c0_i32_0, %c0_i32_1 : i32, i32, i32
  }
  func.func @transform_9(%arg0: i32, %arg1: memref<4xi32, #tpu.memory_space<smem>>) -> (i32, i32) {
    %c0_i32 = arith.constant 0 : i32
    %c0_i32_0 = arith.constant 0 : i32
    %c0_i32_1 = arith.constant 0 : i32
    return %c0_i32, %c0_i32_0 : i32, i32
  }
  func.func @transform_10(%arg0: i32, %arg1: memref<4xi32, #tpu.memory_space<smem>>) -> (i32, i32) {
    %c0_i32 = arith.constant 0 : i32
    %c0_i32_0 = arith.constant 0 : i32
    %c0_i32_1 = arith.constant 0 : i32
    return %c0_i32, %c0_i32_0 : i32, i32
  }
  func.func @transform_11(%arg0: i32, %arg1: memref<4xi32, #tpu.memory_space<smem>>) -> (i32, i32) {
    %c0_i32 = arith.constant 0 : i32
    %c0_i32_0 = arith.constant 0 : i32
    %c0_i32_1 = arith.constant 0 : i32
    return %c0_i32, %c0_i32_0 : i32, i32
  }
  func.func @transform_12(%arg0: i32, %arg1: memref<4xi32, #tpu.memory_space<smem>>) -> (i32, i32) {
    %c0_i32 = arith.constant 0 : i32
    %c0_i32_0 = arith.constant 0 : i32
    %c0_i32_1 = arith.constant 0 : i32
    return %c0_i32, %c0_i32_0 : i32, i32
  }
  func.func @transform_13(%arg0: i32, %arg1: memref<4xi32, #tpu.memory_space<smem>>) -> (i32, i32) {
    %c0_i32 = arith.constant 0 : i32
    %c0_i32_0 = arith.constant 0 : i32
    %c0_i32_1 = arith.constant 0 : i32
    return %c0_i32, %c0_i32_0 : i32, i32
  }
  func.func @transform_14(%arg0: i32, %arg1: memref<4xi32, #tpu.memory_space<smem>>) -> (i32, i32, i32) {
    %c0_i32 = arith.constant 0 : i32
    %c0_i32_0 = arith.constant 0 : i32
    %c0_i32_1 = arith.constant 0 : i32
    return %arg0, %c0_i32, %c0_i32_0 : i32, i32, i32
  }
}

</mosaic_0001>

<llo_original>
// kernel: simple_sfm_forward.2
$region0: #{simple_sfm_forward.2}
  #allocation0 [shape = 'u32[]', space=smem, size = 0x4, offset = 0x4, fixed_abs, tag = 'smem constant byte address 0x4 - core index']
  #allocation1 [shape = 'u32[144,128]{1,0:T(1,128)}', space=vmem, size = 0x12000, scoped, tag = 'internal scratch']
  %s0 = inlined_call_operand.vmem [shape: bf16[2,8,256], index: 0, kind: input, shape index: {}]
  %s1 = inlined_call_operand.vmem [shape: bf16[8,8], index: 1, kind: input, shape index: {}]
  %s2 = inlined_call_operand.vmem [shape: f32[8,1], index: 2, kind: input, shape index: {}]
  %s3 = inlined_call_operand.vmem [shape: bf16[16,8], index: 3, kind: input, shape index: {}]
  %s4 = inlined_call_operand.vmem [shape: bf16[2,16,256], index: 4, kind: output, shape index: {}]
  %s5 = sld [smem:[#allocation0]]
  $region49: #{simple_sfm_forward.2} parent=0
    _
  %s7 = ssub.s32 1, %s5
  %s8 = scalar_select 0, %s7, %s5
  loop: start=0, step=1, limit=4
  $region2: #{simple_sfm_forward.2} parent=0 // loop_pre_header
    _
  $region3: #{simple_sfm_forward.2} parent=0 // loop_header
    %s10 = sphi 0, %s14
    %p11 = scmp.ge.s32.totalorder %s10, 4
    %s20 = sphi 0, %s22
    %s23 = sphi 0, %s20
    %s24 = sphi 0, %s23
    %s40 = sphi 0, %s24
    %s44 = sphi 0, %s44
    %s46 = sphi 0, %s44
    %s47 = sphi 0, %s46
    %s61 = sphi 0, %s47
    %s65 = sphi 0, %s65
    %s67 = sphi 0, %s65
    %s68 = sphi 0, %s67
    %s82 = sphi 0, %s68
    %s86 = sphi 0, %s86
    %s88 = sphi 0, %s86
    %s89 = sphi 0, %s88
    %s103 = sphi 0, %s89
    %s109 = sphi 0, %s111
    %s112 = sphi 0, %s109
    %s113 = sphi 0, %s112
    %s129 = sphi 0, %s113
  $region4: #{simple_sfm_forward.2} parent=0 // loop_header_branch
    %13 = sbr.rel (%p11) target = $region8
  $region5: #{simple_sfm_forward.2} parent=0 // loop_body
    %s15 = ssub.s32 %s10, 1
    %s16 = ssub.s32 %s10, 2
    %s17 = sadd.s32 %s10, 1
    %s18 = ssub.s32 %s10, %s17
    %p19 = scmp.eq.s32.totalorder %s18, 0
    %s21 = sadd.s32 %s20, 1
    %s22 = scalar_select %p19, %s20, %s21
    %p25 = pneg %p19
    %p26 = scmp.eq.s32.totalorder %s10, 1
    %p27 = por %p25, %p26
    %p28 = scmp.ne.s32.totalorder %s20, %s23
    %p29 = scmp.eq.s32.totalorder %s10, 0
    %p30 = por %p28, %p29
    %p31 = scmp.ne.s32.totalorder %s20, %s23
    %p32 = scmp.eq.s32.totalorder %s15, 1
    %p33 = por %p31, %p32
    %p34 = scmp.ne.s32.totalorder %s23, %s24
    %p35 = scmp.eq.s32.totalorder %s15, 0
    %p36 = por %p34, %p35
    %p37 = scmp.ne.s32.totalorder %s23, %s24
    %p38 = scmp.eq.s32.totalorder %s16, 1
    %p39 = por %p37, %p38
    %p41 = scmp.ne.s32.totalorder %s24, %s40
    %p42 = scmp.eq.s32.totalorder %s16, 0
    %p43 = por %p41, %p42
    %s45 = sadd.s32 %s44, 1
    %p48 = scmp.eq.s32.totalorder %s10, 1
    %p49 = scmp.ne.s32.totalorder %s44, %s46
    %p50 = scmp.eq.s32.totalorder %s10, 0
    %p51 = por %p49, %p50
    %p52 = scmp.ne.s32.totalorder %s44, %s46
    %p53 = scmp.eq.s32.totalorder %s15, 1
    %p54 = por %p52, %p53
    %p55 = scmp.ne.s32.totalorder %s46, %s47
    %p56 = scmp.eq.s32.totalorder %s15, 0
    %p57 = por %p55, %p56
    %p58 = scmp.ne.s32.totalorder %s46, %s47
    %p59 = scmp.eq.s32.totalorder %s16, 1
    %p60 = por %p58, %p59
    %p62 = scmp.ne.s32.totalorder %s47, %s61
    %p63 = scmp.eq.s32.totalorder %s16, 0
    %p64 = por %p62, %p63
    %s66 = sadd.s32 %s65, 1
    %p69 = scmp.eq.s32.totalorder %s10, 1
    %p70 = scmp.ne.s32.totalorder %s65, %s67
    %p71 = scmp.eq.s32.totalorder %s10, 0
    %p72 = por %p70, %p71
    %p73 = scmp.ne.s32.totalorder %s65, %s67
    %p74 = scmp.eq.s32.totalorder %s15, 1
    %p75 = por %p73, %p74
    %p76 = scmp.ne.s32.totalorder %s67, %s68
    %p77 = scmp.eq.s32.totalorder %s15, 0
    %p78 = por %p76, %p77
    %p79 = scmp.ne.s32.totalorder %s67, %s68
    %p80 = scmp.eq.s32.totalorder %s16, 1
    %p81 = por %p79, %p80
    %p83 = scmp.ne.s32.totalorder %s68, %s82
    %p84 = scmp.eq.s32.totalorder %s16, 0
    %p85 = por %p83, %p84
    %s87 = sadd.s32 %s86, 1
    %p90 = scmp.eq.s32.totalorder %s10, 1
    %p91 = scmp.ne.s32.totalorder %s86, %s88
    %p92 = scmp.eq.s32.totalorder %s10, 0
    %p93 = por %p91, %p92
    %p94 = scmp.ne.s32.totalorder %s86, %s88
    %p95 = scmp.eq.s32.totalorder %s15, 1
    %p96 = por %p94, %p95
    %p97 = scmp.ne.s32.totalorder %s88, %s89
    %p98 = scmp.eq.s32.totalorder %s15, 0
    %p99 = por %p97, %p98
    %p100 = scmp.ne.s32.totalorder %s88, %s89
    %p101 = scmp.eq.s32.totalorder %s16, 1
    %p102 = por %p100, %p101
    %p104 = scmp.ne.s32.totalorder %s89, %s103
    %p105 = scmp.eq.s32.totalorder %s16, 0
    %p106 = por %p104, %p105
    %s107 = ssub.s32 %s10, %s17
    %p108 = scmp.eq.s32.totalorder %s107, 0
    %s110 = sadd.s32 %s109, 1
    %s111 = scalar_select %p108, %s109, %s110
    %p114 = pneg %p108
    %p115 = scmp.eq.s32.totalorder %s10, 1
    %p116 = por %p114, %p115
    %p117 = scmp.ne.s32.totalorder %s109, %s112
    %p118 = scmp.eq.s32.totalorder %s10, 0
    %p119 = por %p117, %p118
    %p120 = scmp.ne.s32.totalorder %s109, %s112
    %p121 = scmp.eq.s32.totalorder %s15, 1
    %p122 = por %p120, %p121
    %p123 = scmp.ne.s32.totalorder %s112, %s113
    %p124 = scmp.eq.s32.totalorder %s15, 0
    %p125 = por %p123, %p124
    %p126 = scmp.ne.s32.totalorder %s112, %s113
    %p127 = scmp.eq.s32.totalorder %s16, 1
    %p128 = por %p126, %p127
    %p130 = scmp.ne.s32.totalorder %s113, %s129
    %p131 = scmp.eq.s32.totalorder %s16, 0
    %p132 = por %p130, %p131
    %p133 = scmp.le.s32.totalorder 1, %s10
    %p134 = scmp.lt.s32.totalorder %s10, 3
    %p135 = pnand %p133, %p134
    %p136 = pneg %p135
    // Predicated region
    $region9: #{simple_sfm_forward.2} parent=5 // pred_check
      _
    $region10: #{simple_sfm_forward.2} parent=5 // pred_check_branch
      %138 = sbr.rel (%p135) target = $region12
    $region11: #{simple_sfm_forward.2} parent=5 // pred_region
      %s139 = ssub.s32 %s10, 1
      // Predicated region
      $region13: #{simple_sfm_forward.2} parent=11 // pred_check
        %p140 = pneg %p57
      $region14: #{simple_sfm_forward.2} parent=11 // pred_check_branch
        %142 = sbr.rel (%p140) target = $region16
      $region15: #{simple_sfm_forward.2} parent=11 // pred_region
        _
      $region16: #{simple_sfm_forward.2} parent=11 // pred_fallthru
        _
      // Predicated region
      $region17: #{simple_sfm_forward.2} parent=11 // pred_check
        %p143 = pneg %p78
      $region18: #{simple_sfm_forward.2} parent=11 // pred_check_branch
        %145 = sbr.rel (%p143) target = $region20
      $region19: #{simple_sfm_forward.2} parent=11 // pred_region
        _
      $region20: #{simple_sfm_forward.2} parent=11 // pred_fallthru
        _
      // Predicated region
      $region21: #{simple_sfm_forward.2} parent=11 // pred_check
        %p146 = pneg %p99
      $region22: #{simple_sfm_forward.2} parent=11 // pred_check_branch
        %148 = sbr.rel (%p146) target = $region24
      $region23: #{simple_sfm_forward.2} parent=11 // pred_region
        _
      $region24: #{simple_sfm_forward.2} parent=11 // pred_fallthru
        _
    $region12: #{simple_sfm_forward.2} parent=5 // pred_fallthru
      _
    %p149 = scmp.lt.s32.totalorder %s10, 2
    // Predicated region
    $region25: #{simple_sfm_forward.2} parent=5 // pred_check
      %p150 = pneg %p149
    $region26: #{simple_sfm_forward.2} parent=5 // pred_check_branch
      %152 = sbr.rel (%p150) target = $region28
    $region27: #{simple_sfm_forward.2} parent=5 // pred_region
      // Predicated region
      $region29: #{simple_sfm_forward.2} parent=27 // pred_check
        %p153 = pneg %p30
      $region30: #{simple_sfm_forward.2} parent=27 // pred_check_branch
        %155 = sbr.rel (%p153) target = $region32
      $region31: #{simple_sfm_forward.2} parent=27 // pred_region
        %p156 = scmp.lt.s32.totalorder %s10, 1
        %s157 = scalar_select %p156, %s10, 1
        %s158 = smul.addr %s157, 2
        %s159 = smul.addr %s158, 4
        %s160 = scalar_lea.vmem %s0, %s159
      $region32: #{simple_sfm_forward.2} parent=27 // pred_fallthru
        _
    $region28: #{simple_sfm_forward.2} parent=5 // pred_fallthru
      _
    %p161 = scmp.le.s32.totalorder 1, %s10
    %p162 = scmp.lt.s32.totalorder %s10, 3
    %p163 = pnand %p161, %p162
    %p164 = pneg %p163
    // Predicated region
    $region33: #{simple_sfm_forward.2} parent=5 // pred_check
      _
    $region34: #{simple_sfm_forward.2} parent=5 // pred_check_branch
      %166 = sbr.rel (%p163) target = $region36
    $region35: #{simple_sfm_forward.2} parent=5 // pred_region
      %s167 = ssub.s32 %s10, 1
      %p168 = scmp.lt.s32.totalorder %s15, 1
      %s169 = scalar_select %p168, %s15, 1
      %s170 = smul.addr %s169, 2
      %s171 = smul.addr %s170, 4
      %s172 = scalar_lea.vmem %s0, %s171
      %p173 = pneg %p36
      %p174 = pneg %p33
      %p175 = pneg %p57
      %p176 = pneg %p54
      %p177 = pneg %p78
      %p178 = pneg %p75
      %p179 = pneg %p99
      %p180 = pneg %p96
      %p181 = pneg %p125
      %p182 = pneg %p122
      %p183 = scmp.lt.s32.totalorder %s15, 1
      %s184 = scalar_select %p183, %s15, 1
      %s185 = smul.addr %s184, 4
      %s186 = smul.addr %s185, 4
      %s187 = scalar_lea.vmem %s4, %s186
      %p188 = scmp.lt.s32.totalorder %s15, 1
      %s189 = scalar_select %p188, %s15, 1
      %s190 = smul.addr %s189, 2
      %s191 = smul.addr %s190, 4
      %s192 = scalar_lea.vmem %s0, %s191
      %p193 = scmp.lt.s32.totalorder %s15, 1
      %s194 = scalar_select %p193, %s15, 1
      %s195 = smul.addr %s194, 4
      %s196 = smul.addr %s195, 4
      %s197 = scalar_lea.vmem %s4, %s196
      %v199 = vld [vmem:[%s1] sm:$0xf]
      %v200 = vld [vmem:[%s192] sm:$0xff]
      %v201 = vld [vmem:[%s2] sm:$0xff]
      %203 = vset.pattern.permute.xlu0 0
      %204 = vperm.xlu0 %203, %v201
      %v205 = vpop.permute.xlu0 %204
      %v208 = vunpack.c.l.b16 %v200
      %v209 = vunpack.c.h.b16 %v200
      %v210 = vpack.c.b16 %v208, %v208
      %v211 = vpack.c.b16 %v209, %v209
      %vm212 = vcmask 64512
      %v214 = vsel %vm212, %v199, 0
      %vm216 = vcmask 1043456
      %v218 = vsel %vm216, %v210, 0
      %v221 = vsel %vm216, %v211, 0
      %223 = vmatprep.subr.bf16.mxu0 0
      %224 = vmatpush1.bf16.msra.mxu0 0
      %225 = vmatprep.subr.bf16.mxu0 0
      %226 = vmatpush1.bf16.msra.mxu0 0
      %227 = vmatprep.subr.bf16.mxu0 0
      %228 = vmatpush1.bf16.msra.mxu0 0
      %229 = vmatprep.subr.bf16.mxu0 0
      %230 = vmatpush1.bf16.msra.mxu0 0
      %231 = vmatprep.subr.bf16.mxu0 0
      %232 = vmatpush1.bf16.msra.mxu0 0
      %233 = vmatprep.subr.bf16.mxu0 0
      %234 = vmatpush1.bf16.msra.mxu0 0
      %235 = vmatprep.subr.bf16.mxu0 0
      %236 = vmatpush1.bf16.msra.mxu0 0
      %237 = vmatprep.subr.bf16.mxu0 %v221
      %238 = vmatpush1.bf16.msra.mxu0 %v218
      %239 = vmatprep.subr.bf16.mxu0 0
      %240 = vmatpush2.bf16.msra.mxu0 0
      %241 = vmatprep.subr.bf16.mxu0 0
      %242 = vmatpush2.bf16.msra.mxu0 0
      %243 = vmatprep.subr.bf16.mxu0 0
      %244 = vmatpush2.bf16.msra.mxu0 0
      %245 = vmatprep.subr.bf16.mxu0 0
      %246 = vmatpush2.bf16.msra.mxu0 0
      %247 = vmatprep.subr.bf16.mxu0 0
      %248 = vmatpush2.bf16.msra.mxu0 0
      %249 = vmatprep.subr.bf16.mxu0 0
      %250 = vmatpush2.bf16.msra.mxu0 0
      %251 = vmatprep.subr.bf16.mxu0 0
      %252 = vmatpush2.bf16.msra.mxu0 0
      %253 = vmatprep.subr.bf16.mxu0 0
      %254 = vmatpush2.bf16.msra.mxu0 0
      %255 = vmatprep.mubr.bf16.mxu0 0
      %256 = vmatmul.mubr.bf16.gmra.mxu0 %v214
      %v257 = vpop.f32.mrf.mxu0
      %v258 = vadd.f32 %v205, %v257
      %v259 = vpop.f32.mrf.mxu0
      %v260 = vadd.f32 %v205, %v259
      %v261 = vpop.f32.mrf.mxu0
      %v262 = vpop.f32.mrf.mxu0
      %263 = vdwg.mxu0
      %v264 = vmax.f32 %v258, 0.0
      %v265 = vmax.f32 %v260, 0.0
      %v266 = vld [vmem:[%s3] sm:$0xf]
      %v267 = vld [vmem:[%s3 + $0x4] sm:$0xf]
      %v268 = vpack.c.bf16 %v264, %v264
      %v269 = vpack.c.bf16 %v265, %v265
      %v272 = vunpack.c.l.b16 %v266
      %v273 = vunpack.c.l.b16 %v267
      %v274 = vpack.c.b16 %v273, %v272
      %v276 = vsel %vm212, %v274, 0
      %v279 = vsel %vm216, %v268, 0
      %v282 = vsel %vm216, %v269, 0
      %284 = vmatprep.subr.bf16.mxu0 0
      %285 = vmatpush1.bf16.msra.mxu0 0
      %286 = vmatprep.subr.bf16.mxu0 0
      %287 = vmatpush1.bf16.msra.mxu0 0
      %288 = vmatprep.subr.bf16.mxu0 0
      %289 = vmatpush1.bf16.msra.mxu0 0
      %290 = vmatprep.subr.bf16.mxu0 0
      %291 = vmatpush1.bf16.msra.mxu0 0
      %292 = vmatprep.subr.bf16.mxu0 0
      %293 = vmatpush1.bf16.msra.mxu0 0
      %294 = vmatprep.subr.bf16.mxu0 0
      %295 = vmatpush1.bf16.msra.mxu0 0
      %296 = vmatprep.subr.bf16.mxu0 0
      %297 = vmatpush1.bf16.msra.mxu0 0
      %298 = vmatprep.subr.bf16.mxu0 %v282
      %299 = vmatpush1.bf16.msra.mxu0 %v279
      %300 = vmatprep.subr.bf16.mxu0 0
      %301 = vmatpush2.bf16.msra.mxu0 0
      %302 = vmatprep.subr.bf16.mxu0 0
      %303 = vmatpush2.bf16.msra.mxu0 0
      %304 = vmatprep.subr.bf16.mxu0 0
      %305 = vmatpush2.bf16.msra.mxu0 0
      %306 = vmatprep.subr.bf16.mxu0 0
      %307 = vmatpush2.bf16.msra.mxu0 0
      %308 = vmatprep.subr.bf16.mxu0 0
      %309 = vmatpush2.bf16.msra.mxu0 0
      %310 = vmatprep.subr.bf16.mxu0 0
      %311 = vmatpush2.bf16.msra.mxu0 0
      %312 = vmatprep.subr.bf16.mxu0 0
      %313 = vmatpush2.bf16.msra.mxu0 0
      %314 = vmatprep.subr.bf16.mxu0 0
      %315 = vmatpush2.bf16.msra.mxu0 0
      %316 = vmatprep.mubr.bf16.mxu0 0
      %317 = vmatmul.mubr.bf16.gmra.mxu0 %v276
      %v318 = vpop.f32.mrf.mxu0
      %v319 = vadd.f32 0.0, %v318
      %v320 = vpop.f32.mrf.mxu0
      %v321 = vadd.f32 0.0, %v320
      %v322 = vpop.f32.mrf.mxu0
      %v323 = vadd.f32 0.0, %v322
      %v324 = vpop.f32.mrf.mxu0
      %v325 = vadd.f32 0.0, %v324
      %326 = vdwg.mxu0
      %v327 = vpack.c.bf16 %v323, %v319
      %v328 = vpack.c.bf16 %v325, %v321
      %v331 = vunpack.c.l.b16 %v327
      %v332 = vunpack.c.l.b16 %v328
      %v333 = vunpack.c.h.b16 %v327
      %v334 = vunpack.c.h.b16 %v328
      %v335 = vpack.c.b16 %v332, %v331
      %v336 = vpack.c.b16 %v334, %v333
      %339 = vst [vmem:[%s197] sm:$0xff] %v335
      %340 = vst [vmem:[%s197 + $0x8] sm:$0xff] %v336
      %p341 = scmp.lt.s32.totalorder %s15, 1
      %s342 = scalar_select %p341, %s15, 1
      %s343 = smul.addr %s342, 4
      %s344 = smul.addr %s343, 4
      %s345 = scalar_lea.vmem %s4, %s344
      // Predicated region
      $region37: #{simple_sfm_forward.2} parent=35 // pred_check
        %p346 = pneg %p122
      $region38: #{simple_sfm_forward.2} parent=35 // pred_check_branch
        %348 = sbr.rel (%p346) target = $region40
      $region39: #{simple_sfm_forward.2} parent=35 // pred_region
        _
      $region40: #{simple_sfm_forward.2} parent=35 // pred_fallthru
        _
    $region36: #{simple_sfm_forward.2} parent=5 // pred_fallthru
      _
    %p349 = scmp.le.s32.totalorder 2, %s10
    // Predicated region
    $region41: #{simple_sfm_forward.2} parent=5 // pred_check
      %p350 = pneg %p349
    $region42: #{simple_sfm_forward.2} parent=5 // pred_check_branch
      %352 = sbr.rel (%p350) target = $region44
    $region43: #{simple_sfm_forward.2} parent=5 // pred_region
      %s353 = ssub.s32 %s10, 2
      // Predicated region
      $region45: #{simple_sfm_forward.2} parent=43 // pred_check
        %p354 = pneg %p128
      $region46: #{simple_sfm_forward.2} parent=43 // pred_check_branch
        %356 = sbr.rel (%p354) target = $region48
      $region47: #{simple_sfm_forward.2} parent=43 // pred_region
        %p357 = scmp.lt.s32.totalorder %s16, 1
        %s358 = scalar_select %p357, %s16, 1
        %s359 = smul.addr %s358, 4
        %s360 = smul.addr %s359, 4
        %s361 = scalar_lea.vmem %s4, %s360
      $region48: #{simple_sfm_forward.2} parent=43 // pred_fallthru
        _
    $region44: #{simple_sfm_forward.2} parent=5 // pred_fallthru
      _
  $region6: #{simple_sfm_forward.2} parent=0 // loop_footer
    %s14 = sadd.s32 1, %s10
  $region7: #{simple_sfm_forward.2} parent=0 // loop_footer_branch
    %9 = sbr.rel target = $region3
  $region8: #{simple_sfm_forward.2} parent=0 // loop_exit
    _

// kernel: simple_sfm_forward.3
$region0: #{simple_sfm_forward.3}
  #allocation0 [shape = 'u32[]', space=smem, size = 0x4, offset = 0x4, fixed_abs, tag = 'smem constant byte address 0x4 - core index']
  #allocation1 [shape = 'u32[144,128]{1,0:T(1,128)}', space=vmem, size = 0x12000, scoped, tag = 'internal scratch']
  #allocation2 [shape = 'bf16[16,346]{1,0:T(8,128)(2,1)}', space=vmem, size = 0x3000, scoped, tag = 'scratch operand']
  #allocation3 [shape = 'bf16[144,196]{1,0:T(8,128)(2,1)}', space=vmem, size = 0x12000, scoped, tag = 'scratch operand']
  #allocation4 [shape = 's32[1]{0}', space=sflag, size = 0x4, scoped, tag = 'scoped memory for simple_sfm_forward.3']
  #allocation5 [shape = 'u8[512]{0}', space=smem, size = 0x200, scoped, tag = 'prefetched SMEM operand 0']
  %s0 = inlined_call_operand.vmem [shape: s32[4], index: 0, kind: input, shape index: {}]
  %s1 = inlined_call_operand.vmem [shape: bf16[4,16,196], index: 1, kind: input, shape index: {}]
  %s2 = inlined_call_operand.vmem [shape: f32[4,1,196], index: 2, kind: input, shape index: {}]
  %s3 = inlined_call_operand.vmem [shape: bf16[2,16,256], index: 3, kind: input, shape index: {}]
  %s4 = inlined_call_operand.vmem [shape: bf16[4,256,196], index: 4, kind: input, shape index: {}]
  %s5 = inlined_call_operand.vmem [shape: bf16[16,16], index: 5, kind: input, shape index: {}]
  %s6 = inlined_call_operand.vmem [shape: f32[16,1], index: 6, kind: input, shape index: {}]
  %s7 = inlined_call_operand.vmem [shape: f32[16,1], index: 7, kind: input, shape index: {}]
  %s8 = inlined_call_operand.vmem [shape: bf16[3,16,144], index: 8, kind: input, shape index: {}]
  %s9 = inlined_call_operand.vmem [shape: f32[3,16,1], index: 9, kind: input, shape index: {}]
  %s10 = inlined_call_operand.vmem [shape: bf16[16,16], index: 10, kind: input, shape index: {}]
  %s11 = inlined_call_operand.vmem [shape: f32[16,1], index: 11, kind: input, shape index: {}]
  %s12 = inlined_call_operand.vmem [shape: bf16[15,16], index: 12, kind: input, shape index: {}]
  %s13 = inlined_call_operand.vmem [shape: f32[15,1], index: 13, kind: input, shape index: {}]
  %s14 = inlined_call_operand.vmem [shape: bf16[196,784], index: 14, kind: input, shape index: {}]
  %s15 = inlined_call_operand.vmem [shape: f32[4,16,784], index: 15, kind: output, shape index: {}]
  %s16 = sld [smem:[#allocation0]]
  $region89: #{simple_sfm_forward.3} parent=0
    _
  %s18 = ssub.s32 1, %s16
  %s19 = scalar_select 0, %s18, %s16
  %s20 = sshll.u32 %s0, 4
  %s21 = int_to_ptr.vmem [resolvable:$true] %s20
  %23 = dma.vmem_to_smem %s21, 16, [#allocation5], [#allocation4]
  %24 = dma.done [#allocation4], 16
  %25 = sfence
  loop: start=0, step=1, limit=6
  $region2: #{simple_sfm_forward.3} parent=0 // loop_pre_header
    _
  $region3: #{simple_sfm_forward.3} parent=0 // loop_header
    %s27 = sphi 0, %s31
    %p28 = scmp.ge.s32.totalorder %s27, 6
    %s37 = sphi 0, %s39
    %s40 = sphi 0, %s37
    %s41 = sphi 0, %s40
    %s57 = sphi 0, %s41
    %s63 = sphi 0, %s65
    %s66 = sphi 0, %s63
    %s67 = sphi 0, %s66
    %s83 = sphi 0, %s67
    %s91 = sphi 0, %s93
    %s94 = sphi 0, %s91
    %s95 = sphi 0, %s94
    %s111 = sphi 0, %s95
    %s117 = sphi 0, %s119
    %s120 = sphi 0, %s117
    %s121 = sphi 0, %s120
    %s137 = sphi 0, %s121
    %s141 = sphi 0, %s141
    %s143 = sphi 0, %s141
    %s144 = sphi 0, %s143
    %s158 = sphi 0, %s144
    %s162 = sphi 0, %s162
    %s164 = sphi 0, %s162
    %s165 = sphi 0, %s164
    %s179 = sphi 0, %s165
    %s183 = sphi 0, %s183
    %s185 = sphi 0, %s183
    %s186 = sphi 0, %s185
    %s200 = sphi 0, %s186
    %s204 = sphi 0, %s204
    %s206 = sphi 0, %s204
    %s207 = sphi 0, %s206
    %s221 = sphi 0, %s207
    %s225 = sphi 0, %s225
    %s227 = sphi 0, %s225
    %s228 = sphi 0, %s227
    %s242 = sphi 0, %s228
    %s246 = sphi 0, %s246
    %s248 = sphi 0, %s246
    %s249 = sphi 0, %s248
    %s263 = sphi 0, %s249
    %s267 = sphi 0, %s267
    %s269 = sphi 0, %s267
    %s270 = sphi 0, %s269
    %s284 = sphi 0, %s270
    %s288 = sphi 0, %s288
    %s290 = sphi 0, %s288
    %s291 = sphi 0, %s290
    %s305 = sphi 0, %s291
    %s309 = sphi 0, %s309
    %s311 = sphi 0, %s309
    %s312 = sphi 0, %s311
    %s326 = sphi 0, %s312
    %s330 = sphi 0, %s330
    %s332 = sphi 0, %s330
    %s333 = sphi 0, %s332
    %s347 = sphi 0, %s333
    %s353 = sphi 0, %s355
    %s356 = sphi 0, %s353
    %s357 = sphi 0, %s356
    %s373 = sphi 0, %s357
  $region4: #{simple_sfm_forward.3} parent=0 // loop_header_branch
    %30 = sbr.rel (%p28) target = $region8
  $region5: #{simple_sfm_forward.3} parent=0 // loop_body
    %s32 = ssub.s32 %s27, 1
    %s33 = ssub.s32 %s27, 2
    %s34 = sadd.s32 %s27, 1
    %s35 = ssub.s32 %s27, %s34
    %p36 = scmp.eq.s32.totalorder %s35, 0
    %s38 = sadd.s32 %s37, 1
    %s39 = scalar_select %p36, %s37, %s38
    %p42 = pneg %p36
    %p43 = scmp.eq.s32.totalorder %s27, 3
    %p44 = por %p42, %p43
    %p45 = scmp.ne.s32.totalorder %s37, %s40
    %p46 = scmp.eq.s32.totalorder %s27, 0
    %p47 = por %p45, %p46
    %p48 = scmp.ne.s32.totalorder %s37, %s40
    %p49 = scmp.eq.s32.totalorder %s32, 3
    %p50 = por %p48, %p49
    %p51 = scmp.ne.s32.totalorder %s40, %s41
    %p52 = scmp.eq.s32.totalorder %s32, 0
    %p53 = por %p51, %p52
    %p54 = scmp.ne.s32.totalorder %s40, %s41
    %p55 = scmp.eq.s32.totalorder %s33, 3
    %p56 = por %p54, %p55
    %p58 = scmp.ne.s32.totalorder %s41, %s57
    %p59 = scmp.eq.s32.totalorder %s33, 0
    %p60 = por %p58, %p59
    %s61 = ssub.s32 %s27, %s34
    %p62 = scmp.eq.s32.totalorder %s61, 0
    %s64 = sadd.s32 %s63, 1
    %s65 = scalar_select %p62, %s63, %s64
    %p68 = pneg %p62
    %p69 = scmp.eq.s32.totalorder %s27, 3
    %p70 = por %p68, %p69
    %p71 = scmp.ne.s32.totalorder %s63, %s66
    %p72 = scmp.eq.s32.totalorder %s27, 0
    %p73 = por %p71, %p72
    %p74 = scmp.ne.s32.totalorder %s63, %s66
    %p75 = scmp.eq.s32.totalorder %s32, 3
    %p76 = por %p74, %p75
    %p77 = scmp.ne.s32.totalorder %s66, %s67
    %p78 = scmp.eq.s32.totalorder %s32, 0
    %p79 = por %p77, %p78
    %p80 = scmp.ne.s32.totalorder %s66, %s67
    %p81 = scmp.eq.s32.totalorder %s33, 3
    %p82 = por %p80, %p81
    %p84 = scmp.ne.s32.totalorder %s67, %s83
    %p85 = scmp.eq.s32.totalorder %s33, 0
    %p86 = por %p84, %p85
    %s87 = sld [smem:[#allocation5 + %s27]]
    %s88 = sld [smem:[#allocation5 + %s34]]
    %s89 = ssub.s32 %s87, %s88
    %p90 = scmp.eq.s32.totalorder %s89, 0
    %s92 = sadd.s32 %s91, 1
    %s93 = scalar_select %p90, %s91, %s92
    %p96 = pneg %p90
    %p97 = scmp.eq.s32.totalorder %s27, 3
    %p98 = por %p96, %p97
    %p99 = scmp.ne.s32.totalorder %s91, %s94
    %p100 = scmp.eq.s32.totalorder %s27, 0
    %p101 = por %p99, %p100
    %p102 = scmp.ne.s32.totalorder %s91, %s94
    %p103 = scmp.eq.s32.totalorder %s32, 3
    %p104 = por %p102, %p103
    %p105 = scmp.ne.s32.totalorder %s94, %s95
    %p106 = scmp.eq.s32.totalorder %s32, 0
    %p107 = por %p105, %p106
    %p108 = scmp.ne.s32.totalorder %s94, %s95
    %p109 = scmp.eq.s32.totalorder %s33, 3
    %p110 = por %p108, %p109
    %p112 = scmp.ne.s32.totalorder %s95, %s111
    %p113 = scmp.eq.s32.totalorder %s33, 0
    %p114 = por %p112, %p113
    %s115 = ssub.s32 %s27, %s34
    %p116 = scmp.eq.s32.totalorder %s115, 0
    %s118 = sadd.s32 %s117, 1
    %s119 = scalar_select %p116, %s117, %s118
    %p122 = pneg %p116
    %p123 = scmp.eq.s32.totalorder %s27, 3
    %p124 = por %p122, %p123
    %p125 = scmp.ne.s32.totalorder %s117, %s120
    %p126 = scmp.eq.s32.totalorder %s27, 0
    %p127 = por %p125, %p126
    %p128 = scmp.ne.s32.totalorder %s117, %s120
    %p129 = scmp.eq.s32.totalorder %s32, 3
    %p130 = por %p128, %p129
    %p131 = scmp.ne.s32.totalorder %s120, %s121
    %p132 = scmp.eq.s32.totalorder %s32, 0
    %p133 = por %p131, %p132
    %p134 = scmp.ne.s32.totalorder %s120, %s121
    %p135 = scmp.eq.s32.totalorder %s33, 3
    %p136 = por %p134, %p135
    %p138 = scmp.ne.s32.totalorder %s121, %s137
    %p139 = scmp.eq.s32.totalorder %s33, 0
    %p140 = por %p138, %p139
    %s142 = sadd.s32 %s141, 1
    %p145 = scmp.eq.s32.totalorder %s27, 3
    %p146 = scmp.ne.s32.totalorder %s141, %s143
    %p147 = scmp.eq.s32.totalorder %s27, 0
    %p148 = por %p146, %p147
    %p149 = scmp.ne.s32.totalorder %s141, %s143
    %p150 = scmp.eq.s32.totalorder %s32, 3
    %p151 = por %p149, %p150
    %p152 = scmp.ne.s32.totalorder %s143, %s144
    %p153 = scmp.eq.s32.totalorder %s32, 0
    %p154 = por %p152, %p153
    %p155 = scmp.ne.s32.totalorder %s143, %s144
    %p156 = scmp.eq.s32.totalorder %s33, 3
    %p157 = por %p155, %p156
    %p159 = scmp.ne.s32.totalorder %s144, %s158
    %p160 = scmp.eq.s32.totalorder %s33, 0
    %p161 = por %p159, %p160
    %s163 = sadd.s32 %s162, 1
    %p166 = scmp.eq.s32.totalorder %s27, 3
    %p167 = scmp.ne.s32.totalorder %s162, %s164
    %p168 = scmp.eq.s32.totalorder %s27, 0
    %p169 = por %p167, %p168
    %p170 = scmp.ne.s32.totalorder %s162, %s164
    %p171 = scmp.eq.s32.totalorder %s32, 3
    %p172 = por %p170, %p171
    %p173 = scmp.ne.s32.totalorder %s164, %s165
    %p174 = scmp.eq.s32.totalorder %s32, 0
    %p175 = por %p173, %p174
    %p176 = scmp.ne.s32.totalorder %s164, %s165
    %p177 = scmp.eq.s32.totalorder %s33, 3
    %p178 = por %p176, %p177
    %p180 = scmp.ne.s32.totalorder %s165, %s179
    %p181 = scmp.eq.s32.totalorder %s33, 0
    %p182 = por %p180, %p181
    %s184 = sadd.s32 %s183, 1
    %p187 = scmp.eq.s32.totalorder %s27, 3
    %p188 = scmp.ne.s32.totalorder %s183, %s185
    %p189 = scmp.eq.s32.totalorder %s27, 0
    %p190 = por %p188, %p189
    %p191 = scmp.ne.s32.totalorder %s183, %s185
    %p192 = scmp.eq.s32.totalorder %s32, 3
    %p193 = por %p191, %p192
    %p194 = scmp.ne.s32.totalorder %s185, %s186
    %p195 = scmp.eq.s32.totalorder %s32, 0
    %p196 = por %p194, %p195
    %p197 = scmp.ne.s32.totalorder %s185, %s186
    %p198 = scmp.eq.s32.totalorder %s33, 3
    %p199 = por %p197, %p198
    %p201 = scmp.ne.s32.totalorder %s186, %s200
    %p202 = scmp.eq.s32.totalorder %s33, 0
    %p203 = por %p201, %p202
    %s205 = sadd.s32 %s204, 1
    %p208 = scmp.eq.s32.totalorder %s27, 3
    %p209 = scmp.ne.s32.totalorder %s204, %s206
    %p210 = scmp.eq.s32.totalorder %s27, 0
    %p211 = por %p209, %p210
    %p212 = scmp.ne.s32.totalorder %s204, %s206
    %p213 = scmp.eq.s32.totalorder %s32, 3
    %p214 = por %p212, %p213
    %p215 = scmp.ne.s32.totalorder %s206, %s207
    %p216 = scmp.eq.s32.totalorder %s32, 0
    %p217 = por %p215, %p216
    %p218 = scmp.ne.s32.totalorder %s206, %s207
    %p219 = scmp.eq.s32.totalorder %s33, 3
    %p220 = por %p218, %p219
    %p222 = scmp.ne.s32.totalorder %s207, %s221
    %p223 = scmp.eq.s32.totalorder %s33, 0
    %p224 = por %p222, %p223
    %s226 = sadd.s32 %s225, 1
    %p229 = scmp.eq.s32.totalorder %s27, 3
    %p230 = scmp.ne.s32.totalorder %s225, %s227
    %p231 = scmp.eq.s32.totalorder %s27, 0
    %p232 = por %p230, %p231
    %p233 = scmp.ne.s32.totalorder %s225, %s227
    %p234 = scmp.eq.s32.totalorder %s32, 3
    %p235 = por %p233, %p234
    %p236 = scmp.ne.s32.totalorder %s227, %s228
    %p237 = scmp.eq.s32.totalorder %s32, 0
    %p238 = por %p236, %p237
    %p239 = scmp.ne.s32.totalorder %s227, %s228
    %p240 = scmp.eq.s32.totalorder %s33, 3
    %p241 = por %p239, %p240
    %p243 = scmp.ne.s32.totalorder %s228, %s242
    %p244 = scmp.eq.s32.totalorder %s33, 0
    %p245 = por %p243, %p244
    %s247 = sadd.s32 %s246, 1
    %p250 = scmp.eq.s32.totalorder %s27, 3
    %p251 = scmp.ne.s32.totalorder %s246, %s248
    %p252 = scmp.eq.s32.totalorder %s27, 0
    %p253 = por %p251, %p252
    %p254 = scmp.ne.s32.totalorder %s246, %s248
    %p255 = scmp.eq.s32.totalorder %s32, 3
    %p256 = por %p254, %p255
    %p257 = scmp.ne.s32.totalorder %s248, %s249
    %p258 = scmp.eq.s32.totalorder %s32, 0
    %p259 = por %p257, %p258
    %p260 = scmp.ne.s32.totalorder %s248, %s249
    %p261 = scmp.eq.s32.totalorder %s33, 3
    %p262 = por %p260, %p261
    %p264 = scmp.ne.s32.totalorder %s249, %s263
    %p265 = scmp.eq.s32.totalorder %s33, 0
    %p266 = por %p264, %p265
    %s268 = sadd.s32 %s267, 1
    %p271 = scmp.eq.s32.totalorder %s27, 3
    %p272 = scmp.ne.s32.totalorder %s267, %s269
    %p273 = scmp.eq.s32.totalorder %s27, 0
    %p274 = por %p272, %p273
    %p275 = scmp.ne.s32.totalorder %s267, %s269
    %p276 = scmp.eq.s32.totalorder %s32, 3
    %p277 = por %p275, %p276
    %p278 = scmp.ne.s32.totalorder %s269, %s270
    %p279 = scmp.eq.s32.totalorder %s32, 0
    %p280 = por %p278, %p279
    %p281 = scmp.ne.s32.totalorder %s269, %s270
    %p282 = scmp.eq.s32.totalorder %s33, 3
    %p283 = por %p281, %p282
    %p285 = scmp.ne.s32.totalorder %s270, %s284
    %p286 = scmp.eq.s32.totalorder %s33, 0
    %p287 = por %p285, %p286
    %s289 = sadd.s32 %s288, 1
    %p292 = scmp.eq.s32.totalorder %s27, 3
    %p293 = scmp.ne.s32.totalorder %s288, %s290
    %p294 = scmp.eq.s32.totalorder %s27, 0
    %p295 = por %p293, %p294
    %p296 = scmp.ne.s32.totalorder %s288, %s290
    %p297 = scmp.eq.s32.totalorder %s32, 3
    %p298 = por %p296, %p297
    %p299 = scmp.ne.s32.totalorder %s290, %s291
    %p300 = scmp.eq.s32.totalorder %s32, 0
    %p301 = por %p299, %p300
    %p302 = scmp.ne.s32.totalorder %s290, %s291
    %p303 = scmp.eq.s32.totalorder %s33, 3
    %p304 = por %p302, %p303
    %p306 = scmp.ne.s32.totalorder %s291, %s305
    %p307 = scmp.eq.s32.totalorder %s33, 0
    %p308 = por %p306, %p307
    %s310 = sadd.s32 %s309, 1
    %p313 = scmp.eq.s32.totalorder %s27, 3
    %p314 = scmp.ne.s32.totalorder %s309, %s311
    %p315 = scmp.eq.s32.totalorder %s27, 0
    %p316 = por %p314, %p315
    %p317 = scmp.ne.s32.totalorder %s309, %s311
    %p318 = scmp.eq.s32.totalorder %s32, 3
    %p319 = por %p317, %p318
    %p320 = scmp.ne.s32.totalorder %s311, %s312
    %p321 = scmp.eq.s32.totalorder %s32, 0
    %p322 = por %p320, %p321
    %p323 = scmp.ne.s32.totalorder %s311, %s312
    %p324 = scmp.eq.s32.totalorder %s33, 3
    %p325 = por %p323, %p324
    %p327 = scmp.ne.s32.totalorder %s312, %s326
    %p328 = scmp.eq.s32.totalorder %s33, 0
    %p329 = por %p327, %p328
    %s331 = sadd.s32 %s330, 1
    %p334 = scmp.eq.s32.totalorder %s27, 3
    %p335 = scmp.ne.s32.totalorder %s330, %s332
    %p336 = scmp.eq.s32.totalorder %s27, 0
    %p337 = por %p335, %p336
    %p338 = scmp.ne.s32.totalorder %s330, %s332
    %p339 = scmp.eq.s32.totalorder %s32, 3
    %p340 = por %p338, %p339
    %p341 = scmp.ne.s32.totalorder %s332, %s333
    %p342 = scmp.eq.s32.totalorder %s32, 0
    %p343 = por %p341, %p342
    %p344 = scmp.ne.s32.totalorder %s332, %s333
    %p345 = scmp.eq.s32.totalorder %s33, 3
    %p346 = por %p344, %p345
    %p348 = scmp.ne.s32.totalorder %s333, %s347
    %p349 = scmp.eq.s32.totalorder %s33, 0
    %p350 = por %p348, %p349
    %s351 = ssub.s32 %s27, %s34
    %p352 = scmp.eq.s32.totalorder %s351, 0
    %s354 = sadd.s32 %s353, 1
    %s355 = scalar_select %p352, %s353, %s354
    %p358 = pneg %p352
    %p359 = scmp.eq.s32.totalorder %s27, 3
    %p360 = por %p358, %p359
    %p361 = scmp.ne.s32.totalorder %s353, %s356
    %p362 = scmp.eq.s32.totalorder %s27, 0
    %p363 = por %p361, %p362
    %p364 = scmp.ne.s32.totalorder %s353, %s356
    %p365 = scmp.eq.s32.totalorder %s32, 3
    %p366 = por %p364, %p365
    %p367 = scmp.ne.s32.totalorder %s356, %s357
    %p368 = scmp.eq.s32.totalorder %s32, 0
    %p369 = por %p367, %p368
    %p370 = scmp.ne.s32.totalorder %s356, %s357
    %p371 = scmp.eq.s32.totalorder %s33, 3
    %p372 = por %p370, %p371
    %p374 = scmp.ne.s32.totalorder %s357, %s373
    %p375 = scmp.eq.s32.totalorder %s33, 0
    %p376 = por %p374, %p375
    %p377 = scmp.le.s32.totalorder 1, %s27
    %p378 = scmp.lt.s32.totalorder %s27, 5
    %p379 = pnand %p377, %p378
    %p380 = pneg %p379
    // Predicated region
    $region9: #{simple_sfm_forward.3} parent=5 // pred_check
      _
    $region10: #{simple_sfm_forward.3} parent=5 // pred_check_branch
      %382 = sbr.rel (%p379) target = $region12
    $region11: #{simple_sfm_forward.3} parent=5 // pred_region
      %s383 = ssub.s32 %s27, 1
      // Predicated region
      $region13: #{simple_sfm_forward.3} parent=11 // pred_check
        %p384 = pneg %p154
      $region14: #{simple_sfm_forward.3} parent=11 // pred_check_branch
        %386 = sbr.rel (%p384) target = $region16
      $region15: #{simple_sfm_forward.3} parent=11 // pred_region
        _
      $region16: #{simple_sfm_forward.3} parent=11 // pred_fallthru
        _
      // Predicated region
      $region17: #{simple_sfm_forward.3} parent=11 // pred_check
        %p387 = pneg %p175
      $region18: #{simple_sfm_forward.3} parent=11 // pred_check_branch
        %389 = sbr.rel (%p387) target = $region20
      $region19: #{simple_sfm_forward.3} parent=11 // pred_region
        _
      $region20: #{simple_sfm_forward.3} parent=11 // pred_fallthru
        _
      // Predicated region
      $region21: #{simple_sfm_forward.3} parent=11 // pred_check
        %p390 = pneg %p196
      $region22: #{simple_sfm_forward.3} parent=11 // pred_check_branch
        %392 = sbr.rel (%p390) target = $region24
      $region23: #{simple_sfm_forward.3} parent=11 // pred_region
        _
      $region24: #{simple_sfm_forward.3} parent=11 // pred_fallthru
        _
      // Predicated region
      $region25: #{simple_sfm_forward.3} parent=11 // pred_check
        %p393 = pneg %p217
      $region26: #{simple_sfm_forward.3} parent=11 // pred_check_branch
        %395 = sbr.rel (%p393) target = $region28
      $region27: #{simple_sfm_forward.3} parent=11 // pred_region
        _
      $region28: #{simple_sfm_forward.3} parent=11 // pred_fallthru
        _
      // Predicated region
      $region29: #{simple_sfm_forward.3} parent=11 // pred_check
        %p396 = pneg %p238
      $region30: #{simple_sfm_forward.3} parent=11 // pred_check_branch
        %398 = sbr.rel (%p396) target = $region32
      $region31: #{simple_sfm_forward.3} parent=11 // pred_region
        _
      $region32: #{simple_sfm_forward.3} parent=11 // pred_fallthru
        _
      // Predicated region
      $region33: #{simple_sfm_forward.3} parent=11 // pred_check
        %p399 = pneg %p259
      $region34: #{simple_sfm_forward.3} parent=11 // pred_check_branch
        %401 = sbr.rel (%p399) target = $region36
      $region35: #{simple_sfm_forward.3} parent=11 // pred_region
        _
      $region36: #{simple_sfm_forward.3} parent=11 // pred_fallthru
        _
      // Predicated region
      $region37: #{simple_sfm_forward.3} parent=11 // pred_check
        %p402 = pneg %p280
      $region38: #{simple_sfm_forward.3} parent=11 // pred_check_branch
        %404 = sbr.rel (%p402) target = $region40
      $region39: #{simple_sfm_forward.3} parent=11 // pred_region
        _
      $region40: #{simple_sfm_forward.3} parent=11 // pred_fallthru
        _
      // Predicated region
      $region41: #{simple_sfm_forward.3} parent=11 // pred_check
        %p405 = pneg %p301
      $region42: #{simple_sfm_forward.3} parent=11 // pred_check_branch
        %407 = sbr.rel (%p405) target = $region44
      $region43: #{simple_sfm_forward.3} parent=11 // pred_region
        _
      $region44: #{simple_sfm_forward.3} parent=11 // pred_fallthru
        _
      // Predicated region
      $region45: #{simple_sfm_forward.3} parent=11 // pred_check
        %p408 = pneg %p322
      $region46: #{simple_sfm_forward.3} parent=11 // pred_check_branch
        %410 = sbr.rel (%p408) target = $region48
      $region47: #{simple_sfm_forward.3} parent=11 // pred_region
        _
      $region48: #{simple_sfm_forward.3} parent=11 // pred_fallthru
        _
      // Predicated region
      $region49: #{simple_sfm_forward.3} parent=11 // pred_check
        %p411 = pneg %p343
      $region50: #{simple_sfm_forward.3} parent=11 // pred_check_branch
        %413 = sbr.rel (%p411) target = $region52
      $region51: #{simple_sfm_forward.3} parent=11 // pred_region
        _
      $region52: #{simple_sfm_forward.3} parent=11 // pred_fallthru
        _
    $region12: #{simple_sfm_forward.3} parent=5 // pred_fallthru
      _
    %p414 = scmp.lt.s32.totalorder %s27, 4
    // Predicated region
    $region53: #{simple_sfm_forward.3} parent=5 // pred_check
      %p415 = pneg %p414
    $region54: #{simple_sfm_forward.3} parent=5 // pred_check_branch
      %417 = sbr.rel (%p415) target = $region56
    $region55: #{simple_sfm_forward.3} parent=5 // pred_region
      // Predicated region
      $region57: #{simple_sfm_forward.3} parent=55 // pred_check
        %p418 = pneg %p47
      $region58: #{simple_sfm_forward.3} parent=55 // pred_check_branch
        %420 = sbr.rel (%p418) target = $region60
      $region59: #{simple_sfm_forward.3} parent=55 // pred_region
        %p421 = scmp.lt.s32.totalorder %s27, 3
        %s422 = scalar_select %p421, %s27, 3
        %s423 = smul.addr %s422, 4
        %s424 = smul.addr %s423, 4
        %s425 = scalar_lea.vmem %s1, %s424
      $region60: #{simple_sfm_forward.3} parent=55 // pred_fallthru
        _
      // Predicated region
      $region61: #{simple_sfm_forward.3} parent=55 // pred_check
        %p426 = pneg %p73
      $region62: #{simple_sfm_forward.3} parent=55 // pred_check_branch
        %428 = sbr.rel (%p426) target = $region64
      $region63: #{simple_sfm_forward.3} parent=55 // pred_region
        %p429 = scmp.lt.s32.totalorder %s27, 3
        %s430 = scalar_select %p429, %s27, 3
        %s431 = smul.addr %s430, 2
        %s432 = scalar_lea.vmem %s2, %s431
      $region64: #{simple_sfm_forward.3} parent=55 // pred_fallthru
        _
      // Predicated region
      $region65: #{simple_sfm_forward.3} parent=55 // pred_check
        %p433 = pneg %p101
      $region66: #{simple_sfm_forward.3} parent=55 // pred_check_branch
        %435 = sbr.rel (%p433) target = $region68
      $region67: #{simple_sfm_forward.3} parent=55 // pred_region
        %s436 = sld [smem:[#allocation5 + %s27]]
        %p437 = scmp.lt.s32.totalorder %s436, 1
        %s438 = scalar_select %p437, %s436, 1
        %s439 = smul.addr %s438, 4
        %s440 = smul.addr %s439, 4
        %s441 = scalar_lea.vmem %s3, %s440
        %s442 = sld [smem:[#allocation5 + %s27]]
      $region68: #{simple_sfm_forward.3} parent=55 // pred_fallthru
        _
      // Predicated region
      $region69: #{simple_sfm_forward.3} parent=55 // pred_check
        %p443 = pneg %p127
      $region70: #{simple_sfm_forward.3} parent=55 // pred_check_branch
        %445 = sbr.rel (%p443) target = $region72
      $region71: #{simple_sfm_forward.3} parent=55 // pred_region
        %p446 = scmp.lt.s32.totalorder %s27, 3
        %s447 = scalar_select %p446, %s27, 3
        %s448 = smul.addr %s447, 64
        %s449 = smul.addr %s448, 4
        %s450 = scalar_lea.vmem %s4, %s449
      $region72: #{simple_sfm_forward.3} parent=55 // pred_fallthru
        _
    $region56: #{simple_sfm_forward.3} parent=5 // pred_fallthru
      _
    %p451 = scmp.le.s32.totalorder 1, %s27
    %p452 = scmp.lt.s32.totalorder %s27, 5
    %p453 = pnand %p451, %p452
    %p454 = pneg %p453
    // Predicated region
    $region73: #{simple_sfm_forward.3} parent=5 // pred_check
      _
    $region74: #{simple_sfm_forward.3} parent=5 // pred_check_branch
      %456 = sbr.rel (%p453) target = $region76
    $region75: #{simple_sfm_forward.3} parent=5 // pred_region
      %s457 = ssub.s32 %s27, 1
      %p458 = scmp.lt.s32.totalorder %s32, 3
      %s459 = scalar_select %p458, %s32, 3
      %s460 = smul.addr %s459, 4
      %s461 = smul.addr %s460, 4
      %s462 = scalar_lea.vmem %s1, %s461
      %p463 = pneg %p53
      %p464 = pneg %p50
      %p465 = scmp.lt.s32.totalorder %s32, 3
      %s466 = scalar_select %p465, %s32, 3
      %s467 = smul.addr %s466, 2
      %s468 = scalar_lea.vmem %s2, %s467
      %p469 = pneg %p79
      %p470 = pneg %p76
      %s471 = sld [smem:[#allocation5 + %s32]]
      %p472 = scmp.lt.s32.totalorder %s471, 1
      %s473 = scalar_select %p472, %s471, 1
      %s474 = smul.addr %s473, 4
      %s475 = smul.addr %s474, 4
      %s476 = scalar_lea.vmem %s3, %s475
      %p477 = pneg %p107
      %p478 = pneg %p104
      %p479 = scmp.lt.s32.totalorder %s32, 3
      %s480 = scalar_select %p479, %s32, 3
      %s481 = smul.addr %s480, 64
      %s482 = smul.addr %s481, 4
      %s483 = scalar_lea.vmem %s4, %s482
      %p484 = pneg %p133
      %p485 = pneg %p130
      %p486 = pneg %p154
      %p487 = pneg %p151
      %p488 = pneg %p175
      %p489 = pneg %p172
      %p490 = pneg %p196
      %p491 = pneg %p193
      %p492 = pneg %p217
      %p493 = pneg %p214
      %p494 = pneg %p238
      %p495 = pneg %p235
      %p496 = pneg %p259
      %p497 = pneg %p256
      %p498 = pneg %p280
      %p499 = pneg %p277
      %p500 = pneg %p301
      %p501 = pneg %p298
      %p502 = pneg %p322
      %p503 = pneg %p319
      %p504 = pneg %p343
      %p505 = pneg %p340
      %p506 = pneg %p369
      %p507 = pneg %p366
      %p508 = scmp.lt.s32.totalorder %s32, 3
      %s509 = scalar_select %p508, %s32, 3
      %s510 = smul.addr %s509, 14
      %s511 = smul.addr %s510, 8
      %s512 = scalar_lea.vmem %s15, %s511
      %p513 = scmp.lt.s32.totalorder %s32, 3
      %s514 = scalar_select %p513, %s32, 3
      %s515 = smul.addr %s514, 4
      %s516 = smul.addr %s515, 4
      %s517 = scalar_lea.vmem %s1, %s516
      %p518 = scmp.lt.s32.totalorder %s32, 3
      %s519 = scalar_select %p518, %s32, 3
      %s520 = smul.addr %s519, 2
      %s521 = scalar_lea.vmem %s2, %s520
      %s522 = sld [smem:[#allocation5 + %s32]]
      %p523 = scmp.lt.s32.totalorder %s522, 1
      %s524 = scalar_select %p523, %s522, 1
      %s525 = smul.addr %s524, 4
      %s526 = smul.addr %s525, 4
      %s527 = scalar_lea.vmem %s3, %s526
      %s528 = sld [smem:[#allocation5 + %s32]]
      %p529 = scmp.lt.s32.totalorder %s32, 3
      %s530 = scalar_select %p529, %s32, 3
      %s531 = smul.addr %s530, 64
      %s532 = smul.addr %s531, 4
      %s533 = scalar_lea.vmem %s4, %s532
      %p534 = scmp.lt.s32.totalorder %s32, 3
      %s535 = scalar_select %p534, %s32, 3
      %s536 = smul.addr %s535, 14
      %s537 = smul.addr %s536, 8
      %s538 = scalar_lea.vmem %s15, %s537
      %v542 = vld [vmem:[%s521] sm:$0x3]
      %v543 = vand.u32 2147483647, %v542
      %v544 = vsub.f32 0.0, %v543
      %v545 = vmul.f32 %v544, 1.442695
      %v546 = vpow.pop %v545
      %vm547 = vcmp.ge.f32.partialorder %v542, 0.0
      %v548 = vsel %vm547, 1.0, %v546
      %v549 = vadd.f32 %v546, 1.0
      %v550 = vrcp.pop %v549
      %v551 = vmul.f32 %v548, %v550
      %v552 = vld [vmem:[%s5] sm:$0xf]
      %v553 = vld [vmem:[%s5 + $0x4] sm:$0xf]
      %v554 = vld [vmem:[%s517] sm:$0xff]
      %v555 = vld [vmem:[%s517 + $0x8] sm:$0xff]
      %v556 = vld [vmem:[%s527] sm:$0xff]
      %v557 = vld [vmem:[%s527 + $0x8] sm:$0xff]
      %v558 = vld [vmem:[%s533] sm:$0xff]
      %v559 = vld [vmem:[%s533 + $0x8] sm:$0xff]
      %v560 = vld [vmem:[%s533 + $0x10] sm:$0xff]
      %v561 = vld [vmem:[%s533 + $0x18] sm:$0xff]
      %v562 = vld [vmem:[%s533 + $0x20] sm:$0xff]
      %v563 = vld [vmem:[%s533 + $0x28] sm:$0xff]
      %v564 = vld [vmem:[%s533 + $0x30] sm:$0xff]
      %v565 = vld [vmem:[%s533 + $0x38] sm:$0xff]
      %v566 = vld [vmem:[%s533 + $0x40] sm:$0xff]
      %v567 = vld [vmem:[%s533 + $0x48] sm:$0xff]
      %v568 = vld [vmem:[%s533 + $0x50] sm:$0xff]
      %v569 = vld [vmem:[%s533 + $0x58] sm:$0xff]
      %v570 = vld [vmem:[%s533 + $0x60] sm:$0xff]
      %v571 = vld [vmem:[%s533 + $0x68] sm:$0xff]
      %v572 = vld [vmem:[%s533 + $0x70] sm:$0xff]
      %v573 = vld [vmem:[%s533 + $0x78] sm:$0xff]
      %v574 = vld [vmem:[%s533 + $0x80] sm:$0xff]
      %v575 = vld [vmem:[%s533 + $0x88] sm:$0xff]
      %v576 = vld [vmem:[%s533 + $0x90] sm:$0xff]
      %v577 = vld [vmem:[%s533 + $0x98] sm:$0xff]
      %v578 = vld [vmem:[%s533 + $0xa0] sm:$0xff]
      %v579 = vld [vmem:[%s533 + $0xa8] sm:$0xff]
      %v580 = vld [vmem:[%s533 + $0xb0] sm:$0xff]
      %v581 = vld [vmem:[%s533 + $0xb8] sm:$0xff]
      %v582 = vld [vmem:[%s533 + $0xc0] sm:$0xff]
      %v583 = vld [vmem:[%s533 + $0xc8] sm:$0xff]
      %v584 = vld [vmem:[%s533 + $0xd0] sm:$0xff]
      %v585 = vld [vmem:[%s533 + $0xd8] sm:$0xff]
      %v586 = vld [vmem:[%s533 + $0xe0] sm:$0xff]
      %v587 = vld [vmem:[%s533 + $0xe8] sm:$0xff]
      %v588 = vld [vmem:[%s533 + $0xf0] sm:$0xff]
      %v589 = vld [vmem:[%s533 + $0xf8] sm:$0xff]
      %v592 = vunpack.c.l.b16 %v556
      %v593 = vunpack.c.h.b16 %v556
      %v594 = vunpack.c.l.b16 %v557
      %v595 = vunpack.c.h.b16 %v557
      %v596 = vpack.c.b16 %v594, %v592
      %v597 = vpack.c.b16 %v595, %v593
      %v632 = vunpack.c.l.b16 %v558
      %v633 = vunpack.c.h.b16 %v558
      %v634 = vunpack.c.l.b16 %v559
      %v635 = vunpack.c.h.b16 %v559
      %v636 = vunpack.c.l.b16 %v560
      %v637 = vunpack.c.h.b16 %v560
      %v638 = vunpack.c.l.b16 %v561
      %v639 = vunpack.c.h.b16 %v561
      %v640 = vunpack.c.l.b16 %v562
      %v641 = vunpack.c.h.b16 %v562
      %v642 = vunpack.c.l.b16 %v563
      %v643 = vunpack.c.h.b16 %v563
      %v644 = vunpack.c.l.b16 %v564
      %v645 = vunpack.c.h.b16 %v564
      %v646 = vunpack.c.l.b16 %v565
      %v647 = vunpack.c.h.b16 %v565
      %v648 = vunpack.c.l.b16 %v566
      %v649 = vunpack.c.h.b16 %v566
      %v650 = vunpack.c.l.b16 %v567
      %v651 = vunpack.c.h.b16 %v567
      %v652 = vunpack.c.l.b16 %v568
      %v653 = vunpack.c.h.b16 %v568
      %v654 = vunpack.c.l.b16 %v569
      %v655 = vunpack.c.h.b16 %v569
      %v656 = vunpack.c.l.b16 %v570
      %v657 = vunpack.c.h.b16 %v570
      %v658 = vunpack.c.l.b16 %v571
      %v659 = vunpack.c.h.b16 %v571
      %v660 = vunpack.c.l.b16 %v572
      %v661 = vunpack.c.h.b16 %v572
      %v662 = vunpack.c.l.b16 %v573
      %v663 = vunpack.c.h.b16 %v573
      %v664 = vunpack.c.l.b16 %v574
      %v665 = vunpack.c.h.b16 %v574
      %v666 = vunpack.c.l.b16 %v575
      %v667 = vunpack.c.h.b16 %v575
      %v668 = vunpack.c.l.b16 %v576
      %v669 = vunpack.c.h.b16 %v576
      %v670 = vunpack.c.l.b16 %v577
      %v671 = vunpack.c.h.b16 %v577
      %v672 = vunpack.c.l.b16 %v578
      %v673 = vunpack.c.h.b16 %v578
      %v674 = vunpack.c.l.b16 %v579
      %v675 = vunpack.c.h.b16 %v579
      %v676 = vunpack.c.l.b16 %v580
      %v677 = vunpack.c.h.b16 %v580
      %v678 = vunpack.c.l.b16 %v581
      %v679 = vunpack.c.h.b16 %v581
      %v680 = vunpack.c.l.b16 %v582
      %v681 = vunpack.c.h.b16 %v582
      %v682 = vunpack.c.l.b16 %v583
      %v683 = vunpack.c.h.b16 %v583
      %v684 = vunpack.c.l.b16 %v584
      %v685 = vunpack.c.h.b16 %v584
      %v686 = vunpack.c.l.b16 %v585
      %v687 = vunpack.c.h.b16 %v585
      %v688 = vunpack.c.l.b16 %v586
      %v689 = vunpack.c.h.b16 %v586
      %v690 = vunpack.c.l.b16 %v587
      %v691 = vunpack.c.h.b16 %v587
      %v692 = vunpack.c.l.b16 %v588
      %v693 = vunpack.c.h.b16 %v588
      %v694 = vunpack.c.l.b16 %v589
      %v695 = vunpack.c.h.b16 %v589
      %v696 = vpack.c.b16 %v634, %v632
      %v697 = vpack.c.b16 %v635, %v633
      %v698 = vpack.c.b16 %v638, %v636
      %v699 = vpack.c.b16 %v639, %v637
      %v700 = vpack.c.b16 %v642, %v640
      %v701 = vpack.c.b16 %v643, %v641
      %v702 = vpack.c.b16 %v646, %v644
      %v703 = vpack.c.b16 %v647, %v645
      %v704 = vpack.c.b16 %v650, %v648
      %v705 = vpack.c.b16 %v651, %v649
      %v706 = vpack.c.b16 %v654, %v652
      %v707 = vpack.c.b16 %v655, %v653
      %v708 = vpack.c.b16 %v658, %v656
      %v709 = vpack.c.b16 %v659, %v657
      %v710 = vpack.c.b16 %v662, %v660
      %v711 = vpack.c.b16 %v663, %v661
      %v712 = vpack.c.b16 %v666, %v664
      %v713 = vpack.c.b16 %v667, %v665
      %v714 = vpack.c.b16 %v670, %v668
      %v715 = vpack.c.b16 %v671, %v669
      %v716 = vpack.c.b16 %v674, %v672
      %v717 = vpack.c.b16 %v675, %v673
      %v718 = vpack.c.b16 %v678, %v676
      %v719 = vpack.c.b16 %v679, %v677
      %v720 = vpack.c.b16 %v682, %v680
      %v721 = vpack.c.b16 %v683, %v681
      %v722 = vpack.c.b16 %v686, %v684
      %v723 = vpack.c.b16 %v687, %v685
      %v724 = vpack.c.b16 %v690, %v688
      %v725 = vpack.c.b16 %v691, %v689
      %v726 = vpack.c.b16 %v694, %v692
      %v727 = vpack.c.b16 %v695, %v693
      %760 = vmatprep.subr.bf16.mxu0 %v711
      %761 = vmatpush1.bf16.msra.mxu0 %v710
      %762 = vmatprep.subr.bf16.mxu0 %v709
      %763 = vmatpush1.bf16.msra.mxu0 %v708
      %764 = vmatprep.subr.bf16.mxu0 %v707
      %765 = vmatpush1.bf16.msra.mxu0 %v706
      %766 = vmatprep.subr.bf16.mxu0 %v705
      %767 = vmatpush1.bf16.msra.mxu0 %v704
      %768 = vmatprep.subr.bf16.mxu0 %v703
      %769 = vmatpush1.bf16.msra.mxu0 %v702
      %770 = vmatprep.subr.bf16.mxu0 %v701
      %771 = vmatpush1.bf16.msra.mxu0 %v700
      %772 = vmatprep.subr.bf16.mxu0 %v699
      %773 = vmatpush1.bf16.msra.mxu0 %v698
      %774 = vmatprep.subr.bf16.mxu0 %v697
      %775 = vmatpush1.bf16.msra.mxu0 %v696
      %776 = vmatprep.subr.bf16.mxu0 %v727
      %777 = vmatpush2.bf16.msra.mxu0 %v726
      %778 = vmatprep.subr.bf16.mxu0 %v725
      %779 = vmatpush2.bf16.msra.mxu0 %v724
      %780 = vmatprep.subr.bf16.mxu0 %v723
      %781 = vmatpush2.bf16.msra.mxu0 %v722
      %782 = vmatprep.subr.bf16.mxu0 %v721
      %783 = vmatpush2.bf16.msra.mxu0 %v720
      %784 = vmatprep.subr.bf16.mxu0 %v719
      %785 = vmatpush2.bf16.msra.mxu0 %v718
      %786 = vmatprep.subr.bf16.mxu0 %v717
      %787 = vmatpush2.bf16.msra.mxu0 %v716
      %788 = vmatprep.subr.bf16.mxu0 %v715
      %789 = vmatpush2.bf16.msra.mxu0 %v714
      %790 = vmatprep.subr.bf16.mxu0 %v713
      %791 = vmatpush2.bf16.msra.mxu0 %v712
      %792 = vmatprep.mubr.bf16.mxu0 %v597
      %793 = vmatmul.mubr.bf16.gmra.mxu0 %v596
      %v794 = vpop.f32.mrf.mxu0
      %v795 = vadd.f32 0.0, %v794
      %v796 = vpop.f32.mrf.mxu0
      %v797 = vadd.f32 0.0, %v796
      %v798 = vpop.f32.mrf.mxu0
      %v799 = vadd.f32 0.0, %v798
      %v800 = vpop.f32.mrf.mxu0
      %v801 = vadd.f32 0.0, %v800
      %802 = vdwg.mxu0
      %v805 = vunpack.c.l.b16 %v552
      %v806 = vunpack.c.l.b16 %v553
      %v807 = vpack.c.b16 %v806, %v805
      %v810 = vunpack.c.l.b16 %v554
      %v811 = vunpack.c.h.b16 %v554
      %v812 = vunpack.c.l.b16 %v555
      %v813 = vunpack.c.h.b16 %v555
      %v814 = vpack.c.b16 %v812, %v810
      %v815 = vpack.c.b16 %v813, %v811
      %vm818 = vcmask 130048
      %v820 = vsel %vm818, %v807, 0
      %822 = vmatprep.subr.bf16.mxu0 0
      %823 = vmatpush1.bf16.msra.mxu0 0
      %824 = vmatprep.subr.bf16.mxu0 0
      %825 = vmatpush1.bf16.msra.mxu0 0
      %826 = vmatprep.subr.bf16.mxu0 0
      %827 = vmatpush1.bf16.msra.mxu0 0
      %828 = vmatprep.subr.bf16.mxu0 0
      %829 = vmatpush1.bf16.msra.mxu0 0
      %830 = vmatprep.subr.bf16.mxu0 0
      %831 = vmatpush1.bf16.msra.mxu0 0
      %832 = vmatprep.subr.bf16.mxu0 0
      %833 = vmatpush1.bf16.msra.mxu0 0
      %834 = vmatprep.subr.bf16.mxu0 0
      %835 = vmatpush1.bf16.msra.mxu0 0
      %836 = vmatprep.subr.bf16.mxu0 %v815
      %837 = vmatpush1.bf16.msra.mxu0 %v814
      %838 = vmatprep.subr.bf16.mxu0 0
      %839 = vmatpush2.bf16.msra.mxu0 0
      %840 = vmatprep.subr.bf16.mxu0 0
      %841 = vmatpush2.bf16.msra.mxu0 0
      %842 = vmatprep.subr.bf16.mxu0 0
      %843 = vmatpush2.bf16.msra.mxu0 0
      %844 = vmatprep.subr.bf16.mxu0 0
      %845 = vmatpush2.bf16.msra.mxu0 0
      %846 = vmatprep.subr.bf16.mxu0 0
      %847 = vmatpush2.bf16.msra.mxu0 0
      %848 = vmatprep.subr.bf16.mxu0 0
      %849 = vmatpush2.bf16.msra.mxu0 0
      %850 = vmatprep.subr.bf16.mxu0 0
      %851 = vmatpush2.bf16.msra.mxu0 0
      %852 = vmatprep.subr.bf16.mxu0 0
      %853 = vmatpush2.bf16.msra.mxu0 0
      %854 = vmatprep.mubr.bf16.mxu0 0
      %855 = vmatmul.mubr.bf16.gmra.mxu0 %v820
      %v856 = vpop.f32.mrf.mxu0
      %v857 = vadd.f32 %v795, %v856
      %v858 = vpop.f32.mrf.mxu0
      %v859 = vadd.f32 %v797, %v858
      %v860 = vpop.f32.mrf.mxu0
      %v861 = vadd.f32 %v799, %v860
      %v862 = vpop.f32.mrf.mxu0
      %v863 = vadd.f32 %v801, %v862
      %864 = vdwg.mxu0
      %v865 = vld [vmem:[%s6] sm:$0xff]
      %v866 = vld [vmem:[%s6 + $0x8] sm:$0xff]
      %868 = vset.pattern.permute.xlu0 0
      %869 = vperm.xlu0 %868, %v865
      %v870 = vpop.permute.xlu0 %869
      %873 = vset.pattern.permute.xlu0 0
      %874 = vperm.xlu0 %873, %v866
      %v875 = vpop.permute.xlu0 %874
      %v878 = vlaneseq
      %v879 = vshrl.u32 %v878, 7
      %v880 = vsub.s32 0, %v879
      %v881 = vrot.slane %v551, %v880
      %v882 = vlaneseq
      %v883 = vshrl.u32 %v882, 7
      %v884 = vsub.s32 1, %v883
      %v885 = vrot.slane %v551, %v884
      %v888 = vmul.f32 %v870, %v881
      %v889 = vmul.f32 %v870, %v885
      %v890 = vmul.f32 %v875, %v881
      %v891 = vmul.f32 %v875, %v885
      %v892 = vadd.f32 %v857, %v888
      %v893 = vadd.f32 %v859, %v889
      %v894 = vadd.f32 %v861, %v890
      %v895 = vadd.f32 %v863, %v891
      %v896 = vld [vmem:[%s7] sm:$0xff]
      %v897 = vld [vmem:[%s7 + $0x8] sm:$0xff]
      %899 = vset.pattern.permute.xlu0 0
      %900 = vperm.xlu0 %899, %v896
      %v901 = vpop.permute.xlu0 %900
      %904 = vset.pattern.permute.xlu0 0
      %905 = vperm.xlu0 %904, %v897
      %v906 = vpop.permute.xlu0 %905
      %v908 = vadd.f32 %v892, %v901
      %v909 = vadd.f32 %v893, %v901
      %v910 = vadd.f32 %v894, %v906
      %v911 = vadd.f32 %v895, %v906
      %v912 = vmax.f32 %v908, 0.0
      %v913 = vmax.f32 %v909, 0.0
      %v914 = vmax.f32 %v910, 0.0
      %v915 = vmax.f32 %v911, 0.0
      %916 = vst [vmem:[#allocation2] sm:$0xff] 0
      %vm917 = vcmask 732160
      %918 = vst.msk [vmem:[#allocation2 + $0x8] sm:$0xf] %vm917, 0
      %919 = vst [vmem:[#allocation2 + $0xc] sm:$0xff] 0
      %920 = vst.msk [vmem:[#allocation2 + $0x14] sm:$0xf] %vm917, 0
      %v921 = vpack.c.bf16 %v914, %v912
      %v922 = vpack.c.bf16 %v915, %v913
      %v925 = vunpack.c.l.b16 %v921
      %v926 = vunpack.c.l.b16 %v922
      %v927 = vunpack.c.h.b16 %v921
      %v928 = vunpack.c.h.b16 %v922
      %v929 = vpack.c.b16 %v926, %v925
      %v930 = vpack.c.b16 %v928, %v927
      %931 = vrot.lane.b32.xlu0 %v929, 75
      %v932 = vpop.permute.xlu0 %931
      %933 = vrot.lane.b32.xlu0 %v930, 75
      %v934 = vpop.permute.xlu0 %933
      %v935 = vrot.slane %v932, 4
      %v936 = vrot.slane %v934, 4
      %vm937 = vcmask 613376
      %v938 = vsel %vm937, %v935, %v932
      %v939 = vsel %vm937, %v936, %v934
      %vm944 = vcmask 1044056
      %vm945 = vcmask 1047556
      %vm946 = vmor %vm945, %vm944
      %947 = vst.msk [vmem:[#allocation2] sm:$0xff] %vm946, %v938
      %vm948 = vcmask 117760
      %949 = vst.msk [vmem:[#allocation2 + $0x8] sm:$0xf] %vm948, %v935
      %950 = vst.msk [vmem:[#allocation2 + $0xc] sm:$0xff] %vm946, %v939
      %951 = vst.msk [vmem:[#allocation2 + $0x14] sm:$0xf] %vm948, %v936
      %v952 = vlaneseq
      %v953 = vand.u32 %v952, 127
      %v954 = vadd.s32 %v953, 128
      %vm955 = vcmp.lt.s32.totalorder %v953, 0
      %v956 = vsub.s32 0, %v953
      %v957 = vsel %vm955, %v956, %v953
      %v958 = vmul.u32.u64.compose %v957, 2454267026
      %v959 = vextract.low.u32 %v958
      %v960 = vextract.high.u32 %v958
      %vm961 = vc.u32 %v959, 2454267026
      %v962 = vsel %vm961, 1, 0
      %v963 = vadd.s32 %v960, %v962
      %v964 = vshrl.u32 %v963, 3
      %v965 = vmul.u32 %v964, 14
      %v966 = vsub.s32 %v957, %v965
      %v967 = vsub.s32 0, %v966
      %v968 = vsel %vm955, %v967, %v966
      %vm969 = vcmp.lt.s32.totalorder %v954, 0
      %v970 = vsub.s32 0, %v954
      %v971 = vsel %vm969, %v970, %v954
      %v972 = vmul.u32.u64.compose %v971, 2454267026
      %v973 = vextract.low.u32 %v972
      %v974 = vextract.high.u32 %v972
      %vm975 = vc.u32 %v973, 2454267026
      %v976 = vsel %vm975, 1, 0
      %v977 = vadd.s32 %v974, %v976
      %v978 = vshrl.u32 %v977, 3
      %v979 = vmul.u32 %v978, 14
      %v980 = vsub.s32 %v971, %v979
      %v981 = vsub.s32 0, %v980
      %v982 = vsel %vm969, %v981, %v980
      %vm983 = vcmp.ne.s32.totalorder %v968, 0
      %vm984 = vcmp.ne.s32.totalorder %v982, 0
      %vm985 = vcmp.lt.s32.totalorder %v968, 0
      %vm986 = vcmp.lt.s32.totalorder %v982, 0
      %vm987 = vmand %vm985, %vm983
      %vm988 = vmand %vm986, %vm984
      %v989 = vadd.s32 %v968, 14
      %v990 = vadd.s32 %v982, 14
      %v991 = vsel %vm987, %v989, %v968
      %v992 = vsel %vm988, %v990, %v982
      %v993 = vld [vmem:[#allocation2] sm:$0xff]
      %v994 = vld [vmem:[#allocation2 + $0xc] sm:$0xff]
      %vm995 = vcmp.ge.s32.totalorder %v991, 1
      %vm996 = vcmp.ge.s32.totalorder %v992, 1
      %v997 = vsel %vm995, 1, 0
      %v998 = vsel %vm996, 1, 0
      %vm999 = vcmp.eq.s32.totalorder %v997, 1
      %vm1000 = vcmp.eq.s32.totalorder %v998, 1
      %vm1001 = vmpackc.low %vm1000, %vm999
      %v1002 = vsel %vm1001, 65537, 0
      %1003 = vrot.lane.b32.xlu0 %v1002, 60
      %v1004 = vpop.permute.xlu0 %1003
      %v1005 = vrot.slane %v1004, 4
      %vm1006 = vcmask 490496
      %v1007 = vsel %vm1006, %v1005, %v1004
      %vm1008 = vcmp.ne.s16.totalorder %v1007, 0
      %v1009 = vsel %vm1008, %v993, 0
      %v1010 = vsel %vm1008, %v994, 0
      %1013 = vrot.lane.b32.xlu0 %v1009, 68
      %v1014 = vpop.permute.xlu0 %1013
      %1015 = vrot.lane.b32.xlu0 %v1010, 68
      %v1016 = vpop.permute.xlu0 %1015
      %v1017 = vrot.slane %v1014, 4
      %v1018 = vrot.slane %v1016, 4
      %vm1019 = vcmask 556032
      %v1020 = vsel %vm1019, %v1014, %v1017
      %v1021 = vsel %vm1019, %v1016, %v1018
      %vm1024 = vcmask 1043456
      %vm1025 = vcmask 556036
      %vm1026 = vmor %vm1025, %vm1024
      %1027 = vst.msk [vmem:[#allocation3] sm:$0xff] %vm1026, %v1020
      %1028 = vst.msk [vmem:[#allocation3 + $0x8] sm:$0xff] %vm1026, %v1021
      %v1029 = vld [vmem:[#allocation2] sm:$0xff]
      %v1030 = vld [vmem:[#allocation2 + $0x8] sm:$0xf]
      %v1031 = vld [vmem:[#allocation2 + $0xc] sm:$0xff]
      %v1032 = vld [vmem:[#allocation2 + $0x14] sm:$0xf]
      %1037 = vrot.lane.b32.xlu0 %v1029, 67
      %v1038 = vpop.permute.xlu0 %1037
      %1039 = vrot.lane.b32.xlu0 %v1030, 67
      %v1040 = vpop.permute.xlu0 %1039
      %1041 = vrot.lane.b32.xlu0 %v1031, 67
      %v1042 = vpop.permute.xlu0 %1041
      %1043 = vrot.lane.b32.xlu0 %v1032, 67
      %v1044 = vpop.permute.xlu0 %1043
      %v1045 = vrot.slane %v1038, 4
      %v1046 = vrot.slane %v1040, 4
      %v1047 = vrot.slane %v1042, 4
      %v1048 = vrot.slane %v1044, 4
      %vm1049 = vcmask 1043456
      %v1050 = vsel %vm1049, %v1045, %v1046
      %vm1051 = vcmask 547840
      %v1052 = vsel %vm1051, %v1038, %v1050
      %v1053 = vsel %vm1049, %v1047, %v1048
      %v1054 = vsel %vm1051, %v1042, %v1053
      %1057 = vst.msk [vmem:[#allocation3 + $0x10] sm:$0xff] %vm1026, %v1052
      %1058 = vst.msk [vmem:[#allocation3 + $0x18] sm:$0xff] %vm1026, %v1054
      %v1059 = vld [vmem:[#allocation2] sm:$0xff]
      %v1060 = vld [vmem:[#allocation2 + $0x8] sm:$0xf]
      %v1061 = vld [vmem:[#allocation2 + $0xc] sm:$0xff]
      %v1062 = vld [vmem:[#allocation2 + $0x14] sm:$0xf]
      %vm1063 = vcmp.lt.s32.totalorder %v991, 13
      %vm1064 = vcmp.lt.s32.totalorder %v992, 13
      %v1065 = vsel %vm1063, 1, 0
      %v1066 = vsel %vm1064, 1, 0
      %vm1067 = vcmp.eq.s32.totalorder %v1065, 1
      %vm1068 = vcmp.eq.s32.totalorder %v1066, 1
      %vm1069 = vmpackc.low %vm1068, %vm1067
      %v1070 = vsel %vm1069, 65537, 0
      %1071 = vrot.lane.b32.xlu0 %v1070, 62
      %v1072 = vpop.permute.xlu0 %1071
      %v1073 = vrot.slane %v1072, 4
      %vm1074 = vcmask 506880
      %v1075 = vsel %vm1074, %v1073, %v1072
      %vm1076 = vcmp.ne.s16.totalorder %v1075, 0
      %vm1077 = vcmp.ne.s16.totalorder %v1073, 0
      %v1078 = vsel %vm1076, %v1059, 0
      %v1079 = vsel %vm1077, %v1060, 0
      %v1080 = vsel %vm1076, %v1061, 0
      %v1081 = vsel %vm1077, %v1062, 0
      %1086 = vrot.lane.b32.xlu0 %v1078, 66
      %v1087 = vpop.permute.xlu0 %1086
      %1088 = vrot.lane.b32.xlu0 %v1079, 66
      %v1089 = vpop.permute.xlu0 %1088
      %1090 = vrot.lane.b32.xlu0 %v1080, 66
      %v1091 = vpop.permute.xlu0 %1090
      %1092 = vrot.lane.b32.xlu0 %v1081, 66
      %v1093 = vpop.permute.xlu0 %1092
      %v1094 = vrot.slane %v1087, 4
      %v1095 = vrot.slane %v1089, 4
      %v1096 = vrot.slane %v1091, 4
      %v1097 = vrot.slane %v1093, 4
      %v1098 = vsel %vm1049, %v1094, %v1095
      %vm1099 = vcmask 539648
      %v1100 = vsel %vm1099, %v1087, %v1098
      %v1101 = vsel %vm1049, %v1096, %v1097
      %v1102 = vsel %vm1099, %v1091, %v1101
      %1105 = vst.msk [vmem:[#allocation3 + $0x20] sm:$0xff] %vm1026, %v1100
      %1106 = vst.msk [vmem:[#allocation3 + $0x28] sm:$0xff] %vm1026, %v1102
      %v1107 = vld [vmem:[#allocation2] sm:$0xff]
      %v1108 = vld [vmem:[#allocation2 + $0x8] sm:$0xf]
      %v1109 = vld [vmem:[#allocation2 + $0xc] sm:$0xff]
      %v1110 = vld [vmem:[#allocation2 + $0x14] sm:$0xf]
      %1111 = vrot.lane.b32.xlu0 %v1002, 74
      %v1112 = vpop.permute.xlu0 %1111
      %v1113 = vrot.slane %v1112, 4
      %vm1114 = vcmask 605184
      %v1115 = vsel %vm1114, %v1113, %v1112
      %vm1116 = vcmp.ne.s16.totalorder %v1115, 0
      %vm1117 = vcmp.ne.s16.totalorder %v1113, 0
      %v1118 = vsel %vm1116, %v1107, 0
      %v1119 = vsel %vm1117, %v1108, 0
      %v1120 = vsel %vm1116, %v1109, 0
      %v1121 = vsel %vm1117, %v1110, 0
      %1126 = vrot.lane.b32.xlu0 %v1118, 54
      %v1127 = vpop.permute.xlu0 %1126
      %1128 = vrot.lane.b32.xlu0 %v1119, 54
      %v1129 = vpop.permute.xlu0 %1128
      %1130 = vrot.lane.b32.xlu0 %v1120, 54
      %v1131 = vpop.permute.xlu0 %1130
      %1132 = vrot.lane.b32.xlu0 %v1121, 54
      %v1133 = vpop.permute.xlu0 %1132
      %v1134 = vrot.slane %v1127, 4
      %v1135 = vrot.slane %v1129, 4
      %v1136 = vrot.slane %v1131, 4
      %v1137 = vrot.slane %v1133, 4
      %v1138 = vsel %vm1049, %v1134, %v1135
      %vm1139 = vcmask 441344
      %v1140 = vsel %vm1139, %v1127, %v1138
      %v1141 = vsel %vm1049, %v1136, %v1137
      %v1142 = vsel %vm1139, %v1131, %v1141
      %1145 = vst.msk [vmem:[#allocation3 + $0x30] sm:$0xff] %vm1026, %v1140
      %1146 = vst.msk [vmem:[#allocation3 + $0x38] sm:$0xff] %vm1026, %v1142
      %v1147 = vld [vmem:[#allocation2] sm:$0xff]
      %v1148 = vld [vmem:[#allocation2 + $0x8] sm:$0xf]
      %v1149 = vld [vmem:[#allocation2 + $0xc] sm:$0xff]
      %v1150 = vld [vmem:[#allocation2 + $0x14] sm:$0xf]
      %1155 = vrot.lane.b32.xlu0 %v1147, 53
      %v1156 = vpop.permute.xlu0 %1155
      %1157 = vrot.lane.b32.xlu0 %v1148, 53
      %v1158 = vpop.permute.xlu0 %1157
      %1159 = vrot.lane.b32.xlu0 %v1149, 53
      %v1160 = vpop.permute.xlu0 %1159
      %1161 = vrot.lane.b32.xlu0 %v1150, 53
      %v1162 = vpop.permute.xlu0 %1161
      %v1163 = vrot.slane %v1156, 4
      %v1164 = vrot.slane %v1158, 4
      %v1165 = vrot.slane %v1160, 4
      %v1166 = vrot.slane %v1162, 4
      %v1167 = vsel %vm1049, %v1163, %v1164
      %vm1168 = vcmask 433152
      %v1169 = vsel %vm1168, %v1156, %v1167
      %v1170 = vsel %vm1049, %v1165, %v1166
      %v1171 = vsel %vm1168, %v1160, %v1170
      %1174 = vst.msk [vmem:[#allocation3 + $0x40] sm:$0xff] %vm1026, %v1169
      %1175 = vst.msk [vmem:[#allocation3 + $0x48] sm:$0xff] %vm1026, %v1171
      %v1176 = vld [vmem:[#allocation2] sm:$0xff]
      %v1177 = vld [vmem:[#allocation2 + $0x8] sm:$0xf]
      %v1178 = vld [vmem:[#allocation2 + $0xc] sm:$0xff]
      %v1179 = vld [vmem:[#allocation2 + $0x14] sm:$0xf]
      %1180 = vrot.lane.b32.xlu0 %v1070, 76
      %v1181 = vpop.permute.xlu0 %1180
      %v1182 = vrot.slane %v1181, 4
      %vm1183 = vcmask 621568
      %v1184 = vsel %vm1183, %v1182, %v1181
      %vm1185 = vcmp.ne.s16.totalorder %v1184, 0
      %vm1186 = vcmp.ne.s16.totalorder %v1182, 0
      %v1187 = vsel %vm1185, %v1176, 0
      %v1188 = vsel %vm1186, %v1177, 0
      %v1189 = vsel %vm1185, %v1178, 0
      %v1190 = vsel %vm1186, %v1179, 0
      %1195 = vrot.lane.b32.xlu0 %v1187, 52
      %v1196 = vpop.permute.xlu0 %1195
      %1197 = vrot.lane.b32.xlu0 %v1188, 52
      %v1198 = vpop.permute.xlu0 %1197
      %1199 = vrot.lane.b32.xlu0 %v1189, 52
      %v1200 = vpop.permute.xlu0 %1199
      %1201 = vrot.lane.b32.xlu0 %v1190, 52
      %v1202 = vpop.permute.xlu0 %1201
      %v1203 = vrot.slane %v1196, 4
      %v1204 = vrot.slane %v1198, 4
      %v1205 = vrot.slane %v1200, 4
      %v1206 = vrot.slane %v1202, 4
      %v1207 = vsel %vm1049, %v1203, %v1204
      %vm1208 = vcmask 424960
      %v1209 = vsel %vm1208, %v1196, %v1207
      %v1210 = vsel %vm1049, %v1205, %v1206
      %v1211 = vsel %vm1208, %v1200, %v1210
      %1214 = vst.msk [vmem:[#allocation3 + $0x50] sm:$0xff] %vm1026, %v1209
      %1215 = vst.msk [vmem:[#allocation3 + $0x58] sm:$0xff] %vm1026, %v1211
      %v1216 = vld [vmem:[#allocation2] sm:$0xff]
      %v1217 = vld [vmem:[#allocation2 + $0x8] sm:$0xf]
      %v1218 = vld [vmem:[#allocation2 + $0xc] sm:$0xff]
      %v1219 = vld [vmem:[#allocation2 + $0x14] sm:$0xf]
      %1220 = vrot.lane.b32.xlu0 %v1002, 88
      %v1221 = vpop.permute.xlu0 %1220
      %v1222 = vrot.slane %v1221, 4
      %vm1223 = vcmask 719872
      %v1224 = vsel %vm1223, %v1222, %v1221
      %vm1225 = vcmp.ne.s16.totalorder %v1224, 0
      %vm1226 = vcmp.ne.s16.totalorder %v1222, 0
      %v1227 = vsel %vm1225, %v1216, 0
      %v1228 = vsel %vm1226, %v1217, 0
      %v1229 = vsel %vm1225, %v1218, 0
      %v1230 = vsel %vm1226, %v1219, 0
      %1235 = vrot.lane.b32.xlu0 %v1227, 40
      %v1236 = vpop.permute.xlu0 %1235
      %1237 = vrot.lane.b32.xlu0 %v1228, 40
      %v1238 = vpop.permute.xlu0 %1237
      %1239 = vrot.lane.b32.xlu0 %v1229, 40
      %v1240 = vpop.permute.xlu0 %1239
      %1241 = vrot.lane.b32.xlu0 %v1230, 40
      %v1242 = vpop.permute.xlu0 %1241
      %v1243 = vrot.slane %v1236, 4
      %v1244 = vrot.slane %v1238, 4
      %v1245 = vrot.slane %v1240, 4
      %v1246 = vrot.slane %v1242, 4
      %v1247 = vsel %vm1049, %v1243, %v1244
      %vm1248 = vcmask 326656
      %v1249 = vsel %vm1248, %v1236, %v1247
      %v1250 = vsel %vm1049, %v1245, %v1246
      %v1251 = vsel %vm1248, %v1240, %v1250
      %1254 = vst.msk [vmem:[#allocation3 + $0x60] sm:$0xff] %vm1026, %v1249
      %1255 = vst.msk [vmem:[#allocation3 + $0x68] sm:$0xff] %vm1026, %v1251
      %v1256 = vld [vmem:[#allocation2] sm:$0xff]
      %v1257 = vld [vmem:[#allocation2 + $0x8] sm:$0xf]
      %v1258 = vld [vmem:[#allocation2 + $0xc] sm:$0xff]
      %v1259 = vld [vmem:[#allocation2 + $0x14] sm:$0xf]
      %1264 = vrot.lane.b32.xlu0 %v1256, 39
      %v1265 = vpop.permute.xlu0 %1264
      %1266 = vrot.lane.b32.xlu0 %v1257, 39
      %v1267 = vpop.permute.xlu0 %1266
      %1268 = vrot.lane.b32.xlu0 %v1258, 39
      %v1269 = vpop.permute.xlu0 %1268
      %1270 = vrot.lane.b32.xlu0 %v1259, 39
      %v1271 = vpop.permute.xlu0 %1270
      %v1272 = vrot.slane %v1265, 4
      %v1273 = vrot.slane %v1267, 4
      %v1274 = vrot.slane %v1269, 4
      %v1275 = vrot.slane %v1271, 4
      %v1276 = vsel %vm1049, %v1272, %v1273
      %vm1277 = vcmask 318464
      %v1278 = vsel %vm1277, %v1265, %v1276
      %v1279 = vsel %vm1049, %v1274, %v1275
      %v1280 = vsel %vm1277, %v1269, %v1279
      %1283 = vst.msk [vmem:[#allocation3 + $0x70] sm:$0xff] %vm1026, %v1278
      %1284 = vst.msk [vmem:[#allocation3 + $0x78] sm:$0xff] %vm1026, %v1280
      %v1285 = vld [vmem:[#allocation2] sm:$0xff]
      %v1286 = vld [vmem:[#allocation2 + $0x8] sm:$0xf]
      %v1287 = vld [vmem:[#allocation2 + $0xc] sm:$0xff]
      %v1288 = vld [vmem:[#allocation2 + $0x14] sm:$0xf]
      %1289 = vrot.lane.b32.xlu0 %v1070, 90
      %v1290 = vpop.permute.xlu0 %1289
      %v1291 = vrot.slane %v1290, 4
      %vm1292 = vcmask 736256
      %v1293 = vsel %vm1292, %v1291, %v1290
      %vm1294 = vcmp.ne.s16.totalorder %v1293, 0
      %vm1295 = vcmp.ne.s16.totalorder %v1291, 0
      %v1296 = vsel %vm1294, %v1285, 0
      %v1297 = vsel %vm1295, %v1286, 0
      %v1298 = vsel %vm1294, %v1287, 0
      %v1299 = vsel %vm1295, %v1288, 0
      %1304 = vrot.lane.b32.xlu0 %v1296, 38
      %v1305 = vpop.permute.xlu0 %1304
      %1306 = vrot.lane.b32.xlu0 %v1297, 38
      %v1307 = vpop.permute.xlu0 %1306
      %1308 = vrot.lane.b32.xlu0 %v1298, 38
      %v1309 = vpop.permute.xlu0 %1308
      %1310 = vrot.lane.b32.xlu0 %v1299, 38
      %v1311 = vpop.permute.xlu0 %1310
      %v1312 = vrot.slane %v1305, 4
      %v1313 = vrot.slane %v1307, 4
      %v1314 = vrot.slane %v1309, 4
      %v1315 = vrot.slane %v1311, 4
      %v1316 = vsel %vm1049, %v1312, %v1313
      %vm1317 = vcmask 310272
      %v1318 = vsel %vm1317, %v1305, %v1316
      %v1319 = vsel %vm1049, %v1314, %v1315
      %v1320 = vsel %vm1317, %v1309, %v1319
      %1323 = vst.msk [vmem:[#allocation3 + $0x80] sm:$0xff] %vm1026, %v1318
      %1324 = vst.msk [vmem:[#allocation3 + $0x88] sm:$0xff] %vm1026, %v1320
      %v1325 = vld [vmem:[%s8] sm:$0xff]
      %v1326 = vld [vmem:[%s8 + $0x8] sm:$0xff]
      %v1327 = vld [vmem:[#allocation3] sm:$0xff]
      %v1328 = vld [vmem:[#allocation3 + $0x8] sm:$0xff]
      %v1329 = vld [vmem:[#allocation3 + $0x10] sm:$0xff]
      %v1330 = vld [vmem:[#allocation3 + $0x18] sm:$0xff]
      %v1331 = vld [vmem:[#allocation3 + $0x20] sm:$0xff]
      %v1332 = vld [vmem:[#allocation3 + $0x28] sm:$0xff]
      %v1333 = vld [vmem:[#allocation3 + $0x30] sm:$0xff]
      %v1334 = vld [vmem:[#allocation3 + $0x38] sm:$0xff]
      %v1335 = vld [vmem:[#allocation3 + $0x40] sm:$0xff]
      %v1336 = vld [vmem:[#allocation3 + $0x48] sm:$0xff]
      %v1337 = vld [vmem:[#allocation3 + $0x50] sm:$0xff]
      %v1338 = vld [vmem:[#allocation3 + $0x58] sm:$0xff]
      %v1339 = vld [vmem:[#allocation3 + $0x60] sm:$0xff]
      %v1340 = vld [vmem:[#allocation3 + $0x68] sm:$0xff]
      %v1341 = vld [vmem:[#allocation3 + $0x70] sm:$0xff]
      %v1342 = vld [vmem:[#allocation3 + $0x78] sm:$0xff]
      %v1343 = vld [vmem:[#allocation3 + $0x80] sm:$0xff]
      %v1344 = vld [vmem:[#allocation3 + $0x88] sm:$0xff]
      %v1345 = vld [vmem:[%s9] sm:$0xff]
      %v1346 = vld [vmem:[%s9 + $0x8] sm:$0xff]
      %1348 = vset.pattern.permute.xlu0 0
      %1349 = vperm.xlu0 %1348, %v1345
      %v1350 = vpop.permute.xlu0 %1349
      %1353 = vset.pattern.permute.xlu0 0
      %1354 = vperm.xlu0 %1353, %v1346
      %v1355 = vpop.permute.xlu0 %1354
      %v1359 = vunpack.c.l.b16 %v1325
      %v1360 = vunpack.c.h.b16 %v1325
      %v1361 = vunpack.c.l.b16 %v1326
      %v1362 = vunpack.c.h.b16 %v1326
      %v1363 = vpack.c.b16 %v1361, %v1359
      %v1364 = vpack.c.b16 %v1362, %v1360
      %v1384 = vunpack.c.l.b16 %v1327
      %v1385 = vunpack.c.h.b16 %v1327
      %v1386 = vunpack.c.l.b16 %v1328
      %v1387 = vunpack.c.h.b16 %v1328
      %v1388 = vunpack.c.l.b16 %v1329
      %v1389 = vunpack.c.h.b16 %v1329
      %v1390 = vunpack.c.l.b16 %v1330
      %v1391 = vunpack.c.h.b16 %v1330
      %v1392 = vunpack.c.l.b16 %v1331
      %v1393 = vunpack.c.h.b16 %v1331
      %v1394 = vunpack.c.l.b16 %v1332
      %v1395 = vunpack.c.h.b16 %v1332
      %v1396 = vunpack.c.l.b16 %v1333
      %v1397 = vunpack.c.h.b16 %v1333
      %v1398 = vunpack.c.l.b16 %v1334
      %v1399 = vunpack.c.h.b16 %v1334
      %v1400 = vunpack.c.l.b16 %v1335
      %v1401 = vunpack.c.h.b16 %v1335
      %v1402 = vunpack.c.l.b16 %v1336
      %v1403 = vunpack.c.h.b16 %v1336
      %v1404 = vunpack.c.l.b16 %v1337
      %v1405 = vunpack.c.h.b16 %v1337
      %v1406 = vunpack.c.l.b16 %v1338
      %v1407 = vunpack.c.h.b16 %v1338
      %v1408 = vunpack.c.l.b16 %v1339
      %v1409 = vunpack.c.h.b16 %v1339
      %v1410 = vunpack.c.l.b16 %v1340
      %v1411 = vunpack.c.h.b16 %v1340
      %v1412 = vunpack.c.l.b16 %v1341
      %v1413 = vunpack.c.h.b16 %v1341
      %v1414 = vunpack.c.l.b16 %v1342
      %v1415 = vunpack.c.h.b16 %v1342
      %v1416 = vunpack.c.l.b16 %v1343
      %v1417 = vunpack.c.h.b16 %v1343
      %v1418 = vunpack.c.l.b16 %v1344
      %v1419 = vunpack.c.h.b16 %v1344
      %v1420 = vpack.c.b16 %v1386, %v1384
      %v1421 = vpack.c.b16 %v1387, %v1385
      %v1422 = vpack.c.b16 %v1390, %v1388
      %v1423 = vpack.c.b16 %v1391, %v1389
      %v1424 = vpack.c.b16 %v1394, %v1392
      %v1425 = vpack.c.b16 %v1395, %v1393
      %v1426 = vpack.c.b16 %v1398, %v1396
      %v1427 = vpack.c.b16 %v1399, %v1397
      %v1428 = vpack.c.b16 %v1402, %v1400
      %v1429 = vpack.c.b16 %v1403, %v1401
      %v1430 = vpack.c.b16 %v1406, %v1404
      %v1431 = vpack.c.b16 %v1407, %v1405
      %v1432 = vpack.c.b16 %v1410, %v1408
      %v1433 = vpack.c.b16 %v1411, %v1409
      %v1434 = vpack.c.b16 %v1414, %v1412
      %v1435 = vpack.c.b16 %v1415, %v1413
      %v1436 = vpack.c.b16 %v1418, %v1416
      %v1437 = vpack.c.b16 %v1419, %v1417
      %v1457 = vsel %vm818, %v1364, 0
      %1459 = vmatprep.subr.bf16.mxu0 %v1435
      %1460 = vmatpush1.bf16.msra.mxu0 %v1434
      %1461 = vmatprep.subr.bf16.mxu0 %v1433
      %1462 = vmatpush1.bf16.msra.mxu0 %v1432
      %1463 = vmatprep.subr.bf16.mxu0 %v1431
      %1464 = vmatpush1.bf16.msra.mxu0 %v1430
      %1465 = vmatprep.subr.bf16.mxu0 %v1429
      %1466 = vmatpush1.bf16.msra.mxu0 %v1428
      %1467 = vmatprep.subr.bf16.mxu0 %v1427
      %1468 = vmatpush1.bf16.msra.mxu0 %v1426
      %1469 = vmatprep.subr.bf16.mxu0 %v1425
      %1470 = vmatpush1.bf16.msra.mxu0 %v1424
      %1471 = vmatprep.subr.bf16.mxu0 %v1423
      %1472 = vmatpush1.bf16.msra.mxu0 %v1422
      %1473 = vmatprep.subr.bf16.mxu0 %v1421
      %1474 = vmatpush1.bf16.msra.mxu0 %v1420
      %1475 = vmatprep.subr.bf16.mxu0 0
      %1476 = vmatpush2.bf16.msra.mxu0 0
      %1477 = vmatprep.subr.bf16.mxu0 0
      %1478 = vmatpush2.bf16.msra.mxu0 0
      %1479 = vmatprep.subr.bf16.mxu0 0
      %1480 = vmatpush2.bf16.msra.mxu0 0
      %1481 = vmatprep.subr.bf16.mxu0 0
      %1482 = vmatpush2.bf16.msra.mxu0 0
      %1483 = vmatprep.subr.bf16.mxu0 0
      %1484 = vmatpush2.bf16.msra.mxu0 0
      %1485 = vmatprep.subr.bf16.mxu0 0
      %1486 = vmatpush2.bf16.msra.mxu0 0
      %1487 = vmatprep.subr.bf16.mxu0 0
      %1488 = vmatpush2.bf16.msra.mxu0 0
      %1489 = vmatprep.subr.bf16.mxu0 %v1437
      %1490 = vmatpush2.bf16.msra.mxu0 %v1436
      %1491 = vmatprep.mubr.bf16.mxu0 %v1457
      %1492 = vmatmul.mubr.bf16.gmra.mxu0 %v1363
      %v1493 = vpop.f32.mrf.mxu0
      %v1494 = vadd.f32 %v1350, %v1493
      %v1495 = vpop.f32.mrf.mxu0
      %v1496 = vadd.f32 %v1350, %v1495
      %v1497 = vpop.f32.mrf.mxu0
      %v1498 = vadd.f32 %v1355, %v1497
      %v1499 = vpop.f32.mrf.mxu0
      %v1500 = vadd.f32 %v1355, %v1499
      %1501 = vdwg.mxu0
      %v1502 = vmax.f32 %v1494, 0.0
      %v1503 = vmax.f32 %v1496, 0.0
      %v1504 = vmax.f32 %v1498, 0.0
      %v1505 = vmax.f32 %v1500, 0.0
      %v1506 = vadd.f32 %v1502, 0.0
      %v1507 = vadd.f32 %v1503, 0.0
      %v1508 = vadd.f32 %v1504, 0.0
      %v1509 = vadd.f32 %v1505, 0.0
      %v1510 = vld [vmem:[#allocation2] sm:$0xff]
      %v1511 = vld [vmem:[#allocation2 + $0xc] sm:$0xff]
      %vm1512 = vcmp.ge.s32.totalorder %v991, 3
      %vm1513 = vcmp.ge.s32.totalorder %v992, 3
      %v1514 = vsel %vm1512, 1, 0
      %v1515 = vsel %vm1513, 1, 0
      %vm1516 = vcmp.eq.s32.totalorder %v1514, 1
      %vm1517 = vcmp.eq.s32.totalorder %v1515, 1
      %vm1518 = vmpackc.low %vm1517, %vm1516
      %v1519 = vsel %vm1518, 65537, 0
      %1520 = vrot.lane.b32.xlu0 %v1519, 30
      %v1521 = vpop.permute.xlu0 %1520
      %v1522 = vrot.slane %v1521, 4
      %vm1523 = vcmask 244736
      %v1524 = vsel %vm1523, %v1522, %v1521
      %vm1525 = vcmp.ne.s16.totalorder %v1524, 0
      %v1526 = vsel %vm1525, %v1510, 0
      %v1527 = vsel %vm1525, %v1511, 0
      %1530 = vrot.lane.b32.xlu0 %v1526, 98
      %v1531 = vpop.permute.xlu0 %1530
      %1532 = vrot.lane.b32.xlu0 %v1527, 98
      %v1533 = vpop.permute.xlu0 %1532
      %v1534 = vrot.slane %v1531, 4
      %v1535 = vrot.slane %v1533, 4
      %vm1536 = vcmask 801792
      %v1537 = vsel %vm1536, %v1531, %v1534
      %v1538 = vsel %vm1536, %v1533, %v1535
      %1541 = vst.msk [vmem:[#allocation3] sm:$0xff] %vm1026, %v1537
      %1542 = vst.msk [vmem:[#allocation3 + $0x8] sm:$0xff] %vm1026, %v1538
      %v1543 = vld [vmem:[#allocation2] sm:$0xff]
      %v1544 = vld [vmem:[#allocation2 + $0xc] sm:$0xff]
      %1547 = vrot.lane.b32.xlu0 %v1543, 95
      %v1548 = vpop.permute.xlu0 %1547
      %1549 = vrot.lane.b32.xlu0 %v1544, 95
      %v1550 = vpop.permute.xlu0 %1549
      %v1551 = vrot.slane %v1548, 4
      %v1552 = vrot.slane %v1550, 4
      %vm1553 = vcmask 777216
      %v1554 = vsel %vm1553, %v1548, %v1551
      %v1555 = vsel %vm1553, %v1550, %v1552
      %1558 = vst.msk [vmem:[#allocation3 + $0x10] sm:$0xff] %vm1026, %v1554
      %1559 = vst.msk [vmem:[#allocation3 + $0x18] sm:$0xff] %vm1026, %v1555
      %v1560 = vld [vmem:[#allocation2] sm:$0xff]
      %v1561 = vld [vmem:[#allocation2 + $0xc] sm:$0xff]
      %vm1562 = vcmp.lt.s32.totalorder %v991, 11
      %vm1563 = vcmp.lt.s32.totalorder %v992, 11
      %v1564 = vsel %vm1562, 1, 0
      %v1565 = vsel %vm1563, 1, 0
      %vm1566 = vcmp.eq.s32.totalorder %v1564, 1
      %vm1567 = vcmp.eq.s32.totalorder %v1565, 1
      %vm1568 = vmpackc.low %vm1567, %vm1566
      %v1569 = vsel %vm1568, 65537, 0
      %1570 = vrot.lane.b32.xlu0 %v1569, 36
      %v1571 = vpop.permute.xlu0 %1570
      %v1572 = vrot.slane %v1571, 4
      %vm1573 = vcmask 293888
      %v1574 = vsel %vm1573, %v1572, %v1571
      %vm1575 = vcmp.ne.s16.totalorder %v1574, 0
      %v1576 = vsel %vm1575, %v1560, 0
      %v1577 = vsel %vm1575, %v1561, 0
      %1580 = vrot.lane.b32.xlu0 %v1576, 92
      %v1581 = vpop.permute.xlu0 %1580
      %1582 = vrot.lane.b32.xlu0 %v1577, 92
      %v1583 = vpop.permute.xlu0 %1582
      %v1584 = vrot.slane %v1581, 4
      %v1585 = vrot.slane %v1583, 4
      %vm1586 = vcmask 752640
      %v1587 = vsel %vm1586, %v1581, %v1584
      %v1588 = vsel %vm1586, %v1583, %v1585
      %1591 = vst.msk [vmem:[#allocation3 + $0x20] sm:$0xff] %vm1026, %v1587
      %1592 = vst.msk [vmem:[#allocation3 + $0x28] sm:$0xff] %vm1026, %v1588
      %v1593 = vld [vmem:[#allocation2] sm:$0xff]
      %v1594 = vld [vmem:[#allocation2 + $0x8] sm:$0xf]
      %v1595 = vld [vmem:[#allocation2 + $0xc] sm:$0xff]
      %v1596 = vld [vmem:[#allocation2 + $0x14] sm:$0xf]
      %1597 = vrot.lane.b32.xlu0 %v1519, 72
      %v1598 = vpop.permute.xlu0 %1597
      %v1599 = vrot.slane %v1598, 4
      %vm1600 = vcmask 588800
      %v1601 = vsel %vm1600, %v1599, %v1598
      %vm1602 = vcmp.ne.s16.totalorder %v1601, 0
      %vm1603 = vcmp.ne.s16.totalorder %v1599, 0
      %v1604 = vsel %vm1602, %v1593, 0
      %v1605 = vsel %vm1603, %v1594, 0
      %v1606 = vsel %vm1602, %v1595, 0
      %v1607 = vsel %vm1603, %v1596, 0
      %1612 = vrot.lane.b32.xlu0 %v1604, 56
      %v1613 = vpop.permute.xlu0 %1612
      %1614 = vrot.lane.b32.xlu0 %v1605, 56
      %v1615 = vpop.permute.xlu0 %1614
      %1616 = vrot.lane.b32.xlu0 %v1606, 56
      %v1617 = vpop.permute.xlu0 %1616
      %1618 = vrot.lane.b32.xlu0 %v1607, 56
      %v1619 = vpop.permute.xlu0 %1618
      %v1620 = vrot.slane %v1613, 4
      %v1621 = vrot.slane %v1615, 4
      %v1622 = vrot.slane %v1617, 4
      %v1623 = vrot.slane %v1619, 4
      %v1624 = vsel %vm1049, %v1620, %v1621
      %vm1625 = vcmask 457728
      %v1626 = vsel %vm1625, %v1613, %v1624
      %v1627 = vsel %vm1049, %v1622, %v1623
      %v1628 = vsel %vm1625, %v1617, %v1627
      %1631 = vst.msk [vmem:[#allocation3 + $0x30] sm:$0xff] %vm1026, %v1626
      %1632 = vst.msk [vmem:[#allocation3 + $0x38] sm:$0xff] %vm1026, %v1628
      %v1633 = vld [vmem:[#allocation2] sm:$0xff]
      %v1634 = vld [vmem:[#allocation2 + $0x8] sm:$0xf]
      %v1635 = vld [vmem:[#allocation2 + $0xc] sm:$0xff]
      %v1636 = vld [vmem:[#allocation2 + $0x14] sm:$0xf]
      %1641 = vrot.lane.b32.xlu0 %v1633, 53
      %v1642 = vpop.permute.xlu0 %1641
      %1643 = vrot.lane.b32.xlu0 %v1634, 53
      %v1644 = vpop.permute.xlu0 %1643
      %1645 = vrot.lane.b32.xlu0 %v1635, 53
      %v1646 = vpop.permute.xlu0 %1645
      %1647 = vrot.lane.b32.xlu0 %v1636, 53
      %v1648 = vpop.permute.xlu0 %1647
      %v1649 = vrot.slane %v1642, 4
      %v1650 = vrot.slane %v1644, 4
      %v1651 = vrot.slane %v1646, 4
      %v1652 = vrot.slane %v1648, 4
      %v1653 = vsel %vm1049, %v1649, %v1650
      %v1654 = vsel %vm1168, %v1642, %v1653
      %v1655 = vsel %vm1049, %v1651, %v1652
      %v1656 = vsel %vm1168, %v1646, %v1655
      %1659 = vst.msk [vmem:[#allocation3 + $0x40] sm:$0xff] %vm1026, %v1654
      %1660 = vst.msk [vmem:[#allocation3 + $0x48] sm:$0xff] %vm1026, %v1656
      %v1661 = vld [vmem:[#allocation2] sm:$0xff]
      %v1662 = vld [vmem:[#allocation2 + $0x8] sm:$0xf]
      %v1663 = vld [vmem:[#allocation2 + $0xc] sm:$0xff]
      %v1664 = vld [vmem:[#allocation2 + $0x14] sm:$0xf]
      %1665 = vrot.lane.b32.xlu0 %v1569, 78
      %v1666 = vpop.permute.xlu0 %1665
      %v1667 = vrot.slane %v1666, 4
      %vm1668 = vcmask 637952
      %v1669 = vsel %vm1668, %v1667, %v1666
      %vm1670 = vcmp.ne.s16.totalorder %v1669, 0
      %vm1671 = vcmp.ne.s16.totalorder %v1667, 0
      %v1672 = vsel %vm1670, %v1661, 0
      %v1673 = vsel %vm1671, %v1662, 0
      %v1674 = vsel %vm1670, %v1663, 0
      %v1675 = vsel %vm1671, %v1664, 0
      %1680 = vrot.lane.b32.xlu0 %v1672, 50
      %v1681 = vpop.permute.xlu0 %1680
      %1682 = vrot.lane.b32.xlu0 %v1673, 50
      %v1683 = vpop.permute.xlu0 %1682
      %1684 = vrot.lane.b32.xlu0 %v1674, 50
      %v1685 = vpop.permute.xlu0 %1684
      %1686 = vrot.lane.b32.xlu0 %v1675, 50
      %v1687 = vpop.permute.xlu0 %1686
      %v1688 = vrot.slane %v1681, 4
      %v1689 = vrot.slane %v1683, 4
      %v1690 = vrot.slane %v1685, 4
      %v1691 = vrot.slane %v1687, 4
      %v1692 = vsel %vm1049, %v1688, %v1689
      %vm1693 = vcmask 408576
      %v1694 = vsel %vm1693, %v1681, %v1692
      %v1695 = vsel %vm1049, %v1690, %v1691
      %v1696 = vsel %vm1693, %v1685, %v1695
      %1699 = vst.msk [vmem:[#allocation3 + $0x50] sm:$0xff] %vm1026, %v1694
      %1700 = vst.msk [vmem:[#allocation3 + $0x58] sm:$0xff] %vm1026, %v1696
      %v1701 = vld [vmem:[#allocation2] sm:$0xff]
      %v1702 = vld [vmem:[#allocation2 + $0x8] sm:$0xf]
      %v1703 = vld [vmem:[#allocation2 + $0xc] sm:$0xff]
      %v1704 = vld [vmem:[#allocation2 + $0x14] sm:$0xf]
      %1705 = vrot.lane.b32.xlu0 %v1519, 114
      %v1706 = vpop.permute.xlu0 %1705
      %v1707 = vrot.slane %v1706, 4
      %vm1708 = vcmask 932864
      %v1709 = vsel %vm1708, %v1707, %v1706
      %vm1710 = vcmp.ne.s16.totalorder %v1709, 0
      %vm1711 = vcmp.ne.s16.totalorder %v1707, 0
      %v1712 = vsel %vm1710, %v1701, 0
      %v1713 = vsel %vm1711, %v1702, 0
      %v1714 = vsel %vm1710, %v1703, 0
      %v1715 = vsel %vm1711, %v1704, 0
      %1720 = vrot.lane.b32.xlu0 %v1712, 14
      %v1721 = vpop.permute.xlu0 %1720
      %1722 = vrot.lane.b32.xlu0 %v1713, 14
      %v1723 = vpop.permute.xlu0 %1722
      %1724 = vrot.lane.b32.xlu0 %v1714, 14
      %v1725 = vpop.permute.xlu0 %1724
      %1726 = vrot.lane.b32.xlu0 %v1715, 14
      %v1727 = vpop.permute.xlu0 %1726
      %v1728 = vrot.slane %v1721, 4
      %v1729 = vrot.slane %v1723, 4
      %v1730 = vrot.slane %v1725, 4
      %v1731 = vrot.slane %v1727, 4
      %v1732 = vsel %vm1049, %v1728, %v1729
      %vm1733 = vcmask 113664
      %v1734 = vsel %vm1733, %v1721, %v1732
      %v1735 = vsel %vm1049, %v1730, %v1731
      %v1736 = vsel %vm1733, %v1725, %v1735
      %1739 = vst.msk [vmem:[#allocation3 + $0x60] sm:$0xff] %vm1026, %v1734
      %1740 = vst.msk [vmem:[#allocation3 + $0x68] sm:$0xff] %vm1026, %v1736
      %v1741 = vld [vmem:[#allocation2] sm:$0xff]
      %v1742 = vld [vmem:[#allocation2 + $0x8] sm:$0xf]
      %v1743 = vld [vmem:[#allocation2 + $0xc] sm:$0xff]
      %v1744 = vld [vmem:[#allocation2 + $0x14] sm:$0xf]
      %1749 = vrot.lane.b32.xlu0 %v1741, 11
      %v1750 = vpop.permute.xlu0 %1749
      %1751 = vrot.lane.b32.xlu0 %v1742, 11
      %v1752 = vpop.permute.xlu0 %1751
      %1753 = vrot.lane.b32.xlu0 %v1743, 11
      %v1754 = vpop.permute.xlu0 %1753
      %1755 = vrot.lane.b32.xlu0 %v1744, 11
      %v1756 = vpop.permute.xlu0 %1755
      %v1757 = vrot.slane %v1750, 4
      %v1758 = vrot.slane %v1752, 4
      %v1759 = vrot.slane %v1754, 4
      %v1760 = vrot.slane %v1756, 4
      %v1761 = vsel %vm1049, %v1757, %v1758
      %vm1762 = vcmask 89088
      %v1763 = vsel %vm1762, %v1750, %v1761
      %v1764 = vsel %vm1049, %v1759, %v1760
      %v1765 = vsel %vm1762, %v1754, %v1764
      %1768 = vst.msk [vmem:[#allocation3 + $0x70] sm:$0xff] %vm1026, %v1763
      %1769 = vst.msk [vmem:[#allocation3 + $0x78] sm:$0xff] %vm1026, %v1765
      %v1770 = vld [vmem:[#allocation2] sm:$0xff]
      %v1771 = vld [vmem:[#allocation2 + $0x8] sm:$0xf]
      %v1772 = vld [vmem:[#allocation2 + $0xc] sm:$0xff]
      %v1773 = vld [vmem:[#allocation2 + $0x14] sm:$0xf]
      %1774 = vrot.lane.b32.xlu0 %v1569, 120
      %v1775 = vpop.permute.xlu0 %1774
      %v1776 = vrot.slane %v1775, 4
      %vm1777 = vcmask 982016
      %v1778 = vsel %vm1777, %v1776, %v1775
      %vm1779 = vcmp.ne.s16.totalorder %v1778, 0
      %vm1780 = vcmp.ne.s16.totalorder %v1776, 0
      %v1781 = vsel %vm1779, %v1770, 0
      %v1782 = vsel %vm1780, %v1771, 0
      %v1783 = vsel %vm1779, %v1772, 0
      %v1784 = vsel %vm1780, %v1773, 0
      %1789 = vrot.lane.b32.xlu0 %v1781, 8
      %v1790 = vpop.permute.xlu0 %1789
      %1791 = vrot.lane.b32.xlu0 %v1782, 8
      %v1792 = vpop.permute.xlu0 %1791
      %1793 = vrot.lane.b32.xlu0 %v1783, 8
      %v1794 = vpop.permute.xlu0 %1793
      %1795 = vrot.lane.b32.xlu0 %v1784, 8
      %v1796 = vpop.permute.xlu0 %1795
      %v1797 = vrot.slane %v1790, 4
      %v1798 = vrot.slane %v1792, 4
      %v1799 = vrot.slane %v1794, 4
      %v1800 = vrot.slane %v1796, 4
      %v1801 = vsel %vm1049, %v1797, %v1798
      %vm1802 = vcmask 64512
      %v1803 = vsel %vm1802, %v1790, %v1801
      %v1804 = vsel %vm1049, %v1799, %v1800
      %v1805 = vsel %vm1802, %v1794, %v1804
      %1808 = vst.msk [vmem:[#allocation3 + $0x80] sm:$0xff] %vm1026, %v1803
      %1809 = vst.msk [vmem:[#allocation3 + $0x88] sm:$0xff] %vm1026, %v1805
      %s1810 = scalar_lea.vmem %s8, 16
      %v1811 = vld [vmem:[%s1810] sm:$0xff]
      %v1812 = vld [vmem:[%s1810 + $0x8] sm:$0xff]
      %v1813 = vld [vmem:[#allocation3] sm:$0xff]
      %v1814 = vld [vmem:[#allocation3 + $0x8] sm:$0xff]
      %v1815 = vld [vmem:[#allocation3 + $0x10] sm:$0xff]
      %v1816 = vld [vmem:[#allocation3 + $0x18] sm:$0xff]
      %v1817 = vld [vmem:[#allocation3 + $0x20] sm:$0xff]
      %v1818 = vld [vmem:[#allocation3 + $0x28] sm:$0xff]
      %v1819 = vld [vmem:[#allocation3 + $0x30] sm:$0xff]
      %v1820 = vld [vmem:[#allocation3 + $0x38] sm:$0xff]
      %v1821 = vld [vmem:[#allocation3 + $0x40] sm:$0xff]
      %v1822 = vld [vmem:[#allocation3 + $0x48] sm:$0xff]
      %v1823 = vld [vmem:[#allocation3 + $0x50] sm:$0xff]
      %v1824 = vld [vmem:[#allocation3 + $0x58] sm:$0xff]
      %v1825 = vld [vmem:[#allocation3 + $0x60] sm:$0xff]
      %v1826 = vld [vmem:[#allocation3 + $0x68] sm:$0xff]
      %v1827 = vld [vmem:[#allocation3 + $0x70] sm:$0xff]
      %v1828 = vld [vmem:[#allocation3 + $0x78] sm:$0xff]
      %v1829 = vld [vmem:[#allocation3 + $0x80] sm:$0xff]
      %v1830 = vld [vmem:[#allocation3 + $0x88] sm:$0xff]
      %s1831 = scalar_lea.vmem %s9, 16
      %v1832 = vld [vmem:[%s1831] sm:$0xff]
      %v1833 = vld [vmem:[%s1831 + $0x8] sm:$0xff]
      %1835 = vset.pattern.permute.xlu0 0
      %1836 = vperm.xlu0 %1835, %v1832
      %v1837 = vpop.permute.xlu0 %1836
      %1840 = vset.pattern.permute.xlu0 0
      %1841 = vperm.xlu0 %1840, %v1833
      %v1842 = vpop.permute.xlu0 %1841
      %v1846 = vunpack.c.l.b16 %v1811
      %v1847 = vunpack.c.h.b16 %v1811
      %v1848 = vunpack.c.l.b16 %v1812
      %v1849 = vunpack.c.h.b16 %v1812
      %v1850 = vpack.c.b16 %v1848, %v1846
      %v1851 = vpack.c.b16 %v1849, %v1847
      %v1871 = vunpack.c.l.b16 %v1813
      %v1872 = vunpack.c.h.b16 %v1813
      %v1873 = vunpack.c.l.b16 %v1814
      %v1874 = vunpack.c.h.b16 %v1814
      %v1875 = vunpack.c.l.b16 %v1815
      %v1876 = vunpack.c.h.b16 %v1815
      %v1877 = vunpack.c.l.b16 %v1816
      %v1878 = vunpack.c.h.b16 %v1816
      %v1879 = vunpack.c.l.b16 %v1817
      %v1880 = vunpack.c.h.b16 %v1817
      %v1881 = vunpack.c.l.b16 %v1818
      %v1882 = vunpack.c.h.b16 %v1818
      %v1883 = vunpack.c.l.b16 %v1819
      %v1884 = vunpack.c.h.b16 %v1819
      %v1885 = vunpack.c.l.b16 %v1820
      %v1886 = vunpack.c.h.b16 %v1820
      %v1887 = vunpack.c.l.b16 %v1821
      %v1888 = vunpack.c.h.b16 %v1821
      %v1889 = vunpack.c.l.b16 %v1822
      %v1890 = vunpack.c.h.b16 %v1822
      %v1891 = vunpack.c.l.b16 %v1823
      %v1892 = vunpack.c.h.b16 %v1823
      %v1893 = vunpack.c.l.b16 %v1824
      %v1894 = vunpack.c.h.b16 %v1824
      %v1895 = vunpack.c.l.b16 %v1825
      %v1896 = vunpack.c.h.b16 %v1825
      %v1897 = vunpack.c.l.b16 %v1826
      %v1898 = vunpack.c.h.b16 %v1826
      %v1899 = vunpack.c.l.b16 %v1827
      %v1900 = vunpack.c.h.b16 %v1827
      %v1901 = vunpack.c.l.b16 %v1828
      %v1902 = vunpack.c.h.b16 %v1828
      %v1903 = vunpack.c.l.b16 %v1829
      %v1904 = vunpack.c.h.b16 %v1829
      %v1905 = vunpack.c.l.b16 %v1830
      %v1906 = vunpack.c.h.b16 %v1830
      %v1907 = vpack.c.b16 %v1873, %v1871
      %v1908 = vpack.c.b16 %v1874, %v1872
      %v1909 = vpack.c.b16 %v1877, %v1875
      %v1910 = vpack.c.b16 %v1878, %v1876
      %v1911 = vpack.c.b16 %v1881, %v1879
      %v1912 = vpack.c.b16 %v1882, %v1880
      %v1913 = vpack.c.b16 %v1885, %v1883
      %v1914 = vpack.c.b16 %v1886, %v1884
      %v1915 = vpack.c.b16 %v1889, %v1887
      %v1916 = vpack.c.b16 %v1890, %v1888
      %v1917 = vpack.c.b16 %v1893, %v1891
      %v1918 = vpack.c.b16 %v1894, %v1892
      %v1919 = vpack.c.b16 %v1897, %v1895
      %v1920 = vpack.c.b16 %v1898, %v1896
      %v1921 = vpack.c.b16 %v1901, %v1899
      %v1922 = vpack.c.b16 %v1902, %v1900
      %v1923 = vpack.c.b16 %v1905, %v1903
      %v1924 = vpack.c.b16 %v1906, %v1904
      %v1944 = vsel %vm818, %v1851, 0
      %1946 = vmatprep.subr.bf16.mxu0 %v1922
      %1947 = vmatpush1.bf16.msra.mxu0 %v1921
      %1948 = vmatprep.subr.bf16.mxu0 %v1920
      %1949 = vmatpush1.bf16.msra.mxu0 %v1919
      %1950 = vmatprep.subr.bf16.mxu0 %v1918
      %1951 = vmatpush1.bf16.msra.mxu0 %v1917
      %1952 = vmatprep.subr.bf16.mxu0 %v1916
      %1953 = vmatpush1.bf16.msra.mxu0 %v1915
      %1954 = vmatprep.subr.bf16.mxu0 %v1914
      %1955 = vmatpush1.bf16.msra.mxu0 %v1913
      %1956 = vmatprep.subr.bf16.mxu0 %v1912
      %1957 = vmatpush1.bf16.msra.mxu0 %v1911
      %1958 = vmatprep.subr.bf16.mxu0 %v1910
      %1959 = vmatpush1.bf16.msra.mxu0 %v1909
      %1960 = vmatprep.subr.bf16.mxu0 %v1908
      %1961 = vmatpush1.bf16.msra.mxu0 %v1907
      %1962 = vmatprep.subr.bf16.mxu0 0
      %1963 = vmatpush2.bf16.msra.mxu0 0
      %1964 = vmatprep.subr.bf16.mxu0 0
      %1965 = vmatpush2.bf16.msra.mxu0 0
      %1966 = vmatprep.subr.bf16.mxu0 0
      %1967 = vmatpush2.bf16.msra.mxu0 0
      %1968 = vmatprep.subr.bf16.mxu0 0
      %1969 = vmatpush2.bf16.msra.mxu0 0
      %1970 = vmatprep.subr.bf16.mxu0 0
      %1971 = vmatpush2.bf16.msra.mxu0 0
      %1972 = vmatprep.subr.bf16.mxu0 0
      %1973 = vmatpush2.bf16.msra.mxu0 0
      %1974 = vmatprep.subr.bf16.mxu0 0
      %1975 = vmatpush2.bf16.msra.mxu0 0
      %1976 = vmatprep.subr.bf16.mxu0 %v1924
      %1977 = vmatpush2.bf16.msra.mxu0 %v1923
      %1978 = vmatprep.mubr.bf16.mxu0 %v1944
      %1979 = vmatmul.mubr.bf16.gmra.mxu0 %v1850
      %v1980 = vpop.f32.mrf.mxu0
      %v1981 = vadd.f32 %v1837, %v1980
      %v1982 = vpop.f32.mrf.mxu0
      %v1983 = vadd.f32 %v1837, %v1982
      %v1984 = vpop.f32.mrf.mxu0
      %v1985 = vadd.f32 %v1842, %v1984
      %v1986 = vpop.f32.mrf.mxu0
      %v1987 = vadd.f32 %v1842, %v1986
      %1988 = vdwg.mxu0
      %v1989 = vmax.f32 %v1981, 0.0
      %v1990 = vmax.f32 %v1983, 0.0
      %v1991 = vmax.f32 %v1985, 0.0
      %v1992 = vmax.f32 %v1987, 0.0
      %v1993 = vadd.f32 %v1506, %v1989
      %v1994 = vadd.f32 %v1507, %v1990
      %v1995 = vadd.f32 %v1508, %v1991
      %v1996 = vadd.f32 %v1509, %v1992
      %v1997 = vld [vmem:[#allocation2] sm:$0xff]
      %v1998 = vld [vmem:[#allocation2 + $0xc] sm:$0xff]
      %vm1999 = vcmp.ge.s32.totalorder %v991, 5
      %vm2000 = vcmp.ge.s32.totalorder %v992, 5
      %v2001 = vsel %vm1999, 1, 0
      %v2002 = vsel %vm2000, 1, 0
      %vm2003 = vcmp.eq.s32.totalorder %v2001, 1
      %vm2004 = vcmp.eq.s32.totalorder %v2002, 1
      %vm2005 = vmpackc.low %vm2004, %vm2003
      %v2006 = vsel %vm2005, %v1997, 0
      %v2007 = vsel %vm2005, %v1998, 0
      %2008 = vst.msk [vmem:[#allocation3] sm:$0xff] %vm1026, %v2006
      %2009 = vst.msk [vmem:[#allocation3 + $0x8] sm:$0xff] %vm1026, %v2007
      %v2010 = vld [vmem:[#allocation2] sm:$0xff]
      %v2011 = vld [vmem:[#allocation2 + $0xc] sm:$0xff]
      %2014 = vrot.lane.b32.xlu0 %v2010, 123
      %v2015 = vpop.permute.xlu0 %2014
      %2016 = vrot.lane.b32.xlu0 %v2011, 123
      %v2017 = vpop.permute.xlu0 %2016
      %v2018 = vrot.slane %v2015, 4
      %v2019 = vrot.slane %v2017, 4
      %vm2020 = vcmask 1006592
      %v2021 = vsel %vm2020, %v2015, %v2018
      %v2022 = vsel %vm2020, %v2017, %v2019
      %2025 = vst.msk [vmem:[#allocation3 + $0x10] sm:$0xff] %vm1026, %v2021
      %2026 = vst.msk [vmem:[#allocation3 + $0x18] sm:$0xff] %vm1026, %v2022
      %v2027 = vld [vmem:[#allocation2] sm:$0xff]
      %v2028 = vld [vmem:[#allocation2 + $0xc] sm:$0xff]
      %vm2029 = vcmp.lt.s32.totalorder %v991, 9
      %vm2030 = vcmp.lt.s32.totalorder %v992, 9
      %v2031 = vsel %vm2029, 1, 0
      %v2032 = vsel %vm2030, 1, 0
      %vm2033 = vcmp.eq.s32.totalorder %v2031, 1
      %vm2034 = vcmp.eq.s32.totalorder %v2032, 1
      %vm2035 = vmpackc.low %vm2034, %vm2033
      %v2036 = vsel %vm2035, 65537, 0
      %2037 = vrot.lane.b32.xlu0 %v2036, 10
      %v2038 = vpop.permute.xlu0 %2037
      %v2039 = vrot.slane %v2038, 4
      %vm2040 = vcmask 80896
      %v2041 = vsel %vm2040, %v2039, %v2038
      %vm2042 = vcmp.ne.s16.totalorder %v2041, 0
      %v2043 = vsel %vm2042, %v2027, 0
      %v2044 = vsel %vm2042, %v2028, 0
      %2047 = vrot.lane.b32.xlu0 %v2043, 118
      %v2048 = vpop.permute.xlu0 %2047
      %2049 = vrot.lane.b32.xlu0 %v2044, 118
      %v2050 = vpop.permute.xlu0 %2049
      %v2051 = vrot.slane %v2048, 4
      %v2052 = vrot.slane %v2050, 4
      %vm2053 = vcmask 965632
      %v2054 = vsel %vm2053, %v2048, %v2051
      %v2055 = vsel %vm2053, %v2050, %v2052
      %2058 = vst.msk [vmem:[#allocation3 + $0x20] sm:$0xff] %vm1026, %v2054
      %2059 = vst.msk [vmem:[#allocation3 + $0x28] sm:$0xff] %vm1026, %v2055
      %v2060 = vld [vmem:[#allocation2] sm:$0xff]
      %v2061 = vld [vmem:[#allocation2 + $0x8] sm:$0xf]
      %v2062 = vld [vmem:[#allocation2 + $0xc] sm:$0xff]
      %v2063 = vld [vmem:[#allocation2 + $0x14] sm:$0xf]
      %v2064 = vsel %vm2005, 65537, 0
      %2065 = vrot.lane.b32.xlu0 %v2064, 70
      %v2066 = vpop.permute.xlu0 %2065
      %v2067 = vrot.slane %v2066, 4
      %vm2068 = vcmask 572416
      %v2069 = vsel %vm2068, %v2067, %v2066
      %vm2070 = vcmp.ne.s16.totalorder %v2069, 0
      %vm2071 = vcmp.ne.s16.totalorder %v2067, 0
      %v2072 = vsel %vm2070, %v2060, 0
      %v2073 = vsel %vm2071, %v2061, 0
      %v2074 = vsel %vm2070, %v2062, 0
      %v2075 = vsel %vm2071, %v2063, 0
      %2080 = vrot.lane.b32.xlu0 %v2072, 58
      %v2081 = vpop.permute.xlu0 %2080
      %2082 = vrot.lane.b32.xlu0 %v2073, 58
      %v2083 = vpop.permute.xlu0 %2082
      %2084 = vrot.lane.b32.xlu0 %v2074, 58
      %v2085 = vpop.permute.xlu0 %2084
      %2086 = vrot.lane.b32.xlu0 %v2075, 58
      %v2087 = vpop.permute.xlu0 %2086
      %v2088 = vrot.slane %v2081, 4
      %v2089 = vrot.slane %v2083, 4
      %v2090 = vrot.slane %v2085, 4
      %v2091 = vrot.slane %v2087, 4
      %v2092 = vsel %vm1049, %v2088, %v2089
      %vm2093 = vcmask 474112
      %v2094 = vsel %vm2093, %v2081, %v2092
      %v2095 = vsel %vm1049, %v2090, %v2091
      %v2096 = vsel %vm2093, %v2085, %v2095
      %2099 = vst.msk [vmem:[#allocation3 + $0x30] sm:$0xff] %vm1026, %v2094
      %2100 = vst.msk [vmem:[#allocation3 + $0x38] sm:$0xff] %vm1026, %v2096
      %v2101 = vld [vmem:[#allocation2] sm:$0xff]
      %v2102 = vld [vmem:[#allocation2 + $0x8] sm:$0xf]
      %v2103 = vld [vmem:[#allocation2 + $0xc] sm:$0xff]
      %v2104 = vld [vmem:[#allocation2 + $0x14] sm:$0xf]
      %2109 = vrot.lane.b32.xlu0 %v2101, 53
      %v2110 = vpop.permute.xlu0 %2109
      %2111 = vrot.lane.b32.xlu0 %v2102, 53
      %v2112 = vpop.permute.xlu0 %2111
      %2113 = vrot.lane.b32.xlu0 %v2103, 53
      %v2114 = vpop.permute.xlu0 %2113
      %2115 = vrot.lane.b32.xlu0 %v2104, 53
      %v2116 = vpop.permute.xlu0 %2115
      %v2117 = vrot.slane %v2110, 4
      %v2118 = vrot.slane %v2112, 4
      %v2119 = vrot.slane %v2114, 4
      %v2120 = vrot.slane %v2116, 4
      %v2121 = vsel %vm1049, %v2117, %v2118
      %v2122 = vsel %vm1168, %v2110, %v2121
      %v2123 = vsel %vm1049, %v2119, %v2120
      %v2124 = vsel %vm1168, %v2114, %v2123
      %2127 = vst.msk [vmem:[#allocation3 + $0x40] sm:$0xff] %vm1026, %v2122
      %2128 = vst.msk [vmem:[#allocation3 + $0x48] sm:$0xff] %vm1026, %v2124
      %v2129 = vld [vmem:[#allocation2] sm:$0xff]
      %v2130 = vld [vmem:[#allocation2 + $0x8] sm:$0xf]
      %v2131 = vld [vmem:[#allocation2 + $0xc] sm:$0xff]
      %v2132 = vld [vmem:[#allocation2 + $0x14] sm:$0xf]
      %2133 = vrot.lane.b32.xlu0 %v2036, 80
      %v2134 = vpop.permute.xlu0 %2133
      %v2135 = vrot.slane %v2134, 4
      %vm2136 = vcmask 654336
      %v2137 = vsel %vm2136, %v2135, %v2134
      %vm2138 = vcmp.ne.s16.totalorder %v2137, 0
      %vm2139 = vcmp.ne.s16.totalorder %v2135, 0
      %v2140 = vsel %vm2138, %v2129, 0
      %v2141 = vsel %vm2139, %v2130, 0
      %v2142 = vsel %vm2138, %v2131, 0
      %v2143 = vsel %vm2139, %v2132, 0
      %2148 = vrot.lane.b32.xlu0 %v2140, 48
      %v2149 = vpop.permute.xlu0 %2148
      %2150 = vrot.lane.b32.xlu0 %v2141, 48
      %v2151 = vpop.permute.xlu0 %2150
      %2152 = vrot.lane.b32.xlu0 %v2142, 48
      %v2153 = vpop.permute.xlu0 %2152
      %2154 = vrot.lane.b32.xlu0 %v2143, 48
      %v2155 = vpop.permute.xlu0 %2154
      %v2156 = vrot.slane %v2149, 4
      %v2157 = vrot.slane %v2151, 4
      %v2158 = vrot.slane %v2153, 4
      %v2159 = vrot.slane %v2155, 4
      %v2160 = vsel %vm1049, %v2156, %v2157
      %vm2161 = vcmask 392192
      %v2162 = vsel %vm2161, %v2149, %v2160
      %v2163 = vsel %vm1049, %v2158, %v2159
      %v2164 = vsel %vm2161, %v2153, %v2163
      %2167 = vst.msk [vmem:[#allocation3 + $0x50] sm:$0xff] %vm1026, %v2162
      %2168 = vst.msk [vmem:[#allocation3 + $0x58] sm:$0xff] %vm1026, %v2164
      %v2169 = vld [vmem:[#allocation2 + $0x4] sm:$0xff]
      %v2170 = vld [vmem:[#allocation2 + $0x10] sm:$0xff]
      %2171 = vrot.lane.b32.xlu0 %v2064, 12
      %v2172 = vpop.permute.xlu0 %2171
      %v2173 = vrot.slane %v2172, 4
      %vm2174 = vcmask 97280
      %v2175 = vsel %vm2174, %v2173, %v2172
      %vm2176 = vcmp.ne.s16.totalorder %v2175, 0
      %v2177 = vsel %vm2176, %v2169, 0
      %v2178 = vsel %vm2176, %v2170, 0
      %2181 = vrot.lane.b32.xlu0 %v2177, 116
      %v2182 = vpop.permute.xlu0 %2181
      %2183 = vrot.lane.b32.xlu0 %v2178, 116
      %v2184 = vpop.permute.xlu0 %2183
      %v2185 = vrot.slane %v2182, 4
      %v2186 = vrot.slane %v2184, 4
      %vm2187 = vcmask 949248
      %v2188 = vsel %vm2187, %v2182, %v2185
      %v2189 = vsel %vm2187, %v2184, %v2186
      %2192 = vst.msk [vmem:[#allocation3 + $0x60] sm:$0xff] %vm1026, %v2188
      %2193 = vst.msk [vmem:[#allocation3 + $0x68] sm:$0xff] %vm1026, %v2189
      %v2194 = vld [vmem:[#allocation2 + $0x4] sm:$0xff]
      %v2195 = vld [vmem:[#allocation2 + $0x10] sm:$0xff]
      %2198 = vrot.lane.b32.xlu0 %v2194, 111
      %v2199 = vpop.permute.xlu0 %2198
      %2200 = vrot.lane.b32.xlu0 %v2195, 111
      %v2201 = vpop.permute.xlu0 %2200
      %v2202 = vrot.slane %v2199, 4
      %v2203 = vrot.slane %v2201, 4
      %vm2204 = vcmask 908288
      %v2205 = vsel %vm2204, %v2199, %v2202
      %v2206 = vsel %vm2204, %v2201, %v2203
      %2209 = vst.msk [vmem:[#allocation3 + $0x70] sm:$0xff] %vm1026, %v2205
      %2210 = vst.msk [vmem:[#allocation3 + $0x78] sm:$0xff] %vm1026, %v2206
      %v2211 = vld [vmem:[#allocation2 + $0x4] sm:$0xff]
      %v2212 = vld [vmem:[#allocation2 + $0x10] sm:$0xff]
      %2213 = vrot.lane.b32.xlu0 %v2036, 22
      %v2214 = vpop.permute.xlu0 %2213
      %v2215 = vrot.slane %v2214, 4
      %vm2216 = vcmask 179200
      %v2217 = vsel %vm2216, %v2215, %v2214
      %vm2218 = vcmp.ne.s16.totalorder %v2217, 0
      %v2219 = vsel %vm2218, %v2211, 0
      %v2220 = vsel %vm2218, %v2212, 0
      %2223 = vrot.lane.b32.xlu0 %v2219, 106
      %v2224 = vpop.permute.xlu0 %2223
      %2225 = vrot.lane.b32.xlu0 %v2220, 106
      %v2226 = vpop.permute.xlu0 %2225
      %v2227 = vrot.slane %v2224, 4
      %v2228 = vrot.slane %v2226, 4
      %vm2229 = vcmask 867328
      %v2230 = vsel %vm2229, %v2224, %v2227
      %v2231 = vsel %vm2229, %v2226, %v2228
      %2234 = vst.msk [vmem:[#allocation3 + $0x80] sm:$0xff] %vm1026, %v2230
      %2235 = vst.msk [vmem:[#allocation3 + $0x88] sm:$0xff] %vm1026, %v2231
      %s2236 = scalar_lea.vmem %s8, 32
      %v2237 = vld [vmem:[%s2236] sm:$0xff]
      %v2238 = vld [vmem:[%s2236 + $0x8] sm:$0xff]
      %v2239 = vld [vmem:[#allocation3] sm:$0xff]
      %v2240 = vld [vmem:[#allocation3 + $0x8] sm:$0xff]
      %v2241 = vld [vmem:[#allocation3 + $0x10] sm:$0xff]
      %v2242 = vld [vmem:[#allocation3 + $0x18] sm:$0xff]
      %v2243 = vld [vmem:[#allocation3 + $0x20] sm:$0xff]
      %v2244 = vld [vmem:[#allocation3 + $0x28] sm:$0xff]
      %v2245 = vld [vmem:[#allocation3 + $0x30] sm:$0xff]
      %v2246 = vld [vmem:[#allocation3 + $0x38] sm:$0xff]
      %v2247 = vld [vmem:[#allocation3 + $0x40] sm:$0xff]
      %v2248 = vld [vmem:[#allocation3 + $0x48] sm:$0xff]
      %v2249 = vld [vmem:[#allocation3 + $0x50] sm:$0xff]
      %v2250 = vld [vmem:[#allocation3 + $0x58] sm:$0xff]
      %v2251 = vld [vmem:[#allocation3 + $0x60] sm:$0xff]
      %v2252 = vld [vmem:[#allocation3 + $0x68] sm:$0xff]
      %v2253 = vld [vmem:[#allocation3 + $0x70] sm:$0xff]
      %v2254 = vld [vmem:[#allocation3 + $0x78] sm:$0xff]
      %v2255 = vld [vmem:[#allocation3 + $0x80] sm:$0xff]
      %v2256 = vld [vmem:[#allocation3 + $0x88] sm:$0xff]
      %s2257 = scalar_lea.vmem %s9, 32
      %v2258 = vld [vmem:[%s2257] sm:$0xff]
      %v2259 = vld [vmem:[%s2257 + $0x8] sm:$0xff]
      %2261 = vset.pattern.permute.xlu0 0
      %2262 = vperm.xlu0 %2261, %v2258
      %v2263 = vpop.permute.xlu0 %2262
      %2266 = vset.pattern.permute.xlu0 0
      %2267 = vperm.xlu0 %2266, %v2259
      %v2268 = vpop.permute.xlu0 %2267
      %v2272 = vunpack.c.l.b16 %v2237
      %v2273 = vunpack.c.h.b16 %v2237
      %v2274 = vunpack.c.l.b16 %v2238
      %v2275 = vunpack.c.h.b16 %v2238
      %v2276 = vpack.c.b16 %v2274, %v2272
      %v2277 = vpack.c.b16 %v2275, %v2273
      %v2297 = vunpack.c.l.b16 %v2239
      %v2298 = vunpack.c.h.b16 %v2239
      %v2299 = vunpack.c.l.b16 %v2240
      %v2300 = vunpack.c.h.b16 %v2240
      %v2301 = vunpack.c.l.b16 %v2241
      %v2302 = vunpack.c.h.b16 %v2241
      %v2303 = vunpack.c.l.b16 %v2242
      %v2304 = vunpack.c.h.b16 %v2242
      %v2305 = vunpack.c.l.b16 %v2243
      %v2306 = vunpack.c.h.b16 %v2243
      %v2307 = vunpack.c.l.b16 %v2244
      %v2308 = vunpack.c.h.b16 %v2244
      %v2309 = vunpack.c.l.b16 %v2245
      %v2310 = vunpack.c.h.b16 %v2245
      %v2311 = vunpack.c.l.b16 %v2246
      %v2312 = vunpack.c.h.b16 %v2246
      %v2313 = vunpack.c.l.b16 %v2247
      %v2314 = vunpack.c.h.b16 %v2247
      %v2315 = vunpack.c.l.b16 %v2248
      %v2316 = vunpack.c.h.b16 %v2248
      %v2317 = vunpack.c.l.b16 %v2249
      %v2318 = vunpack.c.h.b16 %v2249
      %v2319 = vunpack.c.l.b16 %v2250
      %v2320 = vunpack.c.h.b16 %v2250
      %v2321 = vunpack.c.l.b16 %v2251
      %v2322 = vunpack.c.h.b16 %v2251
      %v2323 = vunpack.c.l.b16 %v2252
      %v2324 = vunpack.c.h.b16 %v2252
      %v2325 = vunpack.c.l.b16 %v2253
      %v2326 = vunpack.c.h.b16 %v2253
      %v2327 = vunpack.c.l.b16 %v2254
      %v2328 = vunpack.c.h.b16 %v2254
      %v2329 = vunpack.c.l.b16 %v2255
      %v2330 = vunpack.c.h.b16 %v2255
      %v2331 = vunpack.c.l.b16 %v2256
      %v2332 = vunpack.c.h.b16 %v2256
      %v2333 = vpack.c.b16 %v2299, %v2297
      %v2334 = vpack.c.b16 %v2300, %v2298
      %v2335 = vpack.c.b16 %v2303, %v2301
      %v2336 = vpack.c.b16 %v2304, %v2302
      %v2337 = vpack.c.b16 %v2307, %v2305
      %v2338 = vpack.c.b16 %v2308, %v2306
      %v2339 = vpack.c.b16 %v2311, %v2309
      %v2340 = vpack.c.b16 %v2312, %v2310
      %v2341 = vpack.c.b16 %v2315, %v2313
      %v2342 = vpack.c.b16 %v2316, %v2314
      %v2343 = vpack.c.b16 %v2319, %v2317
      %v2344 = vpack.c.b16 %v2320, %v2318
      %v2345 = vpack.c.b16 %v2323, %v2321
      %v2346 = vpack.c.b16 %v2324, %v2322
      %v2347 = vpack.c.b16 %v2327, %v2325
      %v2348 = vpack.c.b16 %v2328, %v2326
      %v2349 = vpack.c.b16 %v2331, %v2329
      %v2350 = vpack.c.b16 %v2332, %v2330
      %v2370 = vsel %vm818, %v2277, 0
      %2372 = vmatprep.subr.bf16.mxu0 %v2348
      %2373 = vmatpush1.bf16.msra.mxu0 %v2347
      %2374 = vmatprep.subr.bf16.mxu0 %v2346
      %2375 = vmatpush1.bf16.msra.mxu0 %v2345
      %2376 = vmatprep.subr.bf16.mxu0 %v2344
      %2377 = vmatpush1.bf16.msra.mxu0 %v2343
      %2378 = vmatprep.subr.bf16.mxu0 %v2342
      %2379 = vmatpush1.bf16.msra.mxu0 %v2341
      %2380 = vmatprep.subr.bf16.mxu0 %v2340
      %2381 = vmatpush1.bf16.msra.mxu0 %v2339
      %2382 = vmatprep.subr.bf16.mxu0 %v2338
      %2383 = vmatpush1.bf16.msra.mxu0 %v2337
      %2384 = vmatprep.subr.bf16.mxu0 %v2336
      %2385 = vmatpush1.bf16.msra.mxu0 %v2335
      %2386 = vmatprep.subr.bf16.mxu0 %v2334
      %2387 = vmatpush1.bf16.msra.mxu0 %v2333
      %2388 = vmatprep.subr.bf16.mxu0 0
      %2389 = vmatpush2.bf16.msra.mxu0 0
      %2390 = vmatprep.subr.bf16.mxu0 0
      %2391 = vmatpush2.bf16.msra.mxu0 0
      %2392 = vmatprep.subr.bf16.mxu0 0
      %2393 = vmatpush2.bf16.msra.mxu0 0
      %2394 = vmatprep.subr.bf16.mxu0 0
      %2395 = vmatpush2.bf16.msra.mxu0 0
      %2396 = vmatprep.subr.bf16.mxu0 0
      %2397 = vmatpush2.bf16.msra.mxu0 0
      %2398 = vmatprep.subr.bf16.mxu0 0
      %2399 = vmatpush2.bf16.msra.mxu0 0
      %2400 = vmatprep.subr.bf16.mxu0 0
      %2401 = vmatpush2.bf16.msra.mxu0 0
      %2402 = vmatprep.subr.bf16.mxu0 %v2350
      %2403 = vmatpush2.bf16.msra.mxu0 %v2349
      %2404 = vmatprep.mubr.bf16.mxu0 %v2370
      %2405 = vmatmul.mubr.bf16.gmra.mxu0 %v2276
      %v2406 = vpop.f32.mrf.mxu0
      %v2407 = vadd.f32 %v2263, %v2406
      %v2408 = vpop.f32.mrf.mxu0
      %v2409 = vadd.f32 %v2263, %v2408
      %v2410 = vpop.f32.mrf.mxu0
      %v2411 = vadd.f32 %v2268, %v2410
      %v2412 = vpop.f32.mrf.mxu0
      %v2413 = vadd.f32 %v2268, %v2412
      %2414 = vdwg.mxu0
      %v2415 = vmax.f32 %v2407, 0.0
      %v2416 = vmax.f32 %v2409, 0.0
      %v2417 = vmax.f32 %v2411, 0.0
      %v2418 = vmax.f32 %v2413, 0.0
      %v2419 = vadd.f32 %v1993, %v2415
      %v2420 = vadd.f32 %v1994, %v2416
      %v2421 = vadd.f32 %v1995, %v2417
      %v2422 = vadd.f32 %v1996, %v2418
      %v2423 = vld [vmem:[%s10] sm:$0xf]
      %v2424 = vld [vmem:[%s10 + $0x4] sm:$0xf]
      %v2425 = vpack.c.bf16 %v2421, %v2419
      %v2426 = vpack.c.bf16 %v2422, %v2420
      %v2427 = vld [vmem:[%s11] sm:$0xff]
      %v2428 = vld [vmem:[%s11 + $0x8] sm:$0xff]
      %2430 = vset.pattern.permute.xlu0 0
      %2431 = vperm.xlu0 %2430, %v2427
      %v2432 = vpop.permute.xlu0 %2431
      %2435 = vset.pattern.permute.xlu0 0
      %2436 = vperm.xlu0 %2435, %v2428
      %v2437 = vpop.permute.xlu0 %2436
      %v2441 = vunpack.c.l.b16 %v2423
      %v2442 = vunpack.c.l.b16 %v2424
      %v2443 = vpack.c.b16 %v2442, %v2441
      %v2445 = vsel %vm818, %v2443, 0
      %2447 = vmatprep.subr.bf16.mxu0 0
      %2448 = vmatpush1.bf16.msra.mxu0 0
      %2449 = vmatprep.subr.bf16.mxu0 0
      %2450 = vmatpush1.bf16.msra.mxu0 0
      %2451 = vmatprep.subr.bf16.mxu0 0
      %2452 = vmatpush1.bf16.msra.mxu0 0
      %2453 = vmatprep.subr.bf16.mxu0 0
      %2454 = vmatpush1.bf16.msra.mxu0 0
      %2455 = vmatprep.subr.bf16.mxu0 0
      %2456 = vmatpush1.bf16.msra.mxu0 0
      %2457 = vmatprep.subr.bf16.mxu0 0
      %2458 = vmatpush1.bf16.msra.mxu0 0
      %2459 = vmatprep.subr.bf16.mxu0 0
      %2460 = vmatpush1.bf16.msra.mxu0 0
      %2461 = vmatprep.subr.bf16.mxu0 %v2426
      %2462 = vmatpush1.bf16.msra.mxu0 %v2425
      %2463 = vmatprep.subr.bf16.mxu0 0
      %2464 = vmatpush2.bf16.msra.mxu0 0
      %2465 = vmatprep.subr.bf16.mxu0 0
      %2466 = vmatpush2.bf16.msra.mxu0 0
      %2467 = vmatprep.subr.bf16.mxu0 0
      %2468 = vmatpush2.bf16.msra.mxu0 0
      %2469 = vmatprep.subr.bf16.mxu0 0
      %2470 = vmatpush2.bf16.msra.mxu0 0
      %2471 = vmatprep.subr.bf16.mxu0 0
      %2472 = vmatpush2.bf16.msra.mxu0 0
      %2473 = vmatprep.subr.bf16.mxu0 0
      %2474 = vmatpush2.bf16.msra.mxu0 0
      %2475 = vmatprep.subr.bf16.mxu0 0
      %2476 = vmatpush2.bf16.msra.mxu0 0
      %2477 = vmatprep.subr.bf16.mxu0 0
      %2478 = vmatpush2.bf16.msra.mxu0 0
      %2479 = vmatprep.mubr.bf16.mxu0 0
      %2480 = vmatmul.mubr.bf16.gmra.mxu0 %v2445
      %v2481 = vpop.f32.mrf.mxu0
      %v2482 = vadd.f32 %v2432, %v2481
      %v2483 = vpop.f32.mrf.mxu0
      %v2484 = vadd.f32 %v2432, %v2483
      %v2485 = vpop.f32.mrf.mxu0
      %v2486 = vadd.f32 %v2437, %v2485
      %v2487 = vpop.f32.mrf.mxu0
      %v2488 = vadd.f32 %v2437, %v2487
      %2489 = vdwg.mxu0
      %v2490 = vmax.f32 %v2482, 0.0
      %v2491 = vmax.f32 %v2484, 0.0
      %v2492 = vmax.f32 %v2486, 0.0
      %v2493 = vmax.f32 %v2488, 0.0
      %v2494 = vld [vmem:[%s12] sm:$0xf]
      %v2495 = vld [vmem:[%s12 + $0x4] sm:$0xf]
      %v2496 = vpack.c.bf16 %v2492, %v2490
      %v2497 = vpack.c.bf16 %v2493, %v2491
      %v2498 = vld [vmem:[%s13] sm:$0xff]
      %v2499 = vld [vmem:[%s13 + $0x8] sm:$0x7f]
      %2501 = vset.pattern.permute.xlu0 0
      %2502 = vperm.xlu0 %2501, %v2498
      %v2503 = vpop.permute.xlu0 %2502
      %2506 = vset.pattern.permute.xlu0 0
      %2507 = vperm.xlu0 %2506, %v2499
      %v2508 = vpop.permute.xlu0 %2507
      %v2512 = vunpack.c.l.b16 %v2494
      %v2513 = vunpack.c.l.b16 %v2495
      %v2514 = vpack.c.b16 %v2513, %v2512
      %v2516 = vsel %vm818, %v2514, 0
      %2518 = vmatprep.subr.bf16.mxu0 0
      %2519 = vmatpush1.bf16.msra.mxu0 0
      %2520 = vmatprep.subr.bf16.mxu0 0
      %2521 = vmatpush1.bf16.msra.mxu0 0
      %2522 = vmatprep.subr.bf16.mxu0 0
      %2523 = vmatpush1.bf16.msra.mxu0 0
      %2524 = vmatprep.subr.bf16.mxu0 0
      %2525 = vmatpush1.bf16.msra.mxu0 0
      %2526 = vmatprep.subr.bf16.mxu0 0
      %2527 = vmatpush1.bf16.msra.mxu0 0
      %2528 = vmatprep.subr.bf16.mxu0 0
      %2529 = vmatpush1.bf16.msra.mxu0 0
      %2530 = vmatprep.subr.bf16.mxu0 0
      %2531 = vmatpush1.bf16.msra.mxu0 0
      %2532 = vmatprep.subr.bf16.mxu0 %v2497
      %2533 = vmatpush1.bf16.msra.mxu0 %v2496
      %2534 = vmatprep.subr.bf16.mxu0 0
      %2535 = vmatpush2.bf16.msra.mxu0 0
      %2536 = vmatprep.subr.bf16.mxu0 0
      %2537 = vmatpush2.bf16.msra.mxu0 0
      %2538 = vmatprep.subr.bf16.mxu0 0
      %2539 = vmatpush2.bf16.msra.mxu0 0
      %2540 = vmatprep.subr.bf16.mxu0 0
      %2541 = vmatpush2.bf16.msra.mxu0 0
      %2542 = vmatprep.subr.bf16.mxu0 0
      %2543 = vmatpush2.bf16.msra.mxu0 0
      %2544 = vmatprep.subr.bf16.mxu0 0
      %2545 = vmatpush2.bf16.msra.mxu0 0
      %2546 = vmatprep.subr.bf16.mxu0 0
      %2547 = vmatpush2.bf16.msra.mxu0 0
      %2548 = vmatprep.subr.bf16.mxu0 0
      %2549 = vmatpush2.bf16.msra.mxu0 0
      %2550 = vmatprep.mubr.bf16.mxu0 0
      %2551 = vmatmul.mubr.bf16.gmra.mxu0 %v2516
      %v2552 = vpop.f32.mrf.mxu0
      %v2553 = vadd.f32 %v2503, %v2552
      %v2554 = vpop.f32.mrf.mxu0
      %v2555 = vadd.f32 %v2503, %v2554
      %v2556 = vpop.f32.mrf.mxu0
      %v2557 = vadd.f32 %v2508, %v2556
      %v2558 = vpop.f32.mrf.mxu0
      %v2559 = vadd.f32 %v2508, %v2558
      %2560 = vdwg.mxu0
      %v2561 = vmax.f32 %v2553, 0.0
      %v2562 = vmax.f32 %v2555, 0.0
      %v2563 = vmax.f32 %v2557, 0.0
      %v2564 = vmax.f32 %v2559, 0.0
      %v2565 = vld [vmem:[%s14] sm:$0xff]
      %v2566 = vld [vmem:[%s14 + $0x8] sm:$0xff]
      %v2567 = vld [vmem:[%s14 + $0x10] sm:$0xff]
      %v2568 = vld [vmem:[%s14 + $0x18] sm:$0xf]
      %v2569 = vld [vmem:[%s14 + $0x1c] sm:$0xff]
      %v2570 = vld [vmem:[%s14 + $0x24] sm:$0xff]
      %v2571 = vld [vmem:[%s14 + $0x2c] sm:$0xff]
      %v2572 = vld [vmem:[%s14 + $0x34] sm:$0xf]
      %v2573 = vld [vmem:[%s14 + $0x38] sm:$0xff]
      %v2574 = vld [vmem:[%s14 + $0x40] sm:$0xff]
      %v2575 = vld [vmem:[%s14 + $0x48] sm:$0xff]
      %v2576 = vld [vmem:[%s14 + $0x50] sm:$0xf]
      %v2577 = vld [vmem:[%s14 + $0x54] sm:$0xff]
      %v2578 = vld [vmem:[%s14 + $0x5c] sm:$0xff]
      %v2579 = vld [vmem:[%s14 + $0x64] sm:$0xff]
      %v2580 = vld [vmem:[%s14 + $0x6c] sm:$0xf]
      %v2581 = vld [vmem:[%s14 + $0x70] sm:$0xff]
      %v2582 = vld [vmem:[%s14 + $0x78] sm:$0xff]
      %v2583 = vld [vmem:[%s14 + $0x80] sm:$0xff]
      %v2584 = vld [vmem:[%s14 + $0x88] sm:$0xf]
      %v2585 = vld [vmem:[%s14 + $0x8c] sm:$0xff]
      %v2586 = vld [vmem:[%s14 + $0x94] sm:$0xff]
      %v2587 = vld [vmem:[%s14 + $0x9c] sm:$0xff]
      %v2588 = vld [vmem:[%s14 + $0xa4] sm:$0xf]
      %v2589 = vld [vmem:[%s14 + $0xa8] sm:$0xff]
      %v2590 = vld [vmem:[%s14 + $0xb0] sm:$0xff]
      %v2591 = vld [vmem:[%s14 + $0xb8] sm:$0xff]
      %v2592 = vld [vmem:[%s14 + $0xc0] sm:$0xf]
      %v2593 = vld [vmem:[%s14 + $0xc4] sm:$0xff]
      %v2594 = vld [vmem:[%s14 + $0xcc] sm:$0xff]
      %v2595 = vld [vmem:[%s14 + $0xd4] sm:$0xff]
      %v2596 = vld [vmem:[%s14 + $0xdc] sm:$0xf]
      %v2597 = vld [vmem:[%s14 + $0xe0] sm:$0xff]
      %v2598 = vld [vmem:[%s14 + $0xe8] sm:$0xff]
      %v2599 = vld [vmem:[%s14 + $0xf0] sm:$0xff]
      %v2600 = vld [vmem:[%s14 + $0xf8] sm:$0xf]
      %v2601 = vld [vmem:[%s14 + $0xfc] sm:$0xff]
      %v2602 = vld [vmem:[%s14 + $0x104] sm:$0xff]
      %v2603 = vld [vmem:[%s14 + $0x10c] sm:$0xff]
      %v2604 = vld [vmem:[%s14 + $0x114] sm:$0xf]
      %v2605 = vld [vmem:[%s14 + $0x118] sm:$0xff]
      %v2606 = vld [vmem:[%s14 + $0x120] sm:$0xff]
      %v2607 = vld [vmem:[%s14 + $0x128] sm:$0xff]
      %v2608 = vld [vmem:[%s14 + $0x130] sm:$0xf]
      %v2609 = vld [vmem:[%s14 + $0x134] sm:$0xff]
      %v2610 = vld [vmem:[%s14 + $0x13c] sm:$0xff]
      %v2611 = vld [vmem:[%s14 + $0x144] sm:$0xff]
      %v2612 = vld [vmem:[%s14 + $0x14c] sm:$0xf]
      %v2613 = vld [vmem:[%s14 + $0x150] sm:$0xff]
      %v2614 = vld [vmem:[%s14 + $0x158] sm:$0xff]
      %v2615 = vld [vmem:[%s14 + $0x160] sm:$0xff]
      %v2616 = vld [vmem:[%s14 + $0x168] sm:$0xf]
      %v2617 = vld [vmem:[%s14 + $0x16c] sm:$0xff]
      %v2618 = vld [vmem:[%s14 + $0x174] sm:$0xff]
      %v2619 = vld [vmem:[%s14 + $0x17c] sm:$0xff]
      %v2620 = vld [vmem:[%s14 + $0x184] sm:$0xf]
      %v2621 = vld [vmem:[%s14 + $0x188] sm:$0xff]
      %v2622 = vld [vmem:[%s14 + $0x190] sm:$0xff]
      %v2623 = vld [vmem:[%s14 + $0x198] sm:$0xff]
      %v2624 = vld [vmem:[%s14 + $0x1a0] sm:$0xf]
      %v2625 = vld [vmem:[%s14 + $0x1a4] sm:$0xff]
      %v2626 = vld [vmem:[%s14 + $0x1ac] sm:$0xff]
      %v2627 = vld [vmem:[%s14 + $0x1b4] sm:$0xff]
      %v2628 = vld [vmem:[%s14 + $0x1bc] sm:$0xf]
      %v2629 = vld [vmem:[%s14 + $0x1c0] sm:$0xff]
      %v2630 = vld [vmem:[%s14 + $0x1c8] sm:$0xff]
      %v2631 = vld [vmem:[%s14 + $0x1d0] sm:$0xff]
      %v2632 = vld [vmem:[%s14 + $0x1d8] sm:$0xf]
      %v2633 = vld [vmem:[%s14 + $0x1dc] sm:$0xff]
      %v2634 = vld [vmem:[%s14 + $0x1e4] sm:$0xff]
      %v2635 = vld [vmem:[%s14 + $0x1ec] sm:$0xff]
      %v2636 = vld [vmem:[%s14 + $0x1f4] sm:$0xf]
      %v2637 = vld [vmem:[%s14 + $0x1f8] sm:$0xff]
      %v2638 = vld [vmem:[%s14 + $0x200] sm:$0xff]
      %v2639 = vld [vmem:[%s14 + $0x208] sm:$0xff]
      %v2640 = vld [vmem:[%s14 + $0x210] sm:$0xf]
      %v2641 = vld [vmem:[%s14 + $0x214] sm:$0xff]
      %v2642 = vld [vmem:[%s14 + $0x21c] sm:$0xff]
      %v2643 = vld [vmem:[%s14 + $0x224] sm:$0xff]
      %v2644 = vld [vmem:[%s14 + $0x22c] sm:$0xf]
      %v2645 = vld [vmem:[%s14 + $0x230] sm:$0xff]
      %v2646 = vld [vmem:[%s14 + $0x238] sm:$0xff]
      %v2647 = vld [vmem:[%s14 + $0x240] sm:$0xff]
      %v2648 = vld [vmem:[%s14 + $0x248] sm:$0xf]
      %v2649 = vld [vmem:[%s14 + $0x24c] sm:$0xff]
      %v2650 = vld [vmem:[%s14 + $0x254] sm:$0xff]
      %v2651 = vld [vmem:[%s14 + $0x25c] sm:$0xff]
      %v2652 = vld [vmem:[%s14 + $0x264] sm:$0xf]
      %v2653 = vld [vmem:[%s14 + $0x268] sm:$0xff]
      %v2654 = vld [vmem:[%s14 + $0x270] sm:$0xff]
      %v2655 = vld [vmem:[%s14 + $0x278] sm:$0xff]
      %v2656 = vld [vmem:[%s14 + $0x280] sm:$0xf]
      %v2657 = vld [vmem:[%s14 + $0x284] sm:$0xff]
      %v2658 = vld [vmem:[%s14 + $0x28c] sm:$0xff]
      %v2659 = vld [vmem:[%s14 + $0x294] sm:$0xff]
      %v2660 = vld [vmem:[%s14 + $0x29c] sm:$0xf]
      %v2661 = vld [vmem:[%s14 + $0x2a0] sm:$0x33]
      %v2662 = vld [vmem:[%s14 + $0x2a8] sm:$0x33]
      %v2663 = vld [vmem:[%s14 + $0x2b0] sm:$0x33]
      %v2664 = vld [vmem:[%s14 + $0x2b8] sm:$0x3]
      %v2665 = vpack.c.bf16 %v2563, %v2561
      %v2666 = vpack.c.bf16 %v2564, %v2562
      %v2767 = vunpack.c.l.b16 %v2565
      %v2768 = vunpack.c.h.b16 %v2565
      %v2769 = vunpack.c.l.b16 %v2566
      %v2770 = vunpack.c.h.b16 %v2566
      %v2771 = vunpack.c.l.b16 %v2567
      %v2772 = vunpack.c.h.b16 %v2567
      %v2773 = vunpack.c.l.b16 %v2568
      %v2774 = vunpack.c.l.b16 %v2569
      %v2775 = vunpack.c.h.b16 %v2569
      %v2776 = vunpack.c.l.b16 %v2570
      %v2777 = vunpack.c.h.b16 %v2570
      %v2778 = vunpack.c.l.b16 %v2571
      %v2779 = vunpack.c.h.b16 %v2571
      %v2780 = vunpack.c.l.b16 %v2572
      %v2781 = vunpack.c.l.b16 %v2573
      %v2782 = vunpack.c.h.b16 %v2573
      %v2783 = vunpack.c.l.b16 %v2574
      %v2784 = vunpack.c.h.b16 %v2574
      %v2785 = vunpack.c.l.b16 %v2575
      %v2786 = vunpack.c.h.b16 %v2575
      %v2787 = vunpack.c.l.b16 %v2576
      %v2788 = vunpack.c.l.b16 %v2577
      %v2789 = vunpack.c.h.b16 %v2577
      %v2790 = vunpack.c.l.b16 %v2578
      %v2791 = vunpack.c.h.b16 %v2578
      %v2792 = vunpack.c.l.b16 %v2579
      %v2793 = vunpack.c.h.b16 %v2579
      %v2794 = vunpack.c.l.b16 %v2580
      %v2795 = vunpack.c.l.b16 %v2581
      %v2796 = vunpack.c.h.b16 %v2581
      %v2797 = vunpack.c.l.b16 %v2582
      %v2798 = vunpack.c.h.b16 %v2582
      %v2799 = vunpack.c.l.b16 %v2583
      %v2800 = vunpack.c.h.b16 %v2583
      %v2801 = vunpack.c.l.b16 %v2584
      %v2802 = vunpack.c.l.b16 %v2585
      %v2803 = vunpack.c.h.b16 %v2585
      %v2804 = vunpack.c.l.b16 %v2586
      %v2805 = vunpack.c.h.b16 %v2586
      %v2806 = vunpack.c.l.b16 %v2587
      %v2807 = vunpack.c.h.b16 %v2587
      %v2808 = vunpack.c.l.b16 %v2588
      %v2809 = vunpack.c.l.b16 %v2589
      %v2810 = vunpack.c.h.b16 %v2589
      %v2811 = vunpack.c.l.b16 %v2590
      %v2812 = vunpack.c.h.b16 %v2590
      %v2813 = vunpack.c.l.b16 %v2591
      %v2814 = vunpack.c.h.b16 %v2591
      %v2815 = vunpack.c.l.b16 %v2592
      %v2816 = vunpack.c.l.b16 %v2593
      %v2817 = vunpack.c.h.b16 %v2593
      %v2818 = vunpack.c.l.b16 %v2594
      %v2819 = vunpack.c.h.b16 %v2594
      %v2820 = vunpack.c.l.b16 %v2595
      %v2821 = vunpack.c.h.b16 %v2595
      %v2822 = vunpack.c.l.b16 %v2596
      %v2823 = vunpack.c.l.b16 %v2597
      %v2824 = vunpack.c.h.b16 %v2597
      %v2825 = vunpack.c.l.b16 %v2598
      %v2826 = vunpack.c.h.b16 %v2598
      %v2827 = vunpack.c.l.b16 %v2599
      %v2828 = vunpack.c.h.b16 %v2599
      %v2829 = vunpack.c.l.b16 %v2600
      %v2830 = vunpack.c.l.b16 %v2601
      %v2831 = vunpack.c.h.b16 %v2601
      %v2832 = vunpack.c.l.b16 %v2602
      %v2833 = vunpack.c.h.b16 %v2602
      %v2834 = vunpack.c.l.b16 %v2603
      %v2835 = vunpack.c.h.b16 %v2603
      %v2836 = vunpack.c.l.b16 %v2604
      %v2837 = vunpack.c.l.b16 %v2605
      %v2838 = vunpack.c.h.b16 %v2605
      %v2839 = vunpack.c.l.b16 %v2606
      %v2840 = vunpack.c.h.b16 %v2606
      %v2841 = vunpack.c.l.b16 %v2607
      %v2842 = vunpack.c.h.b16 %v2607
      %v2843 = vunpack.c.l.b16 %v2608
      %v2844 = vunpack.c.l.b16 %v2609
      %v2845 = vunpack.c.h.b16 %v2609
      %v2846 = vunpack.c.l.b16 %v2610
      %v2847 = vunpack.c.h.b16 %v2610
      %v2848 = vunpack.c.l.b16 %v2611
      %v2849 = vunpack.c.h.b16 %v2611
      %v2850 = vunpack.c.l.b16 %v2612
      %v2851 = vunpack.c.l.b16 %v2613
      %v2852 = vunpack.c.h.b16 %v2613
      %v2853 = vunpack.c.l.b16 %v2614
      %v2854 = vunpack.c.h.b16 %v2614
      %v2855 = vunpack.c.l.b16 %v2615
      %v2856 = vunpack.c.h.b16 %v2615
      %v2857 = vunpack.c.l.b16 %v2616
      %v2858 = vunpack.c.l.b16 %v2617
      %v2859 = vunpack.c.h.b16 %v2617
      %v2860 = vunpack.c.l.b16 %v2618
      %v2861 = vunpack.c.h.b16 %v2618
      %v2862 = vunpack.c.l.b16 %v2619
      %v2863 = vunpack.c.h.b16 %v2619
      %v2864 = vunpack.c.l.b16 %v2620
      %v2865 = vunpack.c.l.b16 %v2621
      %v2866 = vunpack.c.h.b16 %v2621
      %v2867 = vunpack.c.l.b16 %v2622
      %v2868 = vunpack.c.h.b16 %v2622
      %v2869 = vunpack.c.l.b16 %v2623
      %v2870 = vunpack.c.h.b16 %v2623
      %v2871 = vunpack.c.l.b16 %v2624
      %v2872 = vunpack.c.l.b16 %v2625
      %v2873 = vunpack.c.h.b16 %v2625
      %v2874 = vunpack.c.l.b16 %v2626
      %v2875 = vunpack.c.h.b16 %v2626
      %v2876 = vunpack.c.l.b16 %v2627
      %v2877 = vunpack.c.h.b16 %v2627
      %v2878 = vunpack.c.l.b16 %v2628
      %v2879 = vunpack.c.l.b16 %v2629
      %v2880 = vunpack.c.h.b16 %v2629
      %v2881 = vunpack.c.l.b16 %v2630
      %v2882 = vunpack.c.h.b16 %v2630
      %v2883 = vunpack.c.l.b16 %v2631
      %v2884 = vunpack.c.h.b16 %v2631
      %v2885 = vunpack.c.l.b16 %v2632
      %v2886 = vunpack.c.l.b16 %v2633
      %v2887 = vunpack.c.h.b16 %v2633
      %v2888 = vunpack.c.l.b16 %v2634
      %v2889 = vunpack.c.h.b16 %v2634
      %v2890 = vunpack.c.l.b16 %v2635
      %v2891 = vunpack.c.h.b16 %v2635
      %v2892 = vunpack.c.l.b16 %v2636
      %v2893 = vunpack.c.l.b16 %v2637
      %v2894 = vunpack.c.h.b16 %v2637
      %v2895 = vunpack.c.l.b16 %v2638
      %v2896 = vunpack.c.h.b16 %v2638
      %v2897 = vunpack.c.l.b16 %v2639
      %v2898 = vunpack.c.h.b16 %v2639
      %v2899 = vunpack.c.l.b16 %v2640
      %v2900 = vunpack.c.l.b16 %v2641
      %v2901 = vunpack.c.h.b16 %v2641
      %v2902 = vunpack.c.l.b16 %v2642
      %v2903 = vunpack.c.h.b16 %v2642
      %v2904 = vunpack.c.l.b16 %v2643
      %v2905 = vunpack.c.h.b16 %v2643
      %v2906 = vunpack.c.l.b16 %v2644
      %v2907 = vunpack.c.l.b16 %v2645
      %v2908 = vunpack.c.h.b16 %v2645
      %v2909 = vunpack.c.l.b16 %v2646
      %v2910 = vunpack.c.h.b16 %v2646
      %v2911 = vunpack.c.l.b16 %v2647
      %v2912 = vunpack.c.h.b16 %v2647
      %v2913 = vunpack.c.l.b16 %v2648
      %v2914 = vunpack.c.l.b16 %v2649
      %v2915 = vunpack.c.h.b16 %v2649
      %v2916 = vunpack.c.l.b16 %v2650
      %v2917 = vunpack.c.h.b16 %v2650
      %v2918 = vunpack.c.l.b16 %v2651
      %v2919 = vunpack.c.h.b16 %v2651
      %v2920 = vunpack.c.l.b16 %v2652
      %v2921 = vunpack.c.l.b16 %v2653
      %v2922 = vunpack.c.h.b16 %v2653
      %v2923 = vunpack.c.l.b16 %v2654
      %v2924 = vunpack.c.h.b16 %v2654
      %v2925 = vunpack.c.l.b16 %v2655
      %v2926 = vunpack.c.h.b16 %v2655
      %v2927 = vunpack.c.l.b16 %v2656
      %v2928 = vunpack.c.l.b16 %v2657
      %v2929 = vunpack.c.h.b16 %v2657
      %v2930 = vunpack.c.l.b16 %v2658
      %v2931 = vunpack.c.h.b16 %v2658
      %v2932 = vunpack.c.l.b16 %v2659
      %v2933 = vunpack.c.h.b16 %v2659
      %v2934 = vunpack.c.l.b16 %v2660
      %v2935 = vunpack.c.l.b16 %v2661
      %v2936 = vunpack.c.h.b16 %v2661
      %v2937 = vunpack.c.l.b16 %v2662
      %v2938 = vunpack.c.h.b16 %v2662
      %v2939 = vunpack.c.l.b16 %v2663
      %v2940 = vunpack.c.h.b16 %v2663
      %v2941 = vunpack.c.l.b16 %v2664
      %v2942 = vpack.c.b16 %v2774, %v2767
      %v2943 = vpack.c.b16 %v2775, %v2768
      %v2944 = vpack.c.b16 %v2776, %v2769
      %v2945 = vpack.c.b16 %v2777, %v2770
      %v2946 = vpack.c.b16 %v2778, %v2771
      %v2947 = vpack.c.b16 %v2779, %v2772
      %v2948 = vpack.c.b16 %v2780, %v2773
      %v2949 = vpack.c.b16 %v2788, %v2781
      %v2950 = vpack.c.b16 %v2789, %v2782
      %v2951 = vpack.c.b16 %v2790, %v2783
      %v2952 = vpack.c.b16 %v2791, %v2784
      %v2953 = vpack.c.b16 %v2792, %v2785
      %v2954 = vpack.c.b16 %v2793, %v2786
      %v2955 = vpack.c.b16 %v2794, %v2787
      %v2956 = vpack.c.b16 %v2802, %v2795
      %v2957 = vpack.c.b16 %v2803, %v2796
      %v2958 = vpack.c.b16 %v2804, %v2797
      %v2959 = vpack.c.b16 %v2805, %v2798
      %v2960 = vpack.c.b16 %v2806, %v2799
      %v2961 = vpack.c.b16 %v2807, %v2800
      %v2962 = vpack.c.b16 %v2808, %v2801
      %v2963 = vpack.c.b16 %v2816, %v2809
      %v2964 = vpack.c.b16 %v2817, %v2810
      %v2965 = vpack.c.b16 %v2818, %v2811
      %v2966 = vpack.c.b16 %v2819, %v2812
      %v2967 = vpack.c.b16 %v2820, %v2813
      %v2968 = vpack.c.b16 %v2821, %v2814
      %v2969 = vpack.c.b16 %v2822, %v2815
      %v2970 = vpack.c.b16 %v2830, %v2823
      %v2971 = vpack.c.b16 %v2831, %v2824
      %v2972 = vpack.c.b16 %v2832, %v2825
      %v2973 = vpack.c.b16 %v2833, %v2826
      %v2974 = vpack.c.b16 %v2834, %v2827
      %v2975 = vpack.c.b16 %v2835, %v2828
      %v2976 = vpack.c.b16 %v2836, %v2829
      %v2977 = vpack.c.b16 %v2844, %v2837
      %v2978 = vpack.c.b16 %v2845, %v2838
      %v2979 = vpack.c.b16 %v2846, %v2839
      %v2980 = vpack.c.b16 %v2847, %v2840
      %v2981 = vpack.c.b16 %v2848, %v2841
      %v2982 = vpack.c.b16 %v2849, %v2842
      %v2983 = vpack.c.b16 %v2850, %v2843
      %v2984 = vpack.c.b16 %v2858, %v2851
      %v2985 = vpack.c.b16 %v2859, %v2852
      %v2986 = vpack.c.b16 %v2860, %v2853
      %v2987 = vpack.c.b16 %v2861, %v2854
      %v2988 = vpack.c.b16 %v2862, %v2855
      %v2989 = vpack.c.b16 %v2863, %v2856
      %v2990 = vpack.c.b16 %v2864, %v2857
      %v2991 = vpack.c.b16 %v2872, %v2865
      %v2992 = vpack.c.b16 %v2873, %v2866
      %v2993 = vpack.c.b16 %v2874, %v2867
      %v2994 = vpack.c.b16 %v2875, %v2868
      %v2995 = vpack.c.b16 %v2876, %v2869
      %v2996 = vpack.c.b16 %v2877, %v2870
      %v2997 = vpack.c.b16 %v2878, %v2871
      %v2998 = vpack.c.b16 %v2886, %v2879
      %v2999 = vpack.c.b16 %v2887, %v2880
      %v3000 = vpack.c.b16 %v2888, %v2881
      %v3001 = vpack.c.b16 %v2889, %v2882
      %v3002 = vpack.c.b16 %v2890, %v2883
      %v3003 = vpack.c.b16 %v2891, %v2884
      %v3004 = vpack.c.b16 %v2892, %v2885
      %v3005 = vpack.c.b16 %v2900, %v2893
      %v3006 = vpack.c.b16 %v2901, %v2894
      %v3007 = vpack.c.b16 %v2902, %v2895
      %v3008 = vpack.c.b16 %v2903, %v2896
      %v3009 = vpack.c.b16 %v2904, %v2897
      %v3010 = vpack.c.b16 %v2905, %v2898
      %v3011 = vpack.c.b16 %v2906, %v2899
      %v3012 = vpack.c.b16 %v2914, %v2907
      %v3013 = vpack.c.b16 %v2915, %v2908
      %v3014 = vpack.c.b16 %v2916, %v2909
      %v3015 = vpack.c.b16 %v2917, %v2910
      %v3016 = vpack.c.b16 %v2918, %v2911
      %v3017 = vpack.c.b16 %v2919, %v2912
      %v3018 = vpack.c.b16 %v2920, %v2913
      %v3019 = vpack.c.b16 %v2928, %v2921
      %v3020 = vpack.c.b16 %v2929, %v2922
      %v3021 = vpack.c.b16 %v2930, %v2923
      %v3022 = vpack.c.b16 %v2931, %v2924
      %v3023 = vpack.c.b16 %v2932, %v2925
      %v3024 = vpack.c.b16 %v2933, %v2926
      %v3025 = vpack.c.b16 %v2934, %v2927
      %v3026 = vpack.c.b16 %v2935, %v2935
      %v3027 = vpack.c.b16 %v2936, %v2936
      %v3028 = vpack.c.b16 %v2937, %v2937
      %v3029 = vpack.c.b16 %v2938, %v2938
      %v3030 = vpack.c.b16 %v2939, %v2939
      %v3031 = vpack.c.b16 %v2940, %v2940
      %v3032 = vpack.c.b16 %v2941, %v2941
      %vm3117 = vcmask 556032
      %v3119 = vsel %vm3117, %v2666, 0
      %vm3121 = vcmask 1041408
      %v3123 = vsel %vm3121, %v3026, 0
      %v3126 = vsel %vm3121, %v3027, 0
      %v3129 = vsel %vm3121, %v3028, 0
      %v3132 = vsel %vm3121, %v3029, 0
      %v3135 = vsel %vm3121, %v3030, 0
      %v3138 = vsel %vm3121, %v3031, 0
      %v3141 = vsel %vm3121, %v3032, 0
      %3143 = vmatprep.subr.bf16.mxu0 %v2992
      %3144 = vmatpush1.bf16.msra.mxu0 %v2991
      %3145 = vmatprep.subr.bf16.mxu0 %v2985
      %3146 = vmatpush1.bf16.msra.mxu0 %v2984
      %3147 = vmatprep.subr.bf16.mxu0 %v2978
      %3148 = vmatpush1.bf16.msra.mxu0 %v2977
      %3149 = vmatprep.subr.bf16.mxu0 %v2971
      %3150 = vmatpush1.bf16.msra.mxu0 %v2970
      %3151 = vmatprep.subr.bf16.mxu0 %v2964
      %3152 = vmatpush1.bf16.msra.mxu0 %v2963
      %3153 = vmatprep.subr.bf16.mxu0 %v2957
      %3154 = vmatpush1.bf16.msra.mxu0 %v2956
      %3155 = vmatprep.subr.bf16.mxu0 %v2950
      %3156 = vmatpush1.bf16.msra.mxu0 %v2949
      %3157 = vmatprep.subr.bf16.mxu0 %v2943
      %3158 = vmatpush1.bf16.msra.mxu0 %v2942
      %3159 = vmatprep.subr.bf16.mxu0 0
      %3160 = vmatpush2.bf16.msra.mxu0 0
      %3161 = vmatprep.subr.bf16.mxu0 0
      %3162 = vmatpush2.bf16.msra.mxu0 0
      %3163 = vmatprep.subr.bf16.mxu0 0
      %3164 = vmatpush2.bf16.msra.mxu0 0
      %3165 = vmatprep.subr.bf16.mxu0 %v3126
      %3166 = vmatpush2.bf16.msra.mxu0 %v3123
      %3167 = vmatprep.subr.bf16.mxu0 %v3020
      %3168 = vmatpush2.bf16.msra.mxu0 %v3019
      %3169 = vmatprep.subr.bf16.mxu0 %v3013
      %3170 = vmatpush2.bf16.msra.mxu0 %v3012
      %3171 = vmatprep.subr.bf16.mxu0 %v3006
      %3172 = vmatpush2.bf16.msra.mxu0 %v3005
      %3173 = vmatprep.subr.bf16.mxu0 %v2999
      %3174 = vmatpush2.bf16.msra.mxu0 %v2998
      %3175 = vmatprep.mubr.bf16.mxu0 %v3119
      %3176 = vmatmul.mubr.bf16.gmra.mxu0 %v2665
      %v3177 = vpop.f32.mrf.mxu0
      %v3178 = vadd.f32 0.0, %v3177
      %v3179 = vpop.f32.mrf.mxu0
      %v3180 = vadd.f32 0.0, %v3179
      %v3181 = vpop.f32.mrf.mxu0
      %v3182 = vadd.f32 0.0, %v3181
      %v3183 = vpop.f32.mrf.mxu0
      %v3184 = vadd.f32 0.0, %v3183
      %3185 = vdwg.mxu0
      %3186 = vmatprep.subr.bf16.mxu0 %v2994
      %3187 = vmatpush1.bf16.msra.mxu0 %v2993
      %3188 = vmatprep.subr.bf16.mxu0 %v2987
      %3189 = vmatpush1.bf16.msra.mxu0 %v2986
      %3190 = vmatprep.subr.bf16.mxu0 %v2980
      %3191 = vmatpush1.bf16.msra.mxu0 %v2979
      %3192 = vmatprep.subr.bf16.mxu0 %v2973
      %3193 = vmatpush1.bf16.msra.mxu0 %v2972
      %3194 = vmatprep.subr.bf16.mxu0 %v2966
      %3195 = vmatpush1.bf16.msra.mxu0 %v2965
      %3196 = vmatprep.subr.bf16.mxu0 %v2959
      %3197 = vmatpush1.bf16.msra.mxu0 %v2958
      %3198 = vmatprep.subr.bf16.mxu0 %v2952
      %3199 = vmatpush1.bf16.msra.mxu0 %v2951
      %3200 = vmatprep.subr.bf16.mxu0 %v2945
      %3201 = vmatpush1.bf16.msra.mxu0 %v2944
      %3202 = vmatprep.subr.bf16.mxu0 0
      %3203 = vmatpush2.bf16.msra.mxu0 0
      %3204 = vmatprep.subr.bf16.mxu0 0
      %3205 = vmatpush2.bf16.msra.mxu0 0
      %3206 = vmatprep.subr.bf16.mxu0 0
      %3207 = vmatpush2.bf16.msra.mxu0 0
      %3208 = vmatprep.subr.bf16.mxu0 %v3132
      %3209 = vmatpush2.bf16.msra.mxu0 %v3129
      %3210 = vmatprep.subr.bf16.mxu0 %v3022
      %3211 = vmatpush2.bf16.msra.mxu0 %v3021
      %3212 = vmatprep.subr.bf16.mxu0 %v3015
      %3213 = vmatpush2.bf16.msra.mxu0 %v3014
      %3214 = vmatprep.subr.bf16.mxu0 %v3008
      %3215 = vmatpush2.bf16.msra.mxu0 %v3007
      %3216 = vmatprep.subr.bf16.mxu0 %v3001
      %3217 = vmatpush2.bf16.msra.mxu0 %v3000
      %3218 = vmatprep.mubr.bf16.mxu0 %v3119
      %3219 = vmatmul.mubr.bf16.gmra.mxu0 %v2665
      %v3220 = vpop.f32.mrf.mxu0
      %v3221 = vadd.f32 0.0, %v3220
      %v3222 = vpop.f32.mrf.mxu0
      %v3223 = vadd.f32 0.0, %v3222
      %v3224 = vpop.f32.mrf.mxu0
      %v3225 = vadd.f32 0.0, %v3224
      %v3226 = vpop.f32.mrf.mxu0
      %v3227 = vadd.f32 0.0, %v3226
      %3228 = vdwg.mxu0
      %3229 = vmatprep.subr.bf16.mxu0 %v2996
      %3230 = vmatpush1.bf16.msra.mxu0 %v2995
      %3231 = vmatprep.subr.bf16.mxu0 %v2989
      %3232 = vmatpush1.bf16.msra.mxu0 %v2988
      %3233 = vmatprep.subr.bf16.mxu0 %v2982
      %3234 = vmatpush1.bf16.msra.mxu0 %v2981
      %3235 = vmatprep.subr.bf16.mxu0 %v2975
      %3236 = vmatpush1.bf16.msra.mxu0 %v2974
      %3237 = vmatprep.subr.bf16.mxu0 %v2968
      %3238 = vmatpush1.bf16.msra.mxu0 %v2967
      %3239 = vmatprep.subr.bf16.mxu0 %v2961
      %3240 = vmatpush1.bf16.msra.mxu0 %v2960
      %3241 = vmatprep.subr.bf16.mxu0 %v2954
      %3242 = vmatpush1.bf16.msra.mxu0 %v2953
      %3243 = vmatprep.subr.bf16.mxu0 %v2947
      %3244 = vmatpush1.bf16.msra.mxu0 %v2946
      %3245 = vmatprep.subr.bf16.mxu0 0
      %3246 = vmatpush2.bf16.msra.mxu0 0
      %3247 = vmatprep.subr.bf16.mxu0 0
      %3248 = vmatpush2.bf16.msra.mxu0 0
      %3249 = vmatprep.subr.bf16.mxu0 0
      %3250 = vmatpush2.bf16.msra.mxu0 0
      %3251 = vmatprep.subr.bf16.mxu0 %v3138
      %3252 = vmatpush2.bf16.msra.mxu0 %v3135
      %3253 = vmatprep.subr.bf16.mxu0 %v3024
      %3254 = vmatpush2.bf16.msra.mxu0 %v3023
      %3255 = vmatprep.subr.bf16.mxu0 %v3017
      %3256 = vmatpush2.bf16.msra.mxu0 %v3016
      %3257 = vmatprep.subr.bf16.mxu0 %v3010
      %3258 = vmatpush2.bf16.msra.mxu0 %v3009
      %3259 = vmatprep.subr.bf16.mxu0 %v3003
      %3260 = vmatpush2.bf16.msra.mxu0 %v3002
      %3261 = vmatprep.mubr.bf16.mxu0 %v3119
      %3262 = vmatmul.mubr.bf16.gmra.mxu0 %v2665
      %v3263 = vpop.f32.mrf.mxu0
      %v3264 = vadd.f32 0.0, %v3263
      %v3265 = vpop.f32.mrf.mxu0
      %v3266 = vadd.f32 0.0, %v3265
      %v3267 = vpop.f32.mrf.mxu0
      %v3268 = vadd.f32 0.0, %v3267
      %v3269 = vpop.f32.mrf.mxu0
      %v3270 = vadd.f32 0.0, %v3269
      %3271 = vdwg.mxu0
      %3272 = vmatprep.subr.bf16.mxu0 0
      %3273 = vmatpush1.bf16.msra.mxu0 %v2997
      %3274 = vmatprep.subr.bf16.mxu0 0
      %3275 = vmatpush1.bf16.msra.mxu0 %v2990
      %3276 = vmatprep.subr.bf16.mxu0 0
      %3277 = vmatpush1.bf16.msra.mxu0 %v2983
      %3278 = vmatprep.subr.bf16.mxu0 0
      %3279 = vmatpush1.bf16.msra.mxu0 %v2976
      %3280 = vmatprep.subr.bf16.mxu0 0
      %3281 = vmatpush1.bf16.msra.mxu0 %v2969
      %3282 = vmatprep.subr.bf16.mxu0 0
      %3283 = vmatpush1.bf16.msra.mxu0 %v2962
      %3284 = vmatprep.subr.bf16.mxu0 0
      %3285 = vmatpush1.bf16.msra.mxu0 %v2955
      %3286 = vmatprep.subr.bf16.mxu0 0
      %3287 = vmatpush1.bf16.msra.mxu0 %v2948
      %3288 = vmatprep.subr.bf16.mxu0 0
      %3289 = vmatpush2.bf16.msra.mxu0 0
      %3290 = vmatprep.subr.bf16.mxu0 0
      %3291 = vmatpush2.bf16.msra.mxu0 0
      %3292 = vmatprep.subr.bf16.mxu0 0
      %3293 = vmatpush2.bf16.msra.mxu0 0
      %3294 = vmatprep.subr.bf16.mxu0 0
      %3295 = vmatpush2.bf16.msra.mxu0 %v3141
      %3296 = vmatprep.subr.bf16.mxu0 0
      %3297 = vmatpush2.bf16.msra.mxu0 %v3025
      %3298 = vmatprep.subr.bf16.mxu0 0
      %3299 = vmatpush2.bf16.msra.mxu0 %v3018
      %3300 = vmatprep.subr.bf16.mxu0 0
      %3301 = vmatpush2.bf16.msra.mxu0 %v3011
      %3302 = vmatprep.subr.bf16.mxu0 0
      %3303 = vmatpush2.bf16.msra.mxu0 %v3004
      %3304 = vmatprep.mubr.bf16.mxu0 %v3119
      %3305 = vmatmul.mubr.bf16.gmra.mxu0 %v2665
      %v3306 = vpop.f32.mrf.mxu0
      %v3307 = vadd.f32 0.0, %v3306
      %v3308 = vpop.f32.mrf.mxu0
      %v3309 = vpop.f32.mrf.mxu0
      %v3310 = vadd.f32 0.0, %v3309
      %v3311 = vpop.f32.mrf.mxu0
      %3312 = vdwg.mxu0
      %3313 = vst [vmem:[%s538] sm:$0xff] %v3178
      %3314 = vst [vmem:[%s538 + $0x8] sm:$0xff] %v3180
      %3315 = vst [vmem:[%s538 + $0x10] sm:$0xff] %v3221
      %3316 = vst [vmem:[%s538 + $0x18] sm:$0xff] %v3223
      %3317 = vst [vmem:[%s538 + $0x20] sm:$0xff] %v3264
      %3318 = vst [vmem:[%s538 + $0x28] sm:$0xff] %v3266
      %3319 = vst.msk [vmem:[%s538 + $0x30] sm:$0xff] %vm818, %v3307
      %3320 = vst [vmem:[%s538 + $0x38] sm:$0x7f] %v3182
      %3321 = vst [vmem:[%s538 + $0x40] sm:$0x7f] %v3184
      %3322 = vst [vmem:[%s538 + $0x48] sm:$0x7f] %v3225
      %3323 = vst [vmem:[%s538 + $0x50] sm:$0x7f] %v3227
      %3324 = vst [vmem:[%s538 + $0x58] sm:$0x7f] %v3268
      %3325 = vst [vmem:[%s538 + $0x60] sm:$0x7f] %v3270
      %vm3326 = vcmask 129024
      %3327 = vst.msk [vmem:[%s538 + $0x68] sm:$0x7f] %vm3326, %v3310
      %v3328 = vpack.c.bf16 %v881, %v881
      %v3329 = vpack.c.bf16 %v885, %v885
      %v3331 = vsel %vm3117, %v3329, 0
      %3333 = vmatprep.subr.bf16.mxu0 %v2992
      %3334 = vmatpush1.bf16.msra.mxu0 %v2991
      %3335 = vmatprep.subr.bf16.mxu0 %v2985
      %3336 = vmatpush1.bf16.msra.mxu0 %v2984
      %3337 = vmatprep.subr.bf16.mxu0 %v2978
      %3338 = vmatpush1.bf16.msra.mxu0 %v2977
      %3339 = vmatprep.subr.bf16.mxu0 %v2971
      %3340 = vmatpush1.bf16.msra.mxu0 %v2970
      %3341 = vmatprep.subr.bf16.mxu0 %v2964
      %3342 = vmatpush1.bf16.msra.mxu0 %v2963
      %3343 = vmatprep.subr.bf16.mxu0 %v2957
      %3344 = vmatpush1.bf16.msra.mxu0 %v2956
      %3345 = vmatprep.subr.bf16.mxu0 %v2950
      %3346 = vmatpush1.bf16.msra.mxu0 %v2949
      %3347 = vmatprep.subr.bf16.mxu0 %v2943
      %3348 = vmatpush1.bf16.msra.mxu0 %v2942
      %3349 = vmatprep.subr.bf16.mxu0 0
      %3350 = vmatpush2.bf16.msra.mxu0 0
      %3351 = vmatprep.subr.bf16.mxu0 0
      %3352 = vmatpush2.bf16.msra.mxu0 0
      %3353 = vmatprep.subr.bf16.mxu0 0
      %3354 = vmatpush2.bf16.msra.mxu0 0
      %3355 = vmatprep.subr.bf16.mxu0 %v3126
      %3356 = vmatpush2.bf16.msra.mxu0 %v3123
      %3357 = vmatprep.subr.bf16.mxu0 %v3020
      %3358 = vmatpush2.bf16.msra.mxu0 %v3019
      %3359 = vmatprep.subr.bf16.mxu0 %v3013
      %3360 = vmatpush2.bf16.msra.mxu0 %v3012
      %3361 = vmatprep.subr.bf16.mxu0 %v3006
      %3362 = vmatpush2.bf16.msra.mxu0 %v3005
      %3363 = vmatprep.subr.bf16.mxu0 %v2999
      %3364 = vmatpush2.bf16.msra.mxu0 %v2998
      %3365 = vmatprep.mubr.bf16.mxu0 %v3331
      %3366 = vmatmul.mubr.bf16.gmra.mxu0 %v3328
      %v3367 = vpop.f32.mrf.mxu0
      %v3368 = vadd.f32 0.0, %v3367
      %v3369 = vpop.f32.mrf.mxu0
      %v3370 = vadd.f32 0.0, %v3369
      %v3371 = vpop.f32.mrf.mxu0
      %v3372 = vpop.f32.mrf.mxu0
      %3373 = vdwg.mxu0
      %3374 = vmatprep.subr.bf16.mxu0 %v2994
      %3375 = vmatpush1.bf16.msra.mxu0 %v2993
      %3376 = vmatprep.subr.bf16.mxu0 %v2987
      %3377 = vmatpush1.bf16.msra.mxu0 %v2986
      %3378 = vmatprep.subr.bf16.mxu0 %v2980
      %3379 = vmatpush1.bf16.msra.mxu0 %v2979
      %3380 = vmatprep.subr.bf16.mxu0 %v2973
      %3381 = vmatpush1.bf16.msra.mxu0 %v2972
      %3382 = vmatprep.subr.bf16.mxu0 %v2966
      %3383 = vmatpush1.bf16.msra.mxu0 %v2965
      %3384 = vmatprep.subr.bf16.mxu0 %v2959
      %3385 = vmatpush1.bf16.msra.mxu0 %v2958
      %3386 = vmatprep.subr.bf16.mxu0 %v2952
      %3387 = vmatpush1.bf16.msra.mxu0 %v2951
      %3388 = vmatprep.subr.bf16.mxu0 %v2945
      %3389 = vmatpush1.bf16.msra.mxu0 %v2944
      %3390 = vmatprep.subr.bf16.mxu0 0
      %3391 = vmatpush2.bf16.msra.mxu0 0
      %3392 = vmatprep.subr.bf16.mxu0 0
      %3393 = vmatpush2.bf16.msra.mxu0 0
      %3394 = vmatprep.subr.bf16.mxu0 0
      %3395 = vmatpush2.bf16.msra.mxu0 0
      %3396 = vmatprep.subr.bf16.mxu0 %v3132
      %3397 = vmatpush2.bf16.msra.mxu0 %v3129
      %3398 = vmatprep.subr.bf16.mxu0 %v3022
      %3399 = vmatpush2.bf16.msra.mxu0 %v3021
      %3400 = vmatprep.subr.bf16.mxu0 %v3015
      %3401 = vmatpush2.bf16.msra.mxu0 %v3014
      %3402 = vmatprep.subr.bf16.mxu0 %v3008
      %3403 = vmatpush2.bf16.msra.mxu0 %v3007
      %3404 = vmatprep.subr.bf16.mxu0 %v3001
      %3405 = vmatpush2.bf16.msra.mxu0 %v3000
      %3406 = vmatprep.mubr.bf16.mxu0 %v3331
      %3407 = vmatmul.mubr.bf16.gmra.mxu0 %v3328
      %v3408 = vpop.f32.mrf.mxu0
      %v3409 = vadd.f32 0.0, %v3408
      %v3410 = vpop.f32.mrf.mxu0
      %v3411 = vadd.f32 0.0, %v3410
      %v3412 = vpop.f32.mrf.mxu0
      %v3413 = vpop.f32.mrf.mxu0
      %3414 = vdwg.mxu0
      %3415 = vmatprep.subr.bf16.mxu0 %v2996
      %3416 = vmatpush1.bf16.msra.mxu0 %v2995
      %3417 = vmatprep.subr.bf16.mxu0 %v2989
      %3418 = vmatpush1.bf16.msra.mxu0 %v2988
      %3419 = vmatprep.subr.bf16.mxu0 %v2982
      %3420 = vmatpush1.bf16.msra.mxu0 %v2981
      %3421 = vmatprep.subr.bf16.mxu0 %v2975
      %3422 = vmatpush1.bf16.msra.mxu0 %v2974
      %3423 = vmatprep.subr.bf16.mxu0 %v2968
      %3424 = vmatpush1.bf16.msra.mxu0 %v2967
      %3425 = vmatprep.subr.bf16.mxu0 %v2961
      %3426 = vmatpush1.bf16.msra.mxu0 %v2960
      %3427 = vmatprep.subr.bf16.mxu0 %v2954
      %3428 = vmatpush1.bf16.msra.mxu0 %v2953
      %3429 = vmatprep.subr.bf16.mxu0 %v2947
      %3430 = vmatpush1.bf16.msra.mxu0 %v2946
      %3431 = vmatprep.subr.bf16.mxu0 0
      %3432 = vmatpush2.bf16.msra.mxu0 0
      %3433 = vmatprep.subr.bf16.mxu0 0
      %3434 = vmatpush2.bf16.msra.mxu0 0
      %3435 = vmatprep.subr.bf16.mxu0 0
      %3436 = vmatpush2.bf16.msra.mxu0 0
      %3437 = vmatprep.subr.bf16.mxu0 %v3138
      %3438 = vmatpush2.bf16.msra.mxu0 %v3135
      %3439 = vmatprep.subr.bf16.mxu0 %v3024
      %3440 = vmatpush2.bf16.msra.mxu0 %v3023
      %3441 = vmatprep.subr.bf16.mxu0 %v3017
      %3442 = vmatpush2.bf16.msra.mxu0 %v3016
      %3443 = vmatprep.subr.bf16.mxu0 %v3010
      %3444 = vmatpush2.bf16.msra.mxu0 %v3009
      %3445 = vmatprep.subr.bf16.mxu0 %v3003
      %3446 = vmatpush2.bf16.msra.mxu0 %v3002
      %3447 = vmatprep.mubr.bf16.mxu0 %v3331
      %3448 = vmatmul.mubr.bf16.gmra.mxu0 %v3328
      %v3449 = vpop.f32.mrf.mxu0
      %v3450 = vadd.f32 0.0, %v3449
      %v3451 = vpop.f32.mrf.mxu0
      %v3452 = vadd.f32 0.0, %v3451
      %v3453 = vpop.f32.mrf.mxu0
      %v3454 = vpop.f32.mrf.mxu0
      %3455 = vdwg.mxu0
      %3456 = vmatprep.subr.bf16.mxu0 0
      %3457 = vmatpush1.bf16.msra.mxu0 %v2997
      %3458 = vmatprep.subr.bf16.mxu0 0
      %3459 = vmatpush1.bf16.msra.mxu0 %v2990
      %3460 = vmatprep.subr.bf16.mxu0 0
      %3461 = vmatpush1.bf16.msra.mxu0 %v2983
      %3462 = vmatprep.subr.bf16.mxu0 0
      %3463 = vmatpush1.bf16.msra.mxu0 %v2976
      %3464 = vmatprep.subr.bf16.mxu0 0
      %3465 = vmatpush1.bf16.msra.mxu0 %v2969
      %3466 = vmatprep.subr.bf16.mxu0 0
      %3467 = vmatpush1.bf16.msra.mxu0 %v2962
      %3468 = vmatprep.subr.bf16.mxu0 0
      %3469 = vmatpush1.bf16.msra.mxu0 %v2955
      %3470 = vmatprep.subr.bf16.mxu0 0
      %3471 = vmatpush1.bf16.msra.mxu0 %v2948
      %3472 = vmatprep.subr.bf16.mxu0 0
      %3473 = vmatpush2.bf16.msra.mxu0 0
      %3474 = vmatprep.subr.bf16.mxu0 0
      %3475 = vmatpush2.bf16.msra.mxu0 0
      %3476 = vmatprep.subr.bf16.mxu0 0
      %3477 = vmatpush2.bf16.msra.mxu0 0
      %3478 = vmatprep.subr.bf16.mxu0 0
      %3479 = vmatpush2.bf16.msra.mxu0 %v3141
      %3480 = vmatprep.subr.bf16.mxu0 0
      %3481 = vmatpush2.bf16.msra.mxu0 %v3025
      %3482 = vmatprep.subr.bf16.mxu0 0
      %3483 = vmatpush2.bf16.msra.mxu0 %v3018
      %3484 = vmatprep.subr.bf16.mxu0 0
      %3485 = vmatpush2.bf16.msra.mxu0 %v3011
      %3486 = vmatprep.subr.bf16.mxu0 0
      %3487 = vmatpush2.bf16.msra.mxu0 %v3004
      %3488 = vmatprep.mubr.bf16.mxu0 %v3331
      %3489 = vmatmul.mubr.bf16.gmra.mxu0 %v3328
      %v3490 = vpop.f32.mrf.mxu0
      %v3491 = vadd.f32 0.0, %v3490
      %v3492 = vpop.f32.mrf.mxu0
      %v3493 = vpop.f32.mrf.mxu0
      %v3494 = vpop.f32.mrf.mxu0
      %3495 = vdwg.mxu0
      %v3503 = vcombine.low %v3368, %v3370
      %v3504 = vcombine.low %v3409, %v3411
      %v3505 = vcombine.low %v3450, %v3452
      %v3507 = vunpack.c.l.s4 1966171168
      %v3508 = vunpack.c.0.s8 %v3507
      %v3509 = vlaneseq
      %v3510 = vshrl.u32 %v3509, 7
      %v3511 = vsub.s32 %v3508, %v3510
      %v3512 = vrot.slane %v3503, %v3511
      %v3514 = vunpack.c.l.s4 1966171168
      %v3515 = vunpack.c.0.s8 %v3514
      %v3516 = vlaneseq
      %v3517 = vshrl.u32 %v3516, 7
      %v3518 = vsub.s32 %v3515, %v3517
      %v3519 = vrot.slane %v3504, %v3518
      %v3521 = vunpack.c.l.s4 1966171168
      %v3522 = vunpack.c.0.s8 %v3521
      %v3523 = vlaneseq
      %v3524 = vshrl.u32 %v3523, 7
      %v3525 = vsub.s32 %v3522, %v3524
      %v3526 = vrot.slane %v3505, %v3525
      %v3528 = vunpack.c.l.s4 1966171168
      %v3529 = vunpack.c.0.s8 %v3528
      %v3530 = vlaneseq
      %v3531 = vshrl.u32 %v3530, 7
      %v3532 = vsub.s32 %v3529, %v3531
      %v3533 = vrot.slane %v3491, %v3532
      %v3534 = vcombine.low %v3512, %v3519
      %v3535 = vcombine.low %v3526, %v3533
      %v3537 = vunpack.c.l.s4 1966171168
      %v3538 = vunpack.c.0.s8 %v3537
      %v3539 = vlaneseq
      %v3540 = vshrl.u32 %v3539, 7
      %v3541 = vsub.s32 %v3538, %v3540
      %v3542 = vrot.slane %v3534, %v3541
      %v3544 = vunpack.c.l.s4 1966171168
      %v3545 = vunpack.c.0.s8 %v3544
      %v3546 = vlaneseq
      %v3547 = vshrl.u32 %v3546, 7
      %v3548 = vsub.s32 %v3545, %v3547
      %v3549 = vrot.slane %v3535, %v3548
      %v3550 = vcombine.low %v3542, %v3549
      %v3552 = vlaneseq
      %vm3553 = vcmp.ge.s32.totalorder %v3552, 0
      %vm3554 = vcmp.lt.s32.totalorder %v3552, 784
      %vm3555 = vmand %vm3553, %vm3554
      %s3556 = scalar_lea.vmem %s538, 63
      %3557 = vst.msk [vmem:[%s3556] ss:$8 sm:$0xf] %vm3555, %v3550
      %3558 = vst.msk [vmem:[%s3556] ss:$8 sm:$0x70] %vm3555, %v3550
      %p3559 = scmp.lt.s32.totalorder %s32, 3
      %s3560 = scalar_select %p3559, %s32, 3
      %s3561 = smul.addr %s3560, 14
      %s3562 = smul.addr %s3561, 8
      %s3563 = scalar_lea.vmem %s15, %s3562
      // Predicated region
      $region77: #{simple_sfm_forward.3} parent=75 // pred_check
        %p3564 = pneg %p366
      $region78: #{simple_sfm_forward.3} parent=75 // pred_check_branch
        %3566 = sbr.rel (%p3564) target = $region80
      $region79: #{simple_sfm_forward.3} parent=75 // pred_region
        _
      $region80: #{simple_sfm_forward.3} parent=75 // pred_fallthru
        _
    $region76: #{simple_sfm_forward.3} parent=5 // pred_fallthru
      _
    %p3567 = scmp.le.s32.totalorder 2, %s27
    // Predicated region
    $region81: #{simple_sfm_forward.3} parent=5 // pred_check
      %p3568 = pneg %p3567
    $region82: #{simple_sfm_forward.3} parent=5 // pred_check_branch
      %3570 = sbr.rel (%p3568) target = $region84
    $region83: #{simple_sfm_forward.3} parent=5 // pred_region
      %s3571 = ssub.s32 %s27, 2
      // Predicated region
      $region85: #{simple_sfm_forward.3} parent=83 // pred_check
        %p3572 = pneg %p372
      $region86: #{simple_sfm_forward.3} parent=83 // pred_check_branch
        %3574 = sbr.rel (%p3572) target = $region88
      $region87: #{simple_sfm_forward.3} parent=83 // pred_region
        %p3575 = scmp.lt.s32.totalorder %s33, 3
        %s3576 = scalar_select %p3575, %s33, 3
        %s3577 = smul.addr %s3576, 14
        %s3578 = smul.addr %s3577, 8
        %s3579 = scalar_lea.vmem %s15, %s3578
      $region88: #{simple_sfm_forward.3} parent=83 // pred_fallthru
        _
    $region84: #{simple_sfm_forward.3} parent=5 // pred_fallthru
      _
  $region6: #{simple_sfm_forward.3} parent=0 // loop_footer
    %s31 = sadd.s32 1, %s27
  $region7: #{simple_sfm_forward.3} parent=0 // loop_footer_branch
    %26 = sbr.rel target = $region3
  $region8: #{simple_sfm_forward.3} parent=0 // loop_exit
    _

</llo_original>
